<compile_context>
chip_gen: v7x
topology: tpu7x:2x2x1
jax: 0.10.0
libtpu: 0.0.40
codegen_flags: <defaults>
</compile_context>

<pallas_src>
import jax
import jax.numpy as jnp
from jax import lax
from jax.experimental import pallas as pl
from jax.experimental.pallas import tpu as pltpu

# ----- scaled-down config (T5-base-like structure, small dims) -----
VOCAB = 64
D_MODEL = 32
N_HEADS = 4
D_HEAD = D_MODEL // N_HEADS
D_FF = 64
N_LAYERS = 2
N_BUCKETS = 8
MAX_DIST = 16
OUT_DIM = 128          # XTR projection dim
EPS_LN = 1e-6          # T5 LayerNorm eps
EPS_L2 = 1e-12         # torch.nn.functional.normalize eps
NEG_INF = -1e9


# ---------------- fused Pallas kernel: whole encoder + projection ----------------

def _xtr_fused_kernel(x_ref, bias_ref,
                      ln1_ref, wqkv_ref, wo_ref,
                      ln2_ref, wi_ref, wo_ff_ref,
                      final_ln_ref, proj_ref,
                      o_ref):
    """Single invocation, everything VMEM-resident.

    x_ref        : (B*S, D)        embedded tokens (residual stream input)
    bias_ref     : (H, B*S, B*S)   additive scores bias (pos bias + key pad + cross-batch)
    ln1_ref/ln2  : (L, 1, D)       RMSNorm weights per layer
    wqkv_ref     : (L, D, 3*D)     fused Q|K|V projection
    wo_ref       : (L, D, D)       attention output projection
    wi_ref       : (L, D, D_FF)    FFN up (ReLU)
    wo_ff_ref    : (L, D_FF, D)    FFN down
    final_ln_ref : (1, D)
    proj_ref     : (D, OUT_DIM)    XTR dense head (no bias)
    o_ref        : (B*S, OUT_DIM)  L2-normalized embeddings
    """
    x = x_ref[...]

    def rmsnorm(h, w_row):                       # T5 LayerNorm (no mean subtraction)
        var = jnp.mean(h * h, axis=-1, keepdims=True)
        return h * lax.rsqrt(var + EPS_LN) * w_row

    for l in range(N_LAYERS):                    # static unroll, no per-layer launches
        # ---- self-attention sub-block (pre-RMSNorm, residual) ----
        h = rmsnorm(x, ln1_ref[l])
        qkv = jnp.dot(h, wqkv_ref[l], preferred_element_type=jnp.float32)   # (BS, 3D)
        wo_l = wo_ref[l]                                                    # (D, D)
        attn_proj = jnp.zeros_like(x)
        for hd in range(N_HEADS):                # static unroll over heads
            q = qkv[:, hd * D_HEAD:(hd + 1) * D_HEAD]                       # (BS, Dh)
            k = qkv[:, D_MODEL + hd * D_HEAD:D_MODEL + (hd + 1) * D_HEAD]
            v = qkv[:, 2 * D_MODEL + hd * D_HEAD:2 * D_MODEL + (hd + 1) * D_HEAD]
            # T5: no 1/sqrt(d) scaling; contract the last dims directly (no transpose).
            s = lax.dot_general(q, k, (((1,), (1,)), ((), ())),
                                preferred_element_type=jnp.float32)         # (BS, BS)
            s = s + bias_ref[hd]
            m = jnp.max(s, axis=-1, keepdims=True)
            p = jnp.exp(s - m)
            p = p * pl.reciprocal(jnp.sum(p, axis=-1, keepdims=True), approx=True)
            out_h = jnp.dot(p, v, preferred_element_type=jnp.float32)       # (BS, Dh)
            # concat(heads) @ W_O == sum_h out_h @ W_O[h*Dh:(h+1)*Dh, :]
            attn_proj = attn_proj + jnp.dot(
                out_h, wo_l[hd * D_HEAD:(hd + 1) * D_HEAD, :],
                preferred_element_type=jnp.float32)
        x = x + attn_proj

        # ---- feed-forward sub-block (T5-base: ReLU MLP, residual) ----
        h = rmsnorm(x, ln2_ref[l])
        ff = jnp.maximum(
            jnp.dot(h, wi_ref[l], preferred_element_type=jnp.float32), 0.0)
        x = x + jnp.dot(ff, wo_ff_ref[l], preferred_element_type=jnp.float32)

    # ---- final T5 LayerNorm -> Linear(OUT_DIM, no bias) -> L2 normalize ----
    h = rmsnorm(x, final_ln_ref[...])
    y = jnp.dot(h, proj_ref[...], preferred_element_type=jnp.float32)       # (BS, 128)
    nrm = jnp.sqrt(jnp.sum(y * y, axis=-1, keepdims=True))
    o_ref[...] = y / jnp.maximum(nrm, EPS_L2)                               # F.normalize


# ---------------- plain-JAX glue (gather / bucketing / bias packing) ----------------

def relative_position_bucket(rel_pos, num_buckets=N_BUCKETS, max_distance=MAX_DIST):
    # T5 bidirectional bucketing (encoder).
    nb = num_buckets // 2
    ret = (rel_pos > 0).astype(jnp.int32) * nb
    n = jnp.abs(rel_pos)
    max_exact = nb // 2
    is_small = n < max_exact
    n_f = jnp.maximum(n, 1).astype(jnp.float32)
    val_if_large = max_exact + (
        jnp.log(n_f / max_exact) / jnp.log(max_distance / max_exact)
        * (nb - max_exact)
    ).astype(jnp.int32)
    val_if_large = jnp.minimum(val_if_large, nb - 1)
    return ret + jnp.where(is_small, n, val_if_large)


def compute_position_bias(rel_bias_table, seq_len):
    ctx = jnp.arange(seq_len)[:, None]
    mem = jnp.arange(seq_len)[None, :]
    buckets = relative_position_bucket(mem - ctx)                # (S, S) int32
    bias = rel_bias_table[buckets]                               # (S, S, H)
    return jnp.transpose(bias, (2, 0, 1)).astype(jnp.float32)    # (H, S, S)


def build_packed_attn_bias(rel_bias_table, attention_mask):
    """Combined additive attention bias over the packed (B*S) row/key axis.

    Folds together: per-head relative-position bias (same for every layer, as in
    T5), key-padding mask, and a block mask that forbids cross-batch attention
    (so heads can be processed on the packed B*S axis inside the kernel).
    Shape: (H, B*S, B*S).
    """
    B, S = attention_mask.shape
    pos_bias = compute_position_bias(rel_bias_table, S)          # (H, S, S)
    pos_tiled = jnp.tile(pos_bias, (1, B, B))                    # (H, BS, BS)
    batch_id = jnp.arange(B * S) // S
    same_batch = (batch_id[:, None] == batch_id[None, :]).astype(jnp.float32)  # (BS, BS)
    cross_pen = (1.0 - same_batch) * NEG_INF
    key_pad = jnp.where(attention_mask.reshape(-1) > 0, 0.0, NEG_INF)          # (BS,)
    return pos_tiled * same_batch[None] + cross_pen[None] + key_pad[None, None, :]


def init_params(key):
    scale = 0.05
    keys = jax.random.split(key, 7)
    return {
        "embed": scale * jax.random.normal(keys[0], (VOCAB, D_MODEL), jnp.float32),
        "rel_bias": scale * jax.random.normal(keys[1], (N_BUCKETS, N_HEADS), jnp.float32),
        "proj": scale * jax.random.normal(keys[2], (D_MODEL, OUT_DIM), jnp.float32),
        "final_ln": jnp.ones((1, D_MODEL), jnp.float32),
        # per-layer weights stacked along a leading layer axis (single kernel input each)
        "ln1": jnp.ones((N_LAYERS, 1, D_MODEL), jnp.float32),
        "ln2": jnp.ones((N_LAYERS, 1, D_MODEL), jnp.float32),
        "wqkv": scale * jax.random.normal(keys[3], (N_LAYERS, D_MODEL, 3 * D_MODEL), jnp.float32),
        "wo": scale * jax.random.normal(keys[4], (N_LAYERS, D_MODEL, D_MODEL), jnp.float32),
        "wi": scale * jax.random.normal(keys[5], (N_LAYERS, D_MODEL, D_FF), jnp.float32),
        "wo_ff": scale * jax.random.normal(keys[6], (N_LAYERS, D_FF, D_MODEL), jnp.float32),
    }


def xtr_forward(params, input_ids, attention_mask):
    B, S = input_ids.shape
    BS = B * S
    # embedding gather (data-dependent) stays in XLA
    x2d = params["embed"][input_ids].reshape(BS, D_MODEL)
    bias = build_packed_attn_bias(params["rel_bias"], attention_mask)   # (H, BS, BS)

    vmem_spec = pl.BlockSpec(memory_space=pltpu.MemorySpace.VMEM)
    out2d = pl.pallas_call(
        _xtr_fused_kernel,
        out_shape=jax.ShapeDtypeStruct((BS, OUT_DIM), jnp.float32),
        in_specs=[vmem_spec] * 10,
        out_specs=vmem_spec,
        cost_estimate=pl.CostEstimate(
            flops=1_000_000, transcendentals=3_000, bytes_accessed=130_000),
    )(x2d, bias,
      params["ln1"], params["wqkv"], params["wo"],
      params["ln2"], params["wi"], params["wo_ff"],
      params["final_ln"], params["proj"])
    return out2d.reshape(B, S, OUT_DIM)


if __name__ == "__main__":
    key = jax.random.PRNGKey(0)
    pkey, dkey = jax.random.split(key)
    params = init_params(pkey)

    B, S = 2, 8
    input_ids = jax.random.randint(dkey, (B, S), 0, VOCAB, dtype=jnp.int32)
    attention_mask = jnp.ones((B, S), jnp.int32).at[1, 6:].set(0)

    fwd = jax.jit(xtr_forward)
    out = jax.block_until_ready(fwd(params, input_ids, attention_mask))

    assert out.shape == (B, S, OUT_DIM)
    assert bool(jnp.all(jnp.isfinite(out)))
    # rows should be unit-norm after F.normalize
    norms = jnp.linalg.norm(out, axis=-1)
    assert bool(jnp.all(jnp.abs(norms - 1.0) < 1e-4))
    print("KERNEL_OK")
</pallas_src>

<mosaic_0001>
module attributes {stable_mosaic.version = 11 : i64} {
  func.func @_xtr_fused_kernel(%arg0: memref<16x32xf32, #tpu.memory_space<vmem>>, %arg1: memref<4x16x16xf32, #tpu.memory_space<vmem>>, %arg2: memref<2x1x32xf32, #tpu.memory_space<vmem>>, %arg3: memref<2x32x96xf32, #tpu.memory_space<vmem>>, %arg4: memref<2x32x32xf32, #tpu.memory_space<vmem>>, %arg5: memref<2x1x32xf32, #tpu.memory_space<vmem>>, %arg6: memref<2x32x64xf32, #tpu.memory_space<vmem>>, %arg7: memref<2x64x32xf32, #tpu.memory_space<vmem>>, %arg8: memref<1x32xf32, #tpu.memory_space<vmem>>, %arg9: memref<32x128xf32, #tpu.memory_space<vmem>>, %arg10: memref<16x128xf32, #tpu.memory_space<vmem>>) attributes {dimension_semantics = [], scalar_prefetch = 0 : i64, scratch_operands = 0 : i64, tpu.core_type = #tpu.core_type<tc>} {
    %c0 = arith.constant 0 : index
    %c0_0 = arith.constant 0 : index
    %0 = vector.load %arg0[%c0, %c0_0] : memref<16x32xf32, #tpu.memory_space<vmem>>, vector<16x32xf32>
    %c0_1 = arith.constant 0 : index
    %c0_2 = arith.constant 0 : index
    %c0_3 = arith.constant 0 : index
    %1 = vector.load %arg2[%c0_1, %c0_2, %c0_3] : memref<2x1x32xf32, #tpu.memory_space<vmem>>, vector<1x1x32xf32>
    %2 = vector.shape_cast %1 : vector<1x1x32xf32> to vector<1x32xf32>
    %3 = arith.mulf %0, %0 : vector<16x32xf32>
    %cst = arith.constant dense<0.000000e+00> : vector<16xf32>
    %4 = vector.multi_reduction <add>, %3, %cst [1] : vector<16x32xf32> to vector<16xf32>
    %5 = vector.shape_cast %4 : vector<16xf32> to vector<16x1xf32>
    %cst_4 = arith.constant 3.200000e+01 : f32
    %6 = vector.broadcast %cst_4 : f32 to vector<16x1xf32>
    %7 = arith.divf %5, %6 : vector<16x1xf32>
    %cst_5 = arith.constant 9.99999997E-7 : f32
    %8 = vector.broadcast %cst_5 : f32 to vector<16x1xf32>
    %9 = arith.addf %7, %8 : vector<16x1xf32>
    %10 = math.rsqrt %9 : vector<16x1xf32>
    %11 = vector.broadcast %10 : vector<16x1xf32> to vector<16x32xf32>
    %12 = arith.mulf %0, %11 : vector<16x32xf32>
    %13 = vector.broadcast %2 : vector<1x32xf32> to vector<16x32xf32>
    %14 = arith.mulf %12, %13 : vector<16x32xf32>
    %c0_6 = arith.constant 0 : index
    %c0_7 = arith.constant 0 : index
    %c0_8 = arith.constant 0 : index
    %15 = vector.load %arg3[%c0_6, %c0_7, %c0_8] : memref<2x32x96xf32, #tpu.memory_space<vmem>>, vector<1x32x96xf32>
    %16 = vector.shape_cast %15 : vector<1x32x96xf32> to vector<32x96xf32>
    %cst_9 = arith.constant dense<0.000000e+00> : vector<16x96xf32>
    %17 = tpu.matmul %14, %16, %cst_9 {dimension_numbers = #tpu.dot_dimension_numbers<[1], [0], [0], [1], [0, 0, 1, 1], [], []>} : vector<16x32xf32>, vector<32x96xf32>, vector<16x96xf32> -> vector<16x96xf32>
    %c0_10 = arith.constant 0 : index
    %c0_11 = arith.constant 0 : index
    %c0_12 = arith.constant 0 : index
    %18 = vector.load %arg4[%c0_10, %c0_11, %c0_12] : memref<2x32x32xf32, #tpu.memory_space<vmem>>, vector<1x32x32xf32>
    %19 = vector.shape_cast %18 : vector<1x32x32xf32> to vector<32x32xf32>
    %cst_13 = arith.constant 0.000000e+00 : f32
    %20 = vector.broadcast %cst_13 : f32 to vector<16x32xf32>
    %21 = vector.extract_strided_slice %17 {offsets = [0, 0], sizes = [16, 8], strides = [1, 1]} : vector<16x96xf32> to vector<16x8xf32>
    %22 = vector.extract_strided_slice %17 {offsets = [0, 32], sizes = [16, 8], strides = [1, 1]} : vector<16x96xf32> to vector<16x8xf32>
    %23 = vector.extract_strided_slice %17 {offsets = [0, 64], sizes = [16, 8], strides = [1, 1]} : vector<16x96xf32> to vector<16x8xf32>
    %cst_14 = arith.constant dense<0.000000e+00> : vector<16x16xf32>
    %24 = tpu.matmul %21, %22, %cst_14 {dimension_numbers = #tpu.dot_dimension_numbers<[1], [1], [0], [0], [0, 0, 1, 0], [], []>} : vector<16x8xf32>, vector<16x8xf32>, vector<16x16xf32> -> vector<16x16xf32>
    %c0_15 = arith.constant 0 : index
    %c0_16 = arith.constant 0 : index
    %c0_17 = arith.constant 0 : index
    %25 = vector.load %arg1[%c0_15, %c0_16, %c0_17] : memref<4x16x16xf32, #tpu.memory_space<vmem>>, vector<1x16x16xf32>
    %26 = vector.shape_cast %25 : vector<1x16x16xf32> to vector<16x16xf32>
    %27 = arith.addf %24, %26 : vector<16x16xf32>
    %cst_18 = arith.constant dense<0xFF800000> : vector<16xf32>
    %28 = vector.multi_reduction <maximumf>, %27, %cst_18 [1] : vector<16x16xf32> to vector<16xf32>
    %29 = vector.shape_cast %28 : vector<16xf32> to vector<16x1xf32>
    %30 = vector.broadcast %29 : vector<16x1xf32> to vector<16x16xf32>
    %31 = arith.subf %27, %30 : vector<16x16xf32>
    %32 = math.exp %31 : vector<16x16xf32>
    %cst_19 = arith.constant dense<0.000000e+00> : vector<16xf32>
    %33 = vector.multi_reduction <add>, %32, %cst_19 [1] : vector<16x16xf32> to vector<16xf32>
    %34 = vector.shape_cast %33 : vector<16xf32> to vector<16x1xf32>
    %35 = tpu.reciprocal %34 {approx = true} : vector<16x1xf32> -> vector<16x1xf32>
    %36 = vector.broadcast %35 : vector<16x1xf32> to vector<16x16xf32>
    %37 = arith.mulf %32, %36 : vector<16x16xf32>
    %cst_20 = arith.constant dense<0.000000e+00> : vector<16x8xf32>
    %38 = tpu.matmul %37, %23, %cst_20 {dimension_numbers = #tpu.dot_dimension_numbers<[1], [0], [0], [1], [0, 0, 1, 1], [], []>} : vector<16x16xf32>, vector<16x8xf32>, vector<16x8xf32> -> vector<16x8xf32>
    %39 = vector.extract_strided_slice %19 {offsets = [0, 0], sizes = [8, 32], strides = [1, 1]} : vector<32x32xf32> to vector<8x32xf32>
    %cst_21 = arith.constant dense<0.000000e+00> : vector<16x32xf32>
    %40 = tpu.matmul %38, %39, %cst_21 {dimension_numbers = #tpu.dot_dimension_numbers<[1], [0], [0], [1], [0, 0, 1, 1], [], []>} : vector<16x8xf32>, vector<8x32xf32>, vector<16x32xf32> -> vector<16x32xf32>
    %41 = arith.addf %20, %40 : vector<16x32xf32>
    %42 = vector.extract_strided_slice %17 {offsets = [0, 8], sizes = [16, 8], strides = [1, 1]} : vector<16x96xf32> to vector<16x8xf32>
    %43 = vector.extract_strided_slice %17 {offsets = [0, 40], sizes = [16, 8], strides = [1, 1]} : vector<16x96xf32> to vector<16x8xf32>
    %44 = vector.extract_strided_slice %17 {offsets = [0, 72], sizes = [16, 8], strides = [1, 1]} : vector<16x96xf32> to vector<16x8xf32>
    %cst_22 = arith.constant dense<0.000000e+00> : vector<16x16xf32>
    %45 = tpu.matmul %42, %43, %cst_22 {dimension_numbers = #tpu.dot_dimension_numbers<[1], [1], [0], [0], [0, 0, 1, 0], [], []>} : vector<16x8xf32>, vector<16x8xf32>, vector<16x16xf32> -> vector<16x16xf32>
    %c1 = arith.constant 1 : index
    %c0_23 = arith.constant 0 : index
    %c0_24 = arith.constant 0 : index
    %46 = vector.load %arg1[%c1, %c0_23, %c0_24] : memref<4x16x16xf32, #tpu.memory_space<vmem>>, vector<1x16x16xf32>
    %47 = vector.shape_cast %46 : vector<1x16x16xf32> to vector<16x16xf32>
    %48 = arith.addf %45, %47 : vector<16x16xf32>
    %cst_25 = arith.constant dense<0xFF800000> : vector<16xf32>
    %49 = vector.multi_reduction <maximumf>, %48, %cst_25 [1] : vector<16x16xf32> to vector<16xf32>
    %50 = vector.shape_cast %49 : vector<16xf32> to vector<16x1xf32>
    %51 = vector.broadcast %50 : vector<16x1xf32> to vector<16x16xf32>
    %52 = arith.subf %48, %51 : vector<16x16xf32>
    %53 = math.exp %52 : vector<16x16xf32>
    %cst_26 = arith.constant dense<0.000000e+00> : vector<16xf32>
    %54 = vector.multi_reduction <add>, %53, %cst_26 [1] : vector<16x16xf32> to vector<16xf32>
    %55 = vector.shape_cast %54 : vector<16xf32> to vector<16x1xf32>
    %56 = tpu.reciprocal %55 {approx = true} : vector<16x1xf32> -> vector<16x1xf32>
    %57 = vector.broadcast %56 : vector<16x1xf32> to vector<16x16xf32>
    %58 = arith.mulf %53, %57 : vector<16x16xf32>
    %cst_27 = arith.constant dense<0.000000e+00> : vector<16x8xf32>
    %59 = tpu.matmul %58, %44, %cst_27 {dimension_numbers = #tpu.dot_dimension_numbers<[1], [0], [0], [1], [0, 0, 1, 1], [], []>} : vector<16x16xf32>, vector<16x8xf32>, vector<16x8xf32> -> vector<16x8xf32>
    %60 = vector.extract_strided_slice %19 {offsets = [8, 0], sizes = [8, 32], strides = [1, 1]} : vector<32x32xf32> to vector<8x32xf32>
    %cst_28 = arith.constant dense<0.000000e+00> : vector<16x32xf32>
    %61 = tpu.matmul %59, %60, %cst_28 {dimension_numbers = #tpu.dot_dimension_numbers<[1], [0], [0], [1], [0, 0, 1, 1], [], []>} : vector<16x8xf32>, vector<8x32xf32>, vector<16x32xf32> -> vector<16x32xf32>
    %62 = arith.addf %41, %61 : vector<16x32xf32>
    %63 = vector.extract_strided_slice %17 {offsets = [0, 16], sizes = [16, 8], strides = [1, 1]} : vector<16x96xf32> to vector<16x8xf32>
    %64 = vector.extract_strided_slice %17 {offsets = [0, 48], sizes = [16, 8], strides = [1, 1]} : vector<16x96xf32> to vector<16x8xf32>
    %65 = vector.extract_strided_slice %17 {offsets = [0, 80], sizes = [16, 8], strides = [1, 1]} : vector<16x96xf32> to vector<16x8xf32>
    %cst_29 = arith.constant dense<0.000000e+00> : vector<16x16xf32>
    %66 = tpu.matmul %63, %64, %cst_29 {dimension_numbers = #tpu.dot_dimension_numbers<[1], [1], [0], [0], [0, 0, 1, 0], [], []>} : vector<16x8xf32>, vector<16x8xf32>, vector<16x16xf32> -> vector<16x16xf32>
    %c2 = arith.constant 2 : index
    %c0_30 = arith.constant 0 : index
    %c0_31 = arith.constant 0 : index
    %67 = vector.load %arg1[%c2, %c0_30, %c0_31] : memref<4x16x16xf32, #tpu.memory_space<vmem>>, vector<1x16x16xf32>
    %68 = vector.shape_cast %67 : vector<1x16x16xf32> to vector<16x16xf32>
    %69 = arith.addf %66, %68 : vector<16x16xf32>
    %cst_32 = arith.constant dense<0xFF800000> : vector<16xf32>
    %70 = vector.multi_reduction <maximumf>, %69, %cst_32 [1] : vector<16x16xf32> to vector<16xf32>
    %71 = vector.shape_cast %70 : vector<16xf32> to vector<16x1xf32>
    %72 = vector.broadcast %71 : vector<16x1xf32> to vector<16x16xf32>
    %73 = arith.subf %69, %72 : vector<16x16xf32>
    %74 = math.exp %73 : vector<16x16xf32>
    %cst_33 = arith.constant dense<0.000000e+00> : vector<16xf32>
    %75 = vector.multi_reduction <add>, %74, %cst_33 [1] : vector<16x16xf32> to vector<16xf32>
    %76 = vector.shape_cast %75 : vector<16xf32> to vector<16x1xf32>
    %77 = tpu.reciprocal %76 {approx = true} : vector<16x1xf32> -> vector<16x1xf32>
    %78 = vector.broadcast %77 : vector<16x1xf32> to vector<16x16xf32>
    %79 = arith.mulf %74, %78 : vector<16x16xf32>
    %cst_34 = arith.constant dense<0.000000e+00> : vector<16x8xf32>
    %80 = tpu.matmul %79, %65, %cst_34 {dimension_numbers = #tpu.dot_dimension_numbers<[1], [0], [0], [1], [0, 0, 1, 1], [], []>} : vector<16x16xf32>, vector<16x8xf32>, vector<16x8xf32> -> vector<16x8xf32>
    %81 = vector.extract_strided_slice %19 {offsets = [16, 0], sizes = [8, 32], strides = [1, 1]} : vector<32x32xf32> to vector<8x32xf32>
    %cst_35 = arith.constant dense<0.000000e+00> : vector<16x32xf32>
    %82 = tpu.matmul %80, %81, %cst_35 {dimension_numbers = #tpu.dot_dimension_numbers<[1], [0], [0], [1], [0, 0, 1, 1], [], []>} : vector<16x8xf32>, vector<8x32xf32>, vector<16x32xf32> -> vector<16x32xf32>
    %83 = arith.addf %62, %82 : vector<16x32xf32>
    %84 = vector.extract_strided_slice %17 {offsets = [0, 24], sizes = [16, 8], strides = [1, 1]} : vector<16x96xf32> to vector<16x8xf32>
    %85 = vector.extract_strided_slice %17 {offsets = [0, 56], sizes = [16, 8], strides = [1, 1]} : vector<16x96xf32> to vector<16x8xf32>
    %86 = vector.extract_strided_slice %17 {offsets = [0, 88], sizes = [16, 8], strides = [1, 1]} : vector<16x96xf32> to vector<16x8xf32>
    %cst_36 = arith.constant dense<0.000000e+00> : vector<16x16xf32>
    %87 = tpu.matmul %84, %85, %cst_36 {dimension_numbers = #tpu.dot_dimension_numbers<[1], [1], [0], [0], [0, 0, 1, 0], [], []>} : vector<16x8xf32>, vector<16x8xf32>, vector<16x16xf32> -> vector<16x16xf32>
    %c3 = arith.constant 3 : index
    %c0_37 = arith.constant 0 : index
    %c0_38 = arith.constant 0 : index
    %88 = vector.load %arg1[%c3, %c0_37, %c0_38] : memref<4x16x16xf32, #tpu.memory_space<vmem>>, vector<1x16x16xf32>
    %89 = vector.shape_cast %88 : vector<1x16x16xf32> to vector<16x16xf32>
    %90 = arith.addf %87, %89 : vector<16x16xf32>
    %cst_39 = arith.constant dense<0xFF800000> : vector<16xf32>
    %91 = vector.multi_reduction <maximumf>, %90, %cst_39 [1] : vector<16x16xf32> to vector<16xf32>
    %92 = vector.shape_cast %91 : vector<16xf32> to vector<16x1xf32>
    %93 = vector.broadcast %92 : vector<16x1xf32> to vector<16x16xf32>
    %94 = arith.subf %90, %93 : vector<16x16xf32>
    %95 = math.exp %94 : vector<16x16xf32>
    %cst_40 = arith.constant dense<0.000000e+00> : vector<16xf32>
    %96 = vector.multi_reduction <add>, %95, %cst_40 [1] : vector<16x16xf32> to vector<16xf32>
    %97 = vector.shape_cast %96 : vector<16xf32> to vector<16x1xf32>
    %98 = tpu.reciprocal %97 {approx = true} : vector<16x1xf32> -> vector<16x1xf32>
    %99 = vector.broadcast %98 : vector<16x1xf32> to vector<16x16xf32>
    %100 = arith.mulf %95, %99 : vector<16x16xf32>
    %cst_41 = arith.constant dense<0.000000e+00> : vector<16x8xf32>
    %101 = tpu.matmul %100, %86, %cst_41 {dimension_numbers = #tpu.dot_dimension_numbers<[1], [0], [0], [1], [0, 0, 1, 1], [], []>} : vector<16x16xf32>, vector<16x8xf32>, vector<16x8xf32> -> vector<16x8xf32>
    %102 = vector.extract_strided_slice %19 {offsets = [24, 0], sizes = [8, 32], strides = [1, 1]} : vector<32x32xf32> to vector<8x32xf32>
    %cst_42 = arith.constant dense<0.000000e+00> : vector<16x32xf32>
    %103 = tpu.matmul %101, %102, %cst_42 {dimension_numbers = #tpu.dot_dimension_numbers<[1], [0], [0], [1], [0, 0, 1, 1], [], []>} : vector<16x8xf32>, vector<8x32xf32>, vector<16x32xf32> -> vector<16x32xf32>
    %104 = arith.addf %83, %103 : vector<16x32xf32>
    %105 = arith.addf %0, %104 : vector<16x32xf32>
    %c0_43 = arith.constant 0 : index
    %c0_44 = arith.constant 0 : index
    %c0_45 = arith.constant 0 : index
    %106 = vector.load %arg5[%c0_43, %c0_44, %c0_45] : memref<2x1x32xf32, #tpu.memory_space<vmem>>, vector<1x1x32xf32>
    %107 = vector.shape_cast %106 : vector<1x1x32xf32> to vector<1x32xf32>
    %108 = arith.mulf %105, %105 : vector<16x32xf32>
    %cst_46 = arith.constant dense<0.000000e+00> : vector<16xf32>
    %109 = vector.multi_reduction <add>, %108, %cst_46 [1] : vector<16x32xf32> to vector<16xf32>
    %110 = vector.shape_cast %109 : vector<16xf32> to vector<16x1xf32>
    %cst_47 = arith.constant 3.200000e+01 : f32
    %111 = vector.broadcast %cst_47 : f32 to vector<16x1xf32>
    %112 = arith.divf %110, %111 : vector<16x1xf32>
    %cst_48 = arith.constant 9.99999997E-7 : f32
    %113 = vector.broadcast %cst_48 : f32 to vector<16x1xf32>
    %114 = arith.addf %112, %113 : vector<16x1xf32>
    %115 = math.rsqrt %114 : vector<16x1xf32>
    %116 = vector.broadcast %115 : vector<16x1xf32> to vector<16x32xf32>
    %117 = arith.mulf %105, %116 : vector<16x32xf32>
    %118 = vector.broadcast %107 : vector<1x32xf32> to vector<16x32xf32>
    %119 = arith.mulf %117, %118 : vector<16x32xf32>
    %c0_49 = arith.constant 0 : index
    %c0_50 = arith.constant 0 : index
    %c0_51 = arith.constant 0 : index
    %120 = vector.load %arg6[%c0_49, %c0_50, %c0_51] : memref<2x32x64xf32, #tpu.memory_space<vmem>>, vector<1x32x64xf32>
    %121 = vector.shape_cast %120 : vector<1x32x64xf32> to vector<32x64xf32>
    %cst_52 = arith.constant dense<0.000000e+00> : vector<16x64xf32>
    %122 = tpu.matmul %119, %121, %cst_52 {dimension_numbers = #tpu.dot_dimension_numbers<[1], [0], [0], [1], [0, 0, 1, 1], [], []>} : vector<16x32xf32>, vector<32x64xf32>, vector<16x64xf32> -> vector<16x64xf32>
    %cst_53 = arith.constant 0.000000e+00 : f32
    %123 = vector.broadcast %cst_53 : f32 to vector<16x64xf32>
    %124 = arith.maximumf %122, %123 : vector<16x64xf32>
    %c0_54 = arith.constant 0 : index
    %c0_55 = arith.constant 0 : index
    %c0_56 = arith.constant 0 : index
    %125 = vector.load %arg7[%c0_54, %c0_55, %c0_56] : memref<2x64x32xf32, #tpu.memory_space<vmem>>, vector<1x64x32xf32>
    %126 = vector.shape_cast %125 : vector<1x64x32xf32> to vector<64x32xf32>
    %cst_57 = arith.constant dense<0.000000e+00> : vector<16x32xf32>
    %127 = tpu.matmul %124, %126, %cst_57 {dimension_numbers = #tpu.dot_dimension_numbers<[1], [0], [0], [1], [0, 0, 1, 1], [], []>} : vector<16x64xf32>, vector<64x32xf32>, vector<16x32xf32> -> vector<16x32xf32>
    %128 = arith.addf %105, %127 : vector<16x32xf32>
    %c1_58 = arith.constant 1 : index
    %c0_59 = arith.constant 0 : index
    %c0_60 = arith.constant 0 : index
    %129 = vector.load %arg2[%c1_58, %c0_59, %c0_60] : memref<2x1x32xf32, #tpu.memory_space<vmem>>, vector<1x1x32xf32>
    %130 = vector.shape_cast %129 : vector<1x1x32xf32> to vector<1x32xf32>
    %131 = arith.mulf %128, %128 : vector<16x32xf32>
    %cst_61 = arith.constant dense<0.000000e+00> : vector<16xf32>
    %132 = vector.multi_reduction <add>, %131, %cst_61 [1] : vector<16x32xf32> to vector<16xf32>
    %133 = vector.shape_cast %132 : vector<16xf32> to vector<16x1xf32>
    %cst_62 = arith.constant 3.200000e+01 : f32
    %134 = vector.broadcast %cst_62 : f32 to vector<16x1xf32>
    %135 = arith.divf %133, %134 : vector<16x1xf32>
    %cst_63 = arith.constant 9.99999997E-7 : f32
    %136 = vector.broadcast %cst_63 : f32 to vector<16x1xf32>
    %137 = arith.addf %135, %136 : vector<16x1xf32>
    %138 = math.rsqrt %137 : vector<16x1xf32>
    %139 = vector.broadcast %138 : vector<16x1xf32> to vector<16x32xf32>
    %140 = arith.mulf %128, %139 : vector<16x32xf32>
    %141 = vector.broadcast %130 : vector<1x32xf32> to vector<16x32xf32>
    %142 = arith.mulf %140, %141 : vector<16x32xf32>
    %c1_64 = arith.constant 1 : index
    %c0_65 = arith.constant 0 : index
    %c0_66 = arith.constant 0 : index
    %143 = vector.load %arg3[%c1_64, %c0_65, %c0_66] : memref<2x32x96xf32, #tpu.memory_space<vmem>>, vector<1x32x96xf32>
    %144 = vector.shape_cast %143 : vector<1x32x96xf32> to vector<32x96xf32>
    %cst_67 = arith.constant dense<0.000000e+00> : vector<16x96xf32>
    %145 = tpu.matmul %142, %144, %cst_67 {dimension_numbers = #tpu.dot_dimension_numbers<[1], [0], [0], [1], [0, 0, 1, 1], [], []>} : vector<16x32xf32>, vector<32x96xf32>, vector<16x96xf32> -> vector<16x96xf32>
    %c1_68 = arith.constant 1 : index
    %c0_69 = arith.constant 0 : index
    %c0_70 = arith.constant 0 : index
    %146 = vector.load %arg4[%c1_68, %c0_69, %c0_70] : memref<2x32x32xf32, #tpu.memory_space<vmem>>, vector<1x32x32xf32>
    %147 = vector.shape_cast %146 : vector<1x32x32xf32> to vector<32x32xf32>
    %cst_71 = arith.constant 0.000000e+00 : f32
    %148 = vector.broadcast %cst_71 : f32 to vector<16x32xf32>
    %149 = vector.extract_strided_slice %145 {offsets = [0, 0], sizes = [16, 8], strides = [1, 1]} : vector<16x96xf32> to vector<16x8xf32>
    %150 = vector.extract_strided_slice %145 {offsets = [0, 32], sizes = [16, 8], strides = [1, 1]} : vector<16x96xf32> to vector<16x8xf32>
    %151 = vector.extract_strided_slice %145 {offsets = [0, 64], sizes = [16, 8], strides = [1, 1]} : vector<16x96xf32> to vector<16x8xf32>
    %cst_72 = arith.constant dense<0.000000e+00> : vector<16x16xf32>
    %152 = tpu.matmul %149, %150, %cst_72 {dimension_numbers = #tpu.dot_dimension_numbers<[1], [1], [0], [0], [0, 0, 1, 0], [], []>} : vector<16x8xf32>, vector<16x8xf32>, vector<16x16xf32> -> vector<16x16xf32>
    %c0_73 = arith.constant 0 : index
    %c0_74 = arith.constant 0 : index
    %c0_75 = arith.constant 0 : index
    %153 = vector.load %arg1[%c0_73, %c0_74, %c0_75] : memref<4x16x16xf32, #tpu.memory_space<vmem>>, vector<1x16x16xf32>
    %154 = vector.shape_cast %153 : vector<1x16x16xf32> to vector<16x16xf32>
    %155 = arith.addf %152, %154 : vector<16x16xf32>
    %cst_76 = arith.constant dense<0xFF800000> : vector<16xf32>
    %156 = vector.multi_reduction <maximumf>, %155, %cst_76 [1] : vector<16x16xf32> to vector<16xf32>
    %157 = vector.shape_cast %156 : vector<16xf32> to vector<16x1xf32>
    %158 = vector.broadcast %157 : vector<16x1xf32> to vector<16x16xf32>
    %159 = arith.subf %155, %158 : vector<16x16xf32>
    %160 = math.exp %159 : vector<16x16xf32>
    %cst_77 = arith.constant dense<0.000000e+00> : vector<16xf32>
    %161 = vector.multi_reduction <add>, %160, %cst_77 [1] : vector<16x16xf32> to vector<16xf32>
    %162 = vector.shape_cast %161 : vector<16xf32> to vector<16x1xf32>
    %163 = tpu.reciprocal %162 {approx = true} : vector<16x1xf32> -> vector<16x1xf32>
    %164 = vector.broadcast %163 : vector<16x1xf32> to vector<16x16xf32>
    %165 = arith.mulf %160, %164 : vector<16x16xf32>
    %cst_78 = arith.constant dense<0.000000e+00> : vector<16x8xf32>
    %166 = tpu.matmul %165, %151, %cst_78 {dimension_numbers = #tpu.dot_dimension_numbers<[1], [0], [0], [1], [0, 0, 1, 1], [], []>} : vector<16x16xf32>, vector<16x8xf32>, vector<16x8xf32> -> vector<16x8xf32>
    %167 = vector.extract_strided_slice %147 {offsets = [0, 0], sizes = [8, 32], strides = [1, 1]} : vector<32x32xf32> to vector<8x32xf32>
    %cst_79 = arith.constant dense<0.000000e+00> : vector<16x32xf32>
    %168 = tpu.matmul %166, %167, %cst_79 {dimension_numbers = #tpu.dot_dimension_numbers<[1], [0], [0], [1], [0, 0, 1, 1], [], []>} : vector<16x8xf32>, vector<8x32xf32>, vector<16x32xf32> -> vector<16x32xf32>
    %169 = arith.addf %148, %168 : vector<16x32xf32>
    %170 = vector.extract_strided_slice %145 {offsets = [0, 8], sizes = [16, 8], strides = [1, 1]} : vector<16x96xf32> to vector<16x8xf32>
    %171 = vector.extract_strided_slice %145 {offsets = [0, 40], sizes = [16, 8], strides = [1, 1]} : vector<16x96xf32> to vector<16x8xf32>
    %172 = vector.extract_strided_slice %145 {offsets = [0, 72], sizes = [16, 8], strides = [1, 1]} : vector<16x96xf32> to vector<16x8xf32>
    %cst_80 = arith.constant dense<0.000000e+00> : vector<16x16xf32>
    %173 = tpu.matmul %170, %171, %cst_80 {dimension_numbers = #tpu.dot_dimension_numbers<[1], [1], [0], [0], [0, 0, 1, 0], [], []>} : vector<16x8xf32>, vector<16x8xf32>, vector<16x16xf32> -> vector<16x16xf32>
    %c1_81 = arith.constant 1 : index
    %c0_82 = arith.constant 0 : index
    %c0_83 = arith.constant 0 : index
    %174 = vector.load %arg1[%c1_81, %c0_82, %c0_83] : memref<4x16x16xf32, #tpu.memory_space<vmem>>, vector<1x16x16xf32>
    %175 = vector.shape_cast %174 : vector<1x16x16xf32> to vector<16x16xf32>
    %176 = arith.addf %173, %175 : vector<16x16xf32>
    %cst_84 = arith.constant dense<0xFF800000> : vector<16xf32>
    %177 = vector.multi_reduction <maximumf>, %176, %cst_84 [1] : vector<16x16xf32> to vector<16xf32>
    %178 = vector.shape_cast %177 : vector<16xf32> to vector<16x1xf32>
    %179 = vector.broadcast %178 : vector<16x1xf32> to vector<16x16xf32>
    %180 = arith.subf %176, %179 : vector<16x16xf32>
    %181 = math.exp %180 : vector<16x16xf32>
    %cst_85 = arith.constant dense<0.000000e+00> : vector<16xf32>
    %182 = vector.multi_reduction <add>, %181, %cst_85 [1] : vector<16x16xf32> to vector<16xf32>
    %183 = vector.shape_cast %182 : vector<16xf32> to vector<16x1xf32>
    %184 = tpu.reciprocal %183 {approx = true} : vector<16x1xf32> -> vector<16x1xf32>
    %185 = vector.broadcast %184 : vector<16x1xf32> to vector<16x16xf32>
    %186 = arith.mulf %181, %185 : vector<16x16xf32>
    %cst_86 = arith.constant dense<0.000000e+00> : vector<16x8xf32>
    %187 = tpu.matmul %186, %172, %cst_86 {dimension_numbers = #tpu.dot_dimension_numbers<[1], [0], [0], [1], [0, 0, 1, 1], [], []>} : vector<16x16xf32>, vector<16x8xf32>, vector<16x8xf32> -> vector<16x8xf32>
    %188 = vector.extract_strided_slice %147 {offsets = [8, 0], sizes = [8, 32], strides = [1, 1]} : vector<32x32xf32> to vector<8x32xf32>
    %cst_87 = arith.constant dense<0.000000e+00> : vector<16x32xf32>
    %189 = tpu.matmul %187, %188, %cst_87 {dimension_numbers = #tpu.dot_dimension_numbers<[1], [0], [0], [1], [0, 0, 1, 1], [], []>} : vector<16x8xf32>, vector<8x32xf32>, vector<16x32xf32> -> vector<16x32xf32>
    %190 = arith.addf %169, %189 : vector<16x32xf32>
    %191 = vector.extract_strided_slice %145 {offsets = [0, 16], sizes = [16, 8], strides = [1, 1]} : vector<16x96xf32> to vector<16x8xf32>
    %192 = vector.extract_strided_slice %145 {offsets = [0, 48], sizes = [16, 8], strides = [1, 1]} : vector<16x96xf32> to vector<16x8xf32>
    %193 = vector.extract_strided_slice %145 {offsets = [0, 80], sizes = [16, 8], strides = [1, 1]} : vector<16x96xf32> to vector<16x8xf32>
    %cst_88 = arith.constant dense<0.000000e+00> : vector<16x16xf32>
    %194 = tpu.matmul %191, %192, %cst_88 {dimension_numbers = #tpu.dot_dimension_numbers<[1], [1], [0], [0], [0, 0, 1, 0], [], []>} : vector<16x8xf32>, vector<16x8xf32>, vector<16x16xf32> -> vector<16x16xf32>
    %c2_89 = arith.constant 2 : index
    %c0_90 = arith.constant 0 : index
    %c0_91 = arith.constant 0 : index
    %195 = vector.load %arg1[%c2_89, %c0_90, %c0_91] : memref<4x16x16xf32, #tpu.memory_space<vmem>>, vector<1x16x16xf32>
    %196 = vector.shape_cast %195 : vector<1x16x16xf32> to vector<16x16xf32>
    %197 = arith.addf %194, %196 : vector<16x16xf32>
    %cst_92 = arith.constant dense<0xFF800000> : vector<16xf32>
    %198 = vector.multi_reduction <maximumf>, %197, %cst_92 [1] : vector<16x16xf32> to vector<16xf32>
    %199 = vector.shape_cast %198 : vector<16xf32> to vector<16x1xf32>
    %200 = vector.broadcast %199 : vector<16x1xf32> to vector<16x16xf32>
    %201 = arith.subf %197, %200 : vector<16x16xf32>
    %202 = math.exp %201 : vector<16x16xf32>
    %cst_93 = arith.constant dense<0.000000e+00> : vector<16xf32>
    %203 = vector.multi_reduction <add>, %202, %cst_93 [1] : vector<16x16xf32> to vector<16xf32>
    %204 = vector.shape_cast %203 : vector<16xf32> to vector<16x1xf32>
    %205 = tpu.reciprocal %204 {approx = true} : vector<16x1xf32> -> vector<16x1xf32>
    %206 = vector.broadcast %205 : vector<16x1xf32> to vector<16x16xf32>
    %207 = arith.mulf %202, %206 : vector<16x16xf32>
    %cst_94 = arith.constant dense<0.000000e+00> : vector<16x8xf32>
    %208 = tpu.matmul %207, %193, %cst_94 {dimension_numbers = #tpu.dot_dimension_numbers<[1], [0], [0], [1], [0, 0, 1, 1], [], []>} : vector<16x16xf32>, vector<16x8xf32>, vector<16x8xf32> -> vector<16x8xf32>
    %209 = vector.extract_strided_slice %147 {offsets = [16, 0], sizes = [8, 32], strides = [1, 1]} : vector<32x32xf32> to vector<8x32xf32>
    %cst_95 = arith.constant dense<0.000000e+00> : vector<16x32xf32>
    %210 = tpu.matmul %208, %209, %cst_95 {dimension_numbers = #tpu.dot_dimension_numbers<[1], [0], [0], [1], [0, 0, 1, 1], [], []>} : vector<16x8xf32>, vector<8x32xf32>, vector<16x32xf32> -> vector<16x32xf32>
    %211 = arith.addf %190, %210 : vector<16x32xf32>
    %212 = vector.extract_strided_slice %145 {offsets = [0, 24], sizes = [16, 8], strides = [1, 1]} : vector<16x96xf32> to vector<16x8xf32>
    %213 = vector.extract_strided_slice %145 {offsets = [0, 56], sizes = [16, 8], strides = [1, 1]} : vector<16x96xf32> to vector<16x8xf32>
    %214 = vector.extract_strided_slice %145 {offsets = [0, 88], sizes = [16, 8], strides = [1, 1]} : vector<16x96xf32> to vector<16x8xf32>
    %cst_96 = arith.constant dense<0.000000e+00> : vector<16x16xf32>
    %215 = tpu.matmul %212, %213, %cst_96 {dimension_numbers = #tpu.dot_dimension_numbers<[1], [1], [0], [0], [0, 0, 1, 0], [], []>} : vector<16x8xf32>, vector<16x8xf32>, vector<16x16xf32> -> vector<16x16xf32>
    %c3_97 = arith.constant 3 : index
    %c0_98 = arith.constant 0 : index
    %c0_99 = arith.constant 0 : index
    %216 = vector.load %arg1[%c3_97, %c0_98, %c0_99] : memref<4x16x16xf32, #tpu.memory_space<vmem>>, vector<1x16x16xf32>
    %217 = vector.shape_cast %216 : vector<1x16x16xf32> to vector<16x16xf32>
    %218 = arith.addf %215, %217 : vector<16x16xf32>
    %cst_100 = arith.constant dense<0xFF800000> : vector<16xf32>
    %219 = vector.multi_reduction <maximumf>, %218, %cst_100 [1] : vector<16x16xf32> to vector<16xf32>
    %220 = vector.shape_cast %219 : vector<16xf32> to vector<16x1xf32>
    %221 = vector.broadcast %220 : vector<16x1xf32> to vector<16x16xf32>
    %222 = arith.subf %218, %221 : vector<16x16xf32>
    %223 = math.exp %222 : vector<16x16xf32>
    %cst_101 = arith.constant dense<0.000000e+00> : vector<16xf32>
    %224 = vector.multi_reduction <add>, %223, %cst_101 [1] : vector<16x16xf32> to vector<16xf32>
    %225 = vector.shape_cast %224 : vector<16xf32> to vector<16x1xf32>
    %226 = tpu.reciprocal %225 {approx = true} : vector<16x1xf32> -> vector<16x1xf32>
    %227 = vector.broadcast %226 : vector<16x1xf32> to vector<16x16xf32>
    %228 = arith.mulf %223, %227 : vector<16x16xf32>
    %cst_102 = arith.constant dense<0.000000e+00> : vector<16x8xf32>
    %229 = tpu.matmul %228, %214, %cst_102 {dimension_numbers = #tpu.dot_dimension_numbers<[1], [0], [0], [1], [0, 0, 1, 1], [], []>} : vector<16x16xf32>, vector<16x8xf32>, vector<16x8xf32> -> vector<16x8xf32>
    %230 = vector.extract_strided_slice %147 {offsets = [24, 0], sizes = [8, 32], strides = [1, 1]} : vector<32x32xf32> to vector<8x32xf32>
    %cst_103 = arith.constant dense<0.000000e+00> : vector<16x32xf32>
    %231 = tpu.matmul %229, %230, %cst_103 {dimension_numbers = #tpu.dot_dimension_numbers<[1], [0], [0], [1], [0, 0, 1, 1], [], []>} : vector<16x8xf32>, vector<8x32xf32>, vector<16x32xf32> -> vector<16x32xf32>
    %232 = arith.addf %211, %231 : vector<16x32xf32>
    %233 = arith.addf %128, %232 : vector<16x32xf32>
    %c1_104 = arith.constant 1 : index
    %c0_105 = arith.constant 0 : index
    %c0_106 = arith.constant 0 : index
    %234 = vector.load %arg5[%c1_104, %c0_105, %c0_106] : memref<2x1x32xf32, #tpu.memory_space<vmem>>, vector<1x1x32xf32>
    %235 = vector.shape_cast %234 : vector<1x1x32xf32> to vector<1x32xf32>
    %236 = arith.mulf %233, %233 : vector<16x32xf32>
    %cst_107 = arith.constant dense<0.000000e+00> : vector<16xf32>
    %237 = vector.multi_reduction <add>, %236, %cst_107 [1] : vector<16x32xf32> to vector<16xf32>
    %238 = vector.shape_cast %237 : vector<16xf32> to vector<16x1xf32>
    %cst_108 = arith.constant 3.200000e+01 : f32
    %239 = vector.broadcast %cst_108 : f32 to vector<16x1xf32>
    %240 = arith.divf %238, %239 : vector<16x1xf32>
    %cst_109 = arith.constant 9.99999997E-7 : f32
    %241 = vector.broadcast %cst_109 : f32 to vector<16x1xf32>
    %242 = arith.addf %240, %241 : vector<16x1xf32>
    %243 = math.rsqrt %242 : vector<16x1xf32>
    %244 = vector.broadcast %243 : vector<16x1xf32> to vector<16x32xf32>
    %245 = arith.mulf %233, %244 : vector<16x32xf32>
    %246 = vector.broadcast %235 : vector<1x32xf32> to vector<16x32xf32>
    %247 = arith.mulf %245, %246 : vector<16x32xf32>
    %c1_110 = arith.constant 1 : index
    %c0_111 = arith.constant 0 : index
    %c0_112 = arith.constant 0 : index
    %248 = vector.load %arg6[%c1_110, %c0_111, %c0_112] : memref<2x32x64xf32, #tpu.memory_space<vmem>>, vector<1x32x64xf32>
    %249 = vector.shape_cast %248 : vector<1x32x64xf32> to vector<32x64xf32>
    %cst_113 = arith.constant dense<0.000000e+00> : vector<16x64xf32>
    %250 = tpu.matmul %247, %249, %cst_113 {dimension_numbers = #tpu.dot_dimension_numbers<[1], [0], [0], [1], [0, 0, 1, 1], [], []>} : vector<16x32xf32>, vector<32x64xf32>, vector<16x64xf32> -> vector<16x64xf32>
    %cst_114 = arith.constant 0.000000e+00 : f32
    %251 = vector.broadcast %cst_114 : f32 to vector<16x64xf32>
    %252 = arith.maximumf %250, %251 : vector<16x64xf32>
    %c1_115 = arith.constant 1 : index
    %c0_116 = arith.constant 0 : index
    %c0_117 = arith.constant 0 : index
    %253 = vector.load %arg7[%c1_115, %c0_116, %c0_117] : memref<2x64x32xf32, #tpu.memory_space<vmem>>, vector<1x64x32xf32>
    %254 = vector.shape_cast %253 : vector<1x64x32xf32> to vector<64x32xf32>
    %cst_118 = arith.constant dense<0.000000e+00> : vector<16x32xf32>
    %255 = tpu.matmul %252, %254, %cst_118 {dimension_numbers = #tpu.dot_dimension_numbers<[1], [0], [0], [1], [0, 0, 1, 1], [], []>} : vector<16x64xf32>, vector<64x32xf32>, vector<16x32xf32> -> vector<16x32xf32>
    %256 = arith.addf %233, %255 : vector<16x32xf32>
    %c0_119 = arith.constant 0 : index
    %c0_120 = arith.constant 0 : index
    %257 = vector.load %arg8[%c0_119, %c0_120] : memref<1x32xf32, #tpu.memory_space<vmem>>, vector<1x32xf32>
    %258 = arith.mulf %256, %256 : vector<16x32xf32>
    %cst_121 = arith.constant dense<0.000000e+00> : vector<16xf32>
    %259 = vector.multi_reduction <add>, %258, %cst_121 [1] : vector<16x32xf32> to vector<16xf32>
    %260 = vector.shape_cast %259 : vector<16xf32> to vector<16x1xf32>
    %cst_122 = arith.constant 3.200000e+01 : f32
    %261 = vector.broadcast %cst_122 : f32 to vector<16x1xf32>
    %262 = arith.divf %260, %261 : vector<16x1xf32>
    %cst_123 = arith.constant 9.99999997E-7 : f32
    %263 = vector.broadcast %cst_123 : f32 to vector<16x1xf32>
    %264 = arith.addf %262, %263 : vector<16x1xf32>
    %265 = math.rsqrt %264 : vector<16x1xf32>
    %266 = vector.broadcast %265 : vector<16x1xf32> to vector<16x32xf32>
    %267 = arith.mulf %256, %266 : vector<16x32xf32>
    %268 = vector.broadcast %257 : vector<1x32xf32> to vector<16x32xf32>
    %269 = arith.mulf %267, %268 : vector<16x32xf32>
    %c0_124 = arith.constant 0 : index
    %c0_125 = arith.constant 0 : index
    %270 = vector.load %arg9[%c0_124, %c0_125] : memref<32x128xf32, #tpu.memory_space<vmem>>, vector<32x128xf32>
    %cst_126 = arith.constant dense<0.000000e+00> : vector<16x128xf32>
    %271 = tpu.matmul %269, %270, %cst_126 {dimension_numbers = #tpu.dot_dimension_numbers<[1], [0], [0], [1], [0, 0, 1, 1], [], []>} : vector<16x32xf32>, vector<32x128xf32>, vector<16x128xf32> -> vector<16x128xf32>
    %272 = arith.mulf %271, %271 : vector<16x128xf32>
    %cst_127 = arith.constant dense<0.000000e+00> : vector<16xf32>
    %273 = vector.multi_reduction <add>, %272, %cst_127 [1] : vector<16x128xf32> to vector<16xf32>
    %274 = vector.shape_cast %273 : vector<16xf32> to vector<16x1xf32>
    %275 = math.sqrt %274 : vector<16x1xf32>
    %cst_128 = arith.constant 9.99999996E-13 : f32
    %276 = vector.broadcast %cst_128 : f32 to vector<16x1xf32>
    %277 = arith.maximumf %275, %276 : vector<16x1xf32>
    %278 = vector.broadcast %277 : vector<16x1xf32> to vector<16x128xf32>
    %279 = arith.divf %271, %278 : vector<16x128xf32>
    %c0_129 = arith.constant 0 : index
    %c0_130 = arith.constant 0 : index
    %280 = vector.load %arg10[%c0_129, %c0_130] : memref<16x128xf32, #tpu.memory_space<vmem>>, vector<16x128xf32>
    tpu.vector_store %arg10[%c0_129, %c0_130], %279 {strides = array<i32>} : memref<16x128xf32, #tpu.memory_space<vmem>>, vector<16x128xf32>,
    return
  }
}

</mosaic_0001>

<llo_original>
// kernel: tile.9
$region0: #{tile.9}
  %s0 = inlined_call_operand.vmem [shape: f32[4,2,8,2,8], index: 0, kind: input, shape index: {}]
  %s1 = inlined_call_operand.vmem [shape: f32[4,16,16], index: 1, kind: output, shape index: {}]
  $region1: #{tile.9} parent=0
    #allocation0 [shape = 'u8[262144]{0}', space=vmem, size = 0x40000, scoped, tag = 'scoped mem for input reshape']
    %s3 = sshllo.u32 0, 2
    %s4 = smul.addr 2, 63
    %s5 = scalar_lea.vmem %s0, %s4
    %v6 = vld [vmem:[%s5] sm:%s3]
    %s7 = scalar_lea.vmem [#allocation0], 504
    %8 = vst [vmem:[%s7] sm:%s3] %v6
    %s9 = smul.addr 2, 62
    %s10 = scalar_lea.vmem %s0, %s9
    %v11 = vld [vmem:[%s10] sm:%s3]
    %s12 = scalar_lea.vmem [#allocation0], 496
    %13 = vst [vmem:[%s12] sm:%s3] %v11
    %s14 = smul.addr 2, 61
    %s15 = scalar_lea.vmem %s0, %s14
    %v16 = vld [vmem:[%s15] sm:%s3]
    %s17 = scalar_lea.vmem [#allocation0], 488
    %18 = vst [vmem:[%s17] sm:%s3] %v16
    %s19 = smul.addr 2, 60
    %s20 = scalar_lea.vmem %s0, %s19
    %v21 = vld [vmem:[%s20] sm:%s3]
    %s22 = scalar_lea.vmem [#allocation0], 480
    %23 = vst [vmem:[%s22] sm:%s3] %v21
    %s24 = smul.addr 2, 59
    %s25 = scalar_lea.vmem %s0, %s24
    %v26 = vld [vmem:[%s25] sm:%s3]
    %s27 = scalar_lea.vmem [#allocation0], 472
    %28 = vst [vmem:[%s27] sm:%s3] %v26
    %s29 = smul.addr 2, 58
    %s30 = scalar_lea.vmem %s0, %s29
    %v31 = vld [vmem:[%s30] sm:%s3]
    %s32 = scalar_lea.vmem [#allocation0], 464
    %33 = vst [vmem:[%s32] sm:%s3] %v31
    %s34 = smul.addr 2, 57
    %s35 = scalar_lea.vmem %s0, %s34
    %v36 = vld [vmem:[%s35] sm:%s3]
    %s37 = scalar_lea.vmem [#allocation0], 456
    %38 = vst [vmem:[%s37] sm:%s3] %v36
    %s39 = smul.addr 2, 56
    %s40 = scalar_lea.vmem %s0, %s39
    %v41 = vld [vmem:[%s40] sm:%s3]
    %s42 = scalar_lea.vmem [#allocation0], 448
    %43 = vst [vmem:[%s42] sm:%s3] %v41
    %s44 = smul.addr 2, 55
    %s45 = scalar_lea.vmem %s0, %s44
    %v46 = vld [vmem:[%s45] sm:%s3]
    %s47 = scalar_lea.vmem [#allocation0], 440
    %48 = vst [vmem:[%s47] sm:%s3] %v46
    %s49 = smul.addr 2, 54
    %s50 = scalar_lea.vmem %s0, %s49
    %v51 = vld [vmem:[%s50] sm:%s3]
    %s52 = scalar_lea.vmem [#allocation0], 432
    %53 = vst [vmem:[%s52] sm:%s3] %v51
    %s54 = smul.addr 2, 53
    %s55 = scalar_lea.vmem %s0, %s54
    %v56 = vld [vmem:[%s55] sm:%s3]
    %s57 = scalar_lea.vmem [#allocation0], 424
    %58 = vst [vmem:[%s57] sm:%s3] %v56
    %s59 = smul.addr 2, 52
    %s60 = scalar_lea.vmem %s0, %s59
    %v61 = vld [vmem:[%s60] sm:%s3]
    %s62 = scalar_lea.vmem [#allocation0], 416
    %63 = vst [vmem:[%s62] sm:%s3] %v61
    %s64 = smul.addr 2, 51
    %s65 = scalar_lea.vmem %s0, %s64
    %v66 = vld [vmem:[%s65] sm:%s3]
    %s67 = scalar_lea.vmem [#allocation0], 408
    %68 = vst [vmem:[%s67] sm:%s3] %v66
    %s69 = smul.addr 2, 50
    %s70 = scalar_lea.vmem %s0, %s69
    %v71 = vld [vmem:[%s70] sm:%s3]
    %s72 = scalar_lea.vmem [#allocation0], 400
    %73 = vst [vmem:[%s72] sm:%s3] %v71
    %s74 = smul.addr 2, 49
    %s75 = scalar_lea.vmem %s0, %s74
    %v76 = vld [vmem:[%s75] sm:%s3]
    %s77 = scalar_lea.vmem [#allocation0], 392
    %78 = vst [vmem:[%s77] sm:%s3] %v76
    %s79 = smul.addr 2, 48
    %s80 = scalar_lea.vmem %s0, %s79
    %v81 = vld [vmem:[%s80] sm:%s3]
    %s82 = scalar_lea.vmem [#allocation0], 384
    %83 = vst [vmem:[%s82] sm:%s3] %v81
    %s84 = smul.addr 2, 47
    %s85 = scalar_lea.vmem %s0, %s84
    %v86 = vld [vmem:[%s85] sm:%s3]
    %s87 = scalar_lea.vmem [#allocation0], 376
    %88 = vst [vmem:[%s87] sm:%s3] %v86
    %s89 = smul.addr 2, 46
    %s90 = scalar_lea.vmem %s0, %s89
    %v91 = vld [vmem:[%s90] sm:%s3]
    %s92 = scalar_lea.vmem [#allocation0], 368
    %93 = vst [vmem:[%s92] sm:%s3] %v91
    %s94 = smul.addr 2, 45
    %s95 = scalar_lea.vmem %s0, %s94
    %v96 = vld [vmem:[%s95] sm:%s3]
    %s97 = scalar_lea.vmem [#allocation0], 360
    %98 = vst [vmem:[%s97] sm:%s3] %v96
    %s99 = smul.addr 2, 44
    %s100 = scalar_lea.vmem %s0, %s99
    %v101 = vld [vmem:[%s100] sm:%s3]
    %s102 = scalar_lea.vmem [#allocation0], 352
    %103 = vst [vmem:[%s102] sm:%s3] %v101
    %s104 = smul.addr 2, 43
    %s105 = scalar_lea.vmem %s0, %s104
    %v106 = vld [vmem:[%s105] sm:%s3]
    %s107 = scalar_lea.vmem [#allocation0], 344
    %108 = vst [vmem:[%s107] sm:%s3] %v106
    %s109 = smul.addr 2, 42
    %s110 = scalar_lea.vmem %s0, %s109
    %v111 = vld [vmem:[%s110] sm:%s3]
    %s112 = scalar_lea.vmem [#allocation0], 336
    %113 = vst [vmem:[%s112] sm:%s3] %v111
    %s114 = smul.addr 2, 41
    %s115 = scalar_lea.vmem %s0, %s114
    %v116 = vld [vmem:[%s115] sm:%s3]
    %s117 = scalar_lea.vmem [#allocation0], 328
    %118 = vst [vmem:[%s117] sm:%s3] %v116
    %s119 = smul.addr 2, 40
    %s120 = scalar_lea.vmem %s0, %s119
    %v121 = vld [vmem:[%s120] sm:%s3]
    %s122 = scalar_lea.vmem [#allocation0], 320
    %123 = vst [vmem:[%s122] sm:%s3] %v121
    %s124 = smul.addr 2, 39
    %s125 = scalar_lea.vmem %s0, %s124
    %v126 = vld [vmem:[%s125] sm:%s3]
    %s127 = scalar_lea.vmem [#allocation0], 312
    %128 = vst [vmem:[%s127] sm:%s3] %v126
    %s129 = smul.addr 2, 38
    %s130 = scalar_lea.vmem %s0, %s129
    %v131 = vld [vmem:[%s130] sm:%s3]
    %s132 = scalar_lea.vmem [#allocation0], 304
    %133 = vst [vmem:[%s132] sm:%s3] %v131
    %s134 = smul.addr 2, 37
    %s135 = scalar_lea.vmem %s0, %s134
    %v136 = vld [vmem:[%s135] sm:%s3]
    %s137 = scalar_lea.vmem [#allocation0], 296
    %138 = vst [vmem:[%s137] sm:%s3] %v136
    %s139 = smul.addr 2, 36
    %s140 = scalar_lea.vmem %s0, %s139
    %v141 = vld [vmem:[%s140] sm:%s3]
    %s142 = scalar_lea.vmem [#allocation0], 288
    %143 = vst [vmem:[%s142] sm:%s3] %v141
    %s144 = smul.addr 2, 35
    %s145 = scalar_lea.vmem %s0, %s144
    %v146 = vld [vmem:[%s145] sm:%s3]
    %s147 = scalar_lea.vmem [#allocation0], 280
    %148 = vst [vmem:[%s147] sm:%s3] %v146
    %s149 = smul.addr 2, 34
    %s150 = scalar_lea.vmem %s0, %s149
    %v151 = vld [vmem:[%s150] sm:%s3]
    %s152 = scalar_lea.vmem [#allocation0], 272
    %153 = vst [vmem:[%s152] sm:%s3] %v151
    %s154 = smul.addr 2, 33
    %s155 = scalar_lea.vmem %s0, %s154
    %v156 = vld [vmem:[%s155] sm:%s3]
    %s157 = scalar_lea.vmem [#allocation0], 264
    %158 = vst [vmem:[%s157] sm:%s3] %v156
    %s159 = smul.addr 2, 32
    %s160 = scalar_lea.vmem %s0, %s159
    %v161 = vld [vmem:[%s160] sm:%s3]
    %s162 = scalar_lea.vmem [#allocation0], 256
    %163 = vst [vmem:[%s162] sm:%s3] %v161
    %s164 = smul.addr 2, 31
    %s165 = scalar_lea.vmem %s0, %s164
    %v166 = vld [vmem:[%s165] sm:%s3]
    %s167 = scalar_lea.vmem [#allocation0], 248
    %168 = vst [vmem:[%s167] sm:%s3] %v166
    %s169 = smul.addr 2, 30
    %s170 = scalar_lea.vmem %s0, %s169
    %v171 = vld [vmem:[%s170] sm:%s3]
    %s172 = scalar_lea.vmem [#allocation0], 240
    %173 = vst [vmem:[%s172] sm:%s3] %v171
    %s174 = smul.addr 2, 29
    %s175 = scalar_lea.vmem %s0, %s174
    %v176 = vld [vmem:[%s175] sm:%s3]
    %s177 = scalar_lea.vmem [#allocation0], 232
    %178 = vst [vmem:[%s177] sm:%s3] %v176
    %s179 = smul.addr 2, 28
    %s180 = scalar_lea.vmem %s0, %s179
    %v181 = vld [vmem:[%s180] sm:%s3]
    %s182 = scalar_lea.vmem [#allocation0], 224
    %183 = vst [vmem:[%s182] sm:%s3] %v181
    %s184 = smul.addr 2, 27
    %s185 = scalar_lea.vmem %s0, %s184
    %v186 = vld [vmem:[%s185] sm:%s3]
    %s187 = scalar_lea.vmem [#allocation0], 216
    %188 = vst [vmem:[%s187] sm:%s3] %v186
    %s189 = smul.addr 2, 26
    %s190 = scalar_lea.vmem %s0, %s189
    %v191 = vld [vmem:[%s190] sm:%s3]
    %s192 = scalar_lea.vmem [#allocation0], 208
    %193 = vst [vmem:[%s192] sm:%s3] %v191
    %s194 = smul.addr 2, 25
    %s195 = scalar_lea.vmem %s0, %s194
    %v196 = vld [vmem:[%s195] sm:%s3]
    %s197 = scalar_lea.vmem [#allocation0], 200
    %198 = vst [vmem:[%s197] sm:%s3] %v196
    %s199 = smul.addr 2, 24
    %s200 = scalar_lea.vmem %s0, %s199
    %v201 = vld [vmem:[%s200] sm:%s3]
    %s202 = scalar_lea.vmem [#allocation0], 192
    %203 = vst [vmem:[%s202] sm:%s3] %v201
    %s204 = smul.addr 2, 23
    %s205 = scalar_lea.vmem %s0, %s204
    %v206 = vld [vmem:[%s205] sm:%s3]
    %s207 = scalar_lea.vmem [#allocation0], 184
    %208 = vst [vmem:[%s207] sm:%s3] %v206
    %s209 = smul.addr 2, 22
    %s210 = scalar_lea.vmem %s0, %s209
    %v211 = vld [vmem:[%s210] sm:%s3]
    %s212 = scalar_lea.vmem [#allocation0], 176
    %213 = vst [vmem:[%s212] sm:%s3] %v211
    %s214 = smul.addr 2, 21
    %s215 = scalar_lea.vmem %s0, %s214
    %v216 = vld [vmem:[%s215] sm:%s3]
    %s217 = scalar_lea.vmem [#allocation0], 168
    %218 = vst [vmem:[%s217] sm:%s3] %v216
    %s219 = smul.addr 2, 20
    %s220 = scalar_lea.vmem %s0, %s219
    %v221 = vld [vmem:[%s220] sm:%s3]
    %s222 = scalar_lea.vmem [#allocation0], 160
    %223 = vst [vmem:[%s222] sm:%s3] %v221
    %s224 = smul.addr 2, 19
    %s225 = scalar_lea.vmem %s0, %s224
    %v226 = vld [vmem:[%s225] sm:%s3]
    %s227 = scalar_lea.vmem [#allocation0], 152
    %228 = vst [vmem:[%s227] sm:%s3] %v226
    %s229 = smul.addr 2, 18
    %s230 = scalar_lea.vmem %s0, %s229
    %v231 = vld [vmem:[%s230] sm:%s3]
    %s232 = scalar_lea.vmem [#allocation0], 144
    %233 = vst [vmem:[%s232] sm:%s3] %v231
    %s234 = smul.addr 2, 17
    %s235 = scalar_lea.vmem %s0, %s234
    %v236 = vld [vmem:[%s235] sm:%s3]
    %s237 = scalar_lea.vmem [#allocation0], 136
    %238 = vst [vmem:[%s237] sm:%s3] %v236
    %s239 = smul.addr 2, 16
    %s240 = scalar_lea.vmem %s0, %s239
    %v241 = vld [vmem:[%s240] sm:%s3]
    %s242 = scalar_lea.vmem [#allocation0], 128
    %243 = vst [vmem:[%s242] sm:%s3] %v241
    %s244 = smul.addr 2, 15
    %s245 = scalar_lea.vmem %s0, %s244
    %v246 = vld [vmem:[%s245] sm:%s3]
    %s247 = scalar_lea.vmem [#allocation0], 120
    %248 = vst [vmem:[%s247] sm:%s3] %v246
    %s249 = smul.addr 2, 14
    %s250 = scalar_lea.vmem %s0, %s249
    %v251 = vld [vmem:[%s250] sm:%s3]
    %s252 = scalar_lea.vmem [#allocation0], 112
    %253 = vst [vmem:[%s252] sm:%s3] %v251
    %s254 = smul.addr 2, 13
    %s255 = scalar_lea.vmem %s0, %s254
    %v256 = vld [vmem:[%s255] sm:%s3]
    %s257 = scalar_lea.vmem [#allocation0], 104
    %258 = vst [vmem:[%s257] sm:%s3] %v256
    %s259 = smul.addr 2, 12
    %s260 = scalar_lea.vmem %s0, %s259
    %v261 = vld [vmem:[%s260] sm:%s3]
    %s262 = scalar_lea.vmem [#allocation0], 96
    %263 = vst [vmem:[%s262] sm:%s3] %v261
    %s264 = smul.addr 2, 11
    %s265 = scalar_lea.vmem %s0, %s264
    %v266 = vld [vmem:[%s265] sm:%s3]
    %s267 = scalar_lea.vmem [#allocation0], 88
    %268 = vst [vmem:[%s267] sm:%s3] %v266
    %s269 = smul.addr 2, 10
    %s270 = scalar_lea.vmem %s0, %s269
    %v271 = vld [vmem:[%s270] sm:%s3]
    %s272 = scalar_lea.vmem [#allocation0], 80
    %273 = vst [vmem:[%s272] sm:%s3] %v271
    %s274 = smul.addr 2, 9
    %s275 = scalar_lea.vmem %s0, %s274
    %v276 = vld [vmem:[%s275] sm:%s3]
    %s277 = scalar_lea.vmem [#allocation0], 72
    %278 = vst [vmem:[%s277] sm:%s3] %v276
    %s279 = smul.addr 2, 8
    %s280 = scalar_lea.vmem %s0, %s279
    %v281 = vld [vmem:[%s280] sm:%s3]
    %s282 = scalar_lea.vmem [#allocation0], 64
    %283 = vst [vmem:[%s282] sm:%s3] %v281
    %s284 = smul.addr 2, 7
    %s285 = scalar_lea.vmem %s0, %s284
    %v286 = vld [vmem:[%s285] sm:%s3]
    %s287 = scalar_lea.vmem [#allocation0], 56
    %288 = vst [vmem:[%s287] sm:%s3] %v286
    %s289 = smul.addr 2, 6
    %s290 = scalar_lea.vmem %s0, %s289
    %v291 = vld [vmem:[%s290] sm:%s3]
    %s292 = scalar_lea.vmem [#allocation0], 48
    %293 = vst [vmem:[%s292] sm:%s3] %v291
    %s294 = smul.addr 2, 5
    %s295 = scalar_lea.vmem %s0, %s294
    %v296 = vld [vmem:[%s295] sm:%s3]
    %s297 = scalar_lea.vmem [#allocation0], 40
    %298 = vst [vmem:[%s297] sm:%s3] %v296
    %s299 = smul.addr 2, 4
    %s300 = scalar_lea.vmem %s0, %s299
    %v301 = vld [vmem:[%s300] sm:%s3]
    %s302 = scalar_lea.vmem [#allocation0], 32
    %303 = vst [vmem:[%s302] sm:%s3] %v301
    %s304 = smul.addr 2, 3
    %s305 = scalar_lea.vmem %s0, %s304
    %v306 = vld [vmem:[%s305] sm:%s3]
    %s307 = scalar_lea.vmem [#allocation0], 24
    %308 = vst [vmem:[%s307] sm:%s3] %v306
    %s309 = smul.addr 2, 2
    %s310 = scalar_lea.vmem %s0, %s309
    %v311 = vld [vmem:[%s310] sm:%s3]
    %s312 = scalar_lea.vmem [#allocation0], 16
    %313 = vst [vmem:[%s312] sm:%s3] %v311
    %s314 = scalar_lea.vmem %s0, 2
    %v315 = vld [vmem:[%s314] sm:%s3]
    %s316 = scalar_lea.vmem [#allocation0], 8
    %317 = vst [vmem:[%s316] sm:%s3] %v315
    %v318 = vld [vmem:[%s0] sm:%s3]
    %319 = vst [vmem:[#allocation0] sm:%s3] %v318
    %v320 = vld [vmem:[#allocation0] ss:$8 sm:$0xf]
    %v321 = vld [vmem:[#allocation0] ss:$8 sm:$0xf0]
    %vm322 = vcmask 1047556
    %v323 = vsel %vm322, %v321, %v320
    %vm324 = vcmask 64512
    %325 = vst.msk [vmem:[%s1] sm:$0xff] %vm324, %v323
    %s326 = scalar_lea.vmem [#allocation0], 64
    %v327 = vld [vmem:[%s326] ss:$8 sm:$0xf]
    %s328 = scalar_lea.vmem [#allocation0], 64
    %v329 = vld [vmem:[%s328] ss:$8 sm:$0xf0]
    %vm330 = vcmask 1047556
    %v331 = vsel %vm330, %v329, %v327
    %vm332 = vcmask 64512
    %s333 = scalar_lea.vmem %s1, 8
    %334 = vst.msk [vmem:[%s333] sm:$0xff] %vm332, %v331
    %s335 = scalar_lea.vmem [#allocation0], 128
    %v336 = vld [vmem:[%s335] ss:$8 sm:$0xf]
    %s337 = scalar_lea.vmem [#allocation0], 128
    %v338 = vld [vmem:[%s337] ss:$8 sm:$0xf0]
    %vm339 = vcmask 1047556
    %v340 = vsel %vm339, %v338, %v336
    %vm341 = vcmask 64512
    %s342 = scalar_lea.vmem %s1, 16
    %343 = vst.msk [vmem:[%s342] sm:$0xff] %vm341, %v340
    %s344 = scalar_lea.vmem [#allocation0], 192
    %v345 = vld [vmem:[%s344] ss:$8 sm:$0xf]
    %s346 = scalar_lea.vmem [#allocation0], 192
    %v347 = vld [vmem:[%s346] ss:$8 sm:$0xf0]
    %vm348 = vcmask 1047556
    %v349 = vsel %vm348, %v347, %v345
    %vm350 = vcmask 64512
    %s351 = scalar_lea.vmem %s1, 24
    %352 = vst.msk [vmem:[%s351] sm:$0xff] %vm350, %v349
    %s353 = scalar_lea.vmem [#allocation0], 256
    %v354 = vld [vmem:[%s353] ss:$8 sm:$0xf]
    %s355 = scalar_lea.vmem [#allocation0], 256
    %v356 = vld [vmem:[%s355] ss:$8 sm:$0xf0]
    %vm357 = vcmask 1047556
    %v358 = vsel %vm357, %v356, %v354
    %vm359 = vcmask 64512
    %s360 = scalar_lea.vmem %s1, 32
    %361 = vst.msk [vmem:[%s360] sm:$0xff] %vm359, %v358
    %s362 = scalar_lea.vmem [#allocation0], 320
    %v363 = vld [vmem:[%s362] ss:$8 sm:$0xf]
    %s364 = scalar_lea.vmem [#allocation0], 320
    %v365 = vld [vmem:[%s364] ss:$8 sm:$0xf0]
    %vm366 = vcmask 1047556
    %v367 = vsel %vm366, %v365, %v363
    %vm368 = vcmask 64512
    %s369 = scalar_lea.vmem %s1, 40
    %370 = vst.msk [vmem:[%s369] sm:$0xff] %vm368, %v367
    %s371 = scalar_lea.vmem [#allocation0], 384
    %v372 = vld [vmem:[%s371] ss:$8 sm:$0xf]
    %s373 = scalar_lea.vmem [#allocation0], 384
    %v374 = vld [vmem:[%s373] ss:$8 sm:$0xf0]
    %vm375 = vcmask 1047556
    %v376 = vsel %vm375, %v374, %v372
    %vm377 = vcmask 64512
    %s378 = scalar_lea.vmem %s1, 48
    %379 = vst.msk [vmem:[%s378] sm:$0xff] %vm377, %v376
    %s380 = scalar_lea.vmem [#allocation0], 448
    %v381 = vld [vmem:[%s380] ss:$8 sm:$0xf]
    %s382 = scalar_lea.vmem [#allocation0], 448
    %v383 = vld [vmem:[%s382] ss:$8 sm:$0xf0]
    %vm384 = vcmask 1047556
    %v385 = vsel %vm384, %v383, %v381
    %vm386 = vcmask 64512
    %s387 = scalar_lea.vmem %s1, 56
    %388 = vst.msk [vmem:[%s387] sm:$0xff] %vm386, %v385
    %s389 = scalar_lea.vmem [#allocation0], 1
    %v390 = vld [vmem:[%s389] ss:$8 sm:$0xf]
    %s391 = scalar_lea.vmem [#allocation0], 1
    %v392 = vld [vmem:[%s391] ss:$8 sm:$0xf0]
    %vm393 = vcmask 1047556
    %v394 = vsel %vm393, %v392, %v390
    %395 = vrot.lane.b32.xlu0 %v394, 8
    %v396 = vpop.permute.xlu0 %395
    %vm397 = vcmask 130112
    %398 = vst.msk [vmem:[%s1] sm:$0xff] %vm397, %v396
    %s399 = scalar_lea.vmem [#allocation0], 257
    %v400 = vld [vmem:[%s399] ss:$8 sm:$0xf]
    %s401 = scalar_lea.vmem [#allocation0], 257
    %v402 = vld [vmem:[%s401] ss:$8 sm:$0xf0]
    %vm403 = vcmask 1047556
    %v404 = vsel %vm403, %v402, %v400
    %405 = vrot.lane.b32.xlu0 %v404, 8
    %v406 = vpop.permute.xlu0 %405
    %vm407 = vcmask 130112
    %s408 = scalar_lea.vmem %s1, 32
    %409 = vst.msk [vmem:[%s408] sm:$0xff] %vm407, %v406
    %s410 = scalar_lea.vmem [#allocation0], 65
    %v411 = vld [vmem:[%s410] ss:$8 sm:$0xf]
    %s412 = scalar_lea.vmem [#allocation0], 65
    %v413 = vld [vmem:[%s412] ss:$8 sm:$0xf0]
    %vm414 = vcmask 1047556
    %v415 = vsel %vm414, %v413, %v411
    %416 = vrot.lane.b32.xlu0 %v415, 8
    %v417 = vpop.permute.xlu0 %416
    %vm418 = vcmask 130112
    %s419 = scalar_lea.vmem %s1, 8
    %420 = vst.msk [vmem:[%s419] sm:$0xff] %vm418, %v417
    %s421 = scalar_lea.vmem [#allocation0], 321
    %v422 = vld [vmem:[%s421] ss:$8 sm:$0xf]
    %s423 = scalar_lea.vmem [#allocation0], 321
    %v424 = vld [vmem:[%s423] ss:$8 sm:$0xf0]
    %vm425 = vcmask 1047556
    %v426 = vsel %vm425, %v424, %v422
    %427 = vrot.lane.b32.xlu0 %v426, 8
    %v428 = vpop.permute.xlu0 %427
    %vm429 = vcmask 130112
    %s430 = scalar_lea.vmem %s1, 40
    %431 = vst.msk [vmem:[%s430] sm:$0xff] %vm429, %v428
    %s432 = scalar_lea.vmem [#allocation0], 129
    %v433 = vld [vmem:[%s432] ss:$8 sm:$0xf]
    %s434 = scalar_lea.vmem [#allocation0], 129
    %v435 = vld [vmem:[%s434] ss:$8 sm:$0xf0]
    %vm436 = vcmask 1047556
    %v437 = vsel %vm436, %v435, %v433
    %438 = vrot.lane.b32.xlu0 %v437, 8
    %v439 = vpop.permute.xlu0 %438
    %vm440 = vcmask 130112
    %s441 = scalar_lea.vmem %s1, 16
    %442 = vst.msk [vmem:[%s441] sm:$0xff] %vm440, %v439
    %s443 = scalar_lea.vmem [#allocation0], 385
    %v444 = vld [vmem:[%s443] ss:$8 sm:$0xf]
    %s445 = scalar_lea.vmem [#allocation0], 385
    %v446 = vld [vmem:[%s445] ss:$8 sm:$0xf0]
    %vm447 = vcmask 1047556
    %v448 = vsel %vm447, %v446, %v444
    %449 = vrot.lane.b32.xlu0 %v448, 8
    %v450 = vpop.permute.xlu0 %449
    %vm451 = vcmask 130112
    %s452 = scalar_lea.vmem %s1, 48
    %453 = vst.msk [vmem:[%s452] sm:$0xff] %vm451, %v450
    %s454 = scalar_lea.vmem [#allocation0], 193
    %v455 = vld [vmem:[%s454] ss:$8 sm:$0xf]
    %s456 = scalar_lea.vmem [#allocation0], 193
    %v457 = vld [vmem:[%s456] ss:$8 sm:$0xf0]
    %vm458 = vcmask 1047556
    %v459 = vsel %vm458, %v457, %v455
    %460 = vrot.lane.b32.xlu0 %v459, 8
    %v461 = vpop.permute.xlu0 %460
    %vm462 = vcmask 130112
    %s463 = scalar_lea.vmem %s1, 24
    %464 = vst.msk [vmem:[%s463] sm:$0xff] %vm462, %v461
    %s465 = scalar_lea.vmem [#allocation0], 449
    %v466 = vld [vmem:[%s465] ss:$8 sm:$0xf]
    %s467 = scalar_lea.vmem [#allocation0], 449
    %v468 = vld [vmem:[%s467] ss:$8 sm:$0xf0]
    %vm469 = vcmask 1047556
    %v470 = vsel %vm469, %v468, %v466
    %471 = vrot.lane.b32.xlu0 %v470, 8
    %v472 = vpop.permute.xlu0 %471
    %vm473 = vcmask 130112
    %s474 = scalar_lea.vmem %s1, 56
    %475 = vst.msk [vmem:[%s474] sm:$0xff] %vm473, %v472

// kernel: xtr_forward.1
$region0: #{xtr_forward.1}
  #allocation0 [shape = 'u32[]', space=smem, size = 0x4, offset = 0x4, fixed_abs, tag = 'smem constant byte address 0x4 - core index']
  #allocation1 [shape = 'u32[144,128]{1,0:T(1,128)}', space=vmem, size = 0x12000, scoped, tag = 'internal scratch']
  %s0 = inlined_call_operand.vmem [shape: f32[16,32], index: 0, kind: input, shape index: {}]
  %s1 = inlined_call_operand.vmem [shape: f32[4,16,16], index: 1, kind: input, shape index: {}]
  %s2 = inlined_call_operand.vmem [shape: f32[2,1,32], index: 2, kind: input, shape index: {}]
  %s3 = inlined_call_operand.vmem [shape: f32[2,32,96], index: 3, kind: input, shape index: {}]
  %s4 = inlined_call_operand.vmem [shape: f32[2,32,32], index: 4, kind: input, shape index: {}]
  %s5 = inlined_call_operand.vmem [shape: f32[2,1,32], index: 5, kind: input, shape index: {}]
  %s6 = inlined_call_operand.vmem [shape: f32[2,32,64], index: 6, kind: input, shape index: {}]
  %s7 = inlined_call_operand.vmem [shape: f32[2,64,32], index: 7, kind: input, shape index: {}]
  %s8 = inlined_call_operand.vmem [shape: f32[1,32], index: 8, kind: input, shape index: {}]
  %s9 = inlined_call_operand.vmem [shape: f32[32,128], index: 9, kind: input, shape index: {}]
  %s10 = inlined_call_operand.hbm [shape: f32[16,128], index: 10, kind: output, shape index: {}]
  %s11 = sld [smem:[#allocation0]]
  $region50: #{xtr_forward.1} parent=0
    _
  %s13 = ssub.s32 1, %s11
  %s14 = scalar_select 0, %s13, %s11
  $region1: #{xtr_forward.1} parent=0
    #allocation2 [shape = 'u8[8192]{0}', space=vmem, size = 0x2000, scoped, tag = 'output window, operand 0, single buffered']
    #allocation3 [shape = 's32[1]{0}', space=sflag, size = 0x4, scoped, tag = 'scoped memory for xtr_forward.1']
    %15 = vsyncpa [#allocation3], 0
    // Predicated region
    $region2: #{xtr_forward.1} parent=1 // pred_check
      _
    $region3: #{xtr_forward.1} parent=1 // pred_check_branch
      %17 = sbr.rel (0) target = $region5
    $region4: #{xtr_forward.1} parent=1 // pred_region
      _
    $region5: #{xtr_forward.1} parent=1 // pred_fallthru
      _
    // Predicated region
    $region6: #{xtr_forward.1} parent=1 // pred_check
      _
    $region7: #{xtr_forward.1} parent=1 // pred_check_branch
      %19 = sbr.rel (0) target = $region9
    $region8: #{xtr_forward.1} parent=1 // pred_region
      _
    $region9: #{xtr_forward.1} parent=1 // pred_fallthru
      _
    // Predicated region
    $region10: #{xtr_forward.1} parent=1 // pred_check
      _
    $region11: #{xtr_forward.1} parent=1 // pred_check_branch
      %21 = sbr.rel (0) target = $region13
    $region12: #{xtr_forward.1} parent=1 // pred_region
      _
    $region13: #{xtr_forward.1} parent=1 // pred_fallthru
      _
    // Predicated region
    $region14: #{xtr_forward.1} parent=1 // pred_check
      _
    $region15: #{xtr_forward.1} parent=1 // pred_check_branch
      %23 = sbr.rel (0) target = $region17
    $region16: #{xtr_forward.1} parent=1 // pred_region
      _
    $region17: #{xtr_forward.1} parent=1 // pred_fallthru
      _
    // Predicated region
    $region18: #{xtr_forward.1} parent=1 // pred_check
      _
    $region19: #{xtr_forward.1} parent=1 // pred_check_branch
      %25 = sbr.rel (0) target = $region21
    $region20: #{xtr_forward.1} parent=1 // pred_region
      _
    $region21: #{xtr_forward.1} parent=1 // pred_fallthru
      _
    // Predicated region
    $region22: #{xtr_forward.1} parent=1 // pred_check
      _
    $region23: #{xtr_forward.1} parent=1 // pred_check_branch
      %27 = sbr.rel (0) target = $region25
    $region24: #{xtr_forward.1} parent=1 // pred_region
      _
    $region25: #{xtr_forward.1} parent=1 // pred_fallthru
      _
    // Predicated region
    $region26: #{xtr_forward.1} parent=1 // pred_check
      _
    $region27: #{xtr_forward.1} parent=1 // pred_check_branch
      %29 = sbr.rel (0) target = $region29
    $region28: #{xtr_forward.1} parent=1 // pred_region
      _
    $region29: #{xtr_forward.1} parent=1 // pred_fallthru
      _
    // Predicated region
    $region30: #{xtr_forward.1} parent=1 // pred_check
      _
    $region31: #{xtr_forward.1} parent=1 // pred_check_branch
      %31 = sbr.rel (0) target = $region33
    $region32: #{xtr_forward.1} parent=1 // pred_region
      _
    $region33: #{xtr_forward.1} parent=1 // pred_fallthru
      _
    // Predicated region
    $region34: #{xtr_forward.1} parent=1 // pred_check
      _
    $region35: #{xtr_forward.1} parent=1 // pred_check_branch
      %33 = sbr.rel (0) target = $region37
    $region36: #{xtr_forward.1} parent=1 // pred_region
      _
    $region37: #{xtr_forward.1} parent=1 // pred_fallthru
      _
    // Predicated region
    $region38: #{xtr_forward.1} parent=1 // pred_check
      _
    $region39: #{xtr_forward.1} parent=1 // pred_check_branch
      %35 = sbr.rel (0) target = $region41
    $region40: #{xtr_forward.1} parent=1 // pred_region
      _
    $region41: #{xtr_forward.1} parent=1 // pred_fallthru
      _
    %v36 = vld [vmem:[%s0] sm:$0xff]
    %v37 = vld [vmem:[%s0 + $0x8] sm:$0xff]
    %v38 = vld [vmem:[%s2] sm:$0x1]
    %v39 = vmul.f32 %v36, %v36
    %v40 = vmul.f32 %v37, %v37
    %vm41 = vcmask 261120
    %v42 = vsel %vm41, %v39, 0.0
    %43 = vadd.xlane.f32.xlu0 %v42
    %v44 = vpop.xlane.xlu0 %43
    %v45 = vsel %vm41, %v40, 0.0
    %46 = vadd.xlane.f32.xlu0 %v45
    %v47 = vpop.xlane.xlu0 %46
    %v48 = vrcp.pop 32.0
    %v49 = vmul.f32 %v44, %v48
    %v50 = vmul.f32 %v47, %v48
    %v51 = vadd.f32 %v49, 1e-06
    %v52 = vadd.f32 %v50, 1e-06
    %v53 = vrsqrt.pop %v51
    %v54 = vrsqrt.pop %v52
    %v55 = vmul.f32 %v36, %v53
    %v56 = vmul.f32 %v37, %v54
    %v58 = vlaneseq
    %v59 = vshrl.u32 %v58, 7
    %v60 = vsub.s32 0, %v59
    %v61 = vrot.slane %v38, %v60
    %v63 = vmul.f32 %v55, %v61
    %v64 = vmul.f32 %v56, %v61
    %v65 = vld [vmem:[%s3] sm:$0xff]
    %v66 = vld [vmem:[%s3 + $0x8] sm:$0xff]
    %v67 = vld [vmem:[%s3 + $0x10] sm:$0xff]
    %v68 = vld [vmem:[%s3 + $0x18] sm:$0xff]
    %v70 = vsel %vm41, %v63, 0
    %v73 = vsel %vm41, %v64, 0
    %75 = vmatprep.subr.mxu0 0.0
    %76 = vmatpush1.msra.mxu0 %v65
    %77 = vmatprep.subr.mxu0 0.0
    %78 = vmatpush1.msra.mxu0 %v66
    %79 = vmatprep.subr.mxu0 0.0
    %80 = vmatpush1.msra.mxu0 %v67
    %81 = vmatprep.subr.mxu0 0.0
    %82 = vmatpush1.msra.mxu0 %v68
    %83 = vmatprep.subr.mxu0 0.0
    %84 = vmatpush1.msra.mxu0 0.0
    %85 = vmatprep.subr.mxu0 0.0
    %86 = vmatpush1.msra.mxu0 0.0
    %87 = vmatprep.subr.mxu0 0.0
    %88 = vmatpush1.msra.mxu0 0.0
    %89 = vmatprep.subr.mxu0 0.0
    %90 = vmatpush1.msra.mxu0 0.0
    %91 = vmatprep.subr.mxu0 0.0
    %92 = vmatpush1.msra.mxu0 0.0
    %93 = vmatprep.subr.mxu0 0.0
    %94 = vmatpush1.msra.mxu0 0.0
    %95 = vmatprep.subr.mxu0 0.0
    %96 = vmatpush1.msra.mxu0 0.0
    %97 = vmatprep.subr.mxu0 0.0
    %98 = vmatpush1.msra.mxu0 0.0
    %99 = vmatprep.subr.mxu0 0.0
    %100 = vmatpush1.msra.mxu0 0.0
    %101 = vmatprep.subr.mxu0 0.0
    %102 = vmatpush1.msra.mxu0 0.0
    %103 = vmatprep.subr.mxu0 0.0
    %104 = vmatpush1.msra.mxu0 0.0
    %105 = vmatprep.subr.mxu0 0.0
    %106 = vmatpush1.msra.mxu0 0.0
    %107 = vmatprep.subr.mxu0 0.0
    %108 = vmatpush1.msra.mxu0 0.0
    %109 = vmatprep.subr.mxu0 0.0
    %110 = vmatpush1.msra.mxu0 0.0
    %111 = vmatprep.subr.mxu0 0.0
    %112 = vmatpush1.msra.mxu0 0.0
    %113 = vmatprep.subr.mxu0 0.0
    %114 = vmatpush1.msra.mxu0 0.0
    %115 = vmatprep.subr.mxu0 0.0
    %116 = vmatpush1.msra.mxu0 0.0
    %117 = vmatprep.subr.mxu0 0.0
    %118 = vmatpush1.msra.mxu0 0.0
    %119 = vmatprep.subr.mxu0 0.0
    %120 = vmatpush1.msra.mxu0 0.0
    %121 = vmatprep.subr.mxu0 0.0
    %122 = vmatpush1.msra.mxu0 0.0
    %123 = vmatprep.subr.mxu0 0.0
    %124 = vmatpush1.msra.mxu0 0.0
    %125 = vmatprep.subr.mxu0 0.0
    %126 = vmatpush1.msra.mxu0 0.0
    %127 = vmatprep.subr.mxu0 0.0
    %128 = vmatpush1.msra.mxu0 0.0
    %129 = vmatprep.subr.mxu0 0.0
    %130 = vmatpush1.msra.mxu0 0.0
    %131 = vmatprep.subr.mxu0 0.0
    %132 = vmatpush1.msra.mxu0 0.0
    %133 = vmatprep.subr.mxu0 0.0
    %134 = vmatpush1.msra.mxu0 0.0
    %135 = vmatprep.subr.mxu0 0.0
    %136 = vmatpush1.msra.mxu0 0.0
    %137 = vmatprep.subr.mxu0 0.0
    %138 = vmatpush1.msra.mxu0 0.0
    %139 = vmatprep.mubr.f32.mxu0 0.0
    %140 = vmatmul.mubr.f32.gmra.mrb[0].mxu0 %v70
    %v141 = vpop.f32.mrb[0].mxu0
    %v142 = vadd.f32 0.0, %v141
    %v143 = vpop.f32.mrb[0].mxu0
    %144 = vmatprep.mubr.f32.mxu0 0.0
    %145 = vmatmul.mubr.f32.gmra.mrb[0].mxu0 %v73
    %v146 = vpop.f32.mrb[0].mxu0
    %v147 = vadd.f32 0.0, %v146
    %v148 = vpop.f32.mrb[0].mxu0
    %149 = vdwg.mxu0
    %v150 = vld [vmem:[%s4] sm:$0xff]
    %v151 = vld [vmem:[%s4 + $0x8] sm:$0xff]
    %v152 = vld [vmem:[%s4 + $0x10] sm:$0xff]
    %v153 = vld [vmem:[%s4 + $0x18] sm:$0xff]
    %v154 = vld [vmem:[%s1] sm:$0xff]
    %v155 = vld [vmem:[%s1 + $0x8] sm:$0xff]
    %158 = vrot.lane.b32.xlu0 %v142, 96
    %v159 = vpop.permute.xlu0 %158
    %160 = vrot.lane.b32.xlu0 %v147, 96
    %v161 = vpop.permute.xlu0 %160
    %vm162 = vcmask 64512
    %v163 = vsel %vm162, %v142, 0
    %v165 = vsel %vm162, %v147, 0
    %v167 = vsel %vm162, %v159, 0
    %v169 = vsel %vm162, %v161, 0
    %171 = vmatprep.subr.mxu0 0.0
    %172 = vmatpush1.xpose.msra.mxu0 %v167
    %173 = vmatprep.subr.mxu0 0.0
    %174 = vmatpush1.xpose.msra.mxu0 %v169
    %175 = vmatprep.subr.mxu0 0.0
    %176 = vmatpush1.xpose.msra.mxu0 0.0
    %177 = vmatprep.subr.mxu0 0.0
    %178 = vmatpush1.xpose.msra.mxu0 0.0
    %179 = vmatprep.subr.mxu0 0.0
    %180 = vmatpush1.xpose.msra.mxu0 0.0
    %181 = vmatprep.subr.mxu0 0.0
    %182 = vmatpush1.xpose.msra.mxu0 0.0
    %183 = vmatprep.subr.mxu0 0.0
    %184 = vmatpush1.xpose.msra.mxu0 0.0
    %185 = vmatprep.subr.mxu0 0.0
    %186 = vmatpush1.xpose.msra.mxu0 0.0
    %187 = vmatprep.subr.mxu0 0.0
    %188 = vmatpush1.xpose.msra.mxu0 0.0
    %189 = vmatprep.subr.mxu0 0.0
    %190 = vmatpush1.xpose.msra.mxu0 0.0
    %191 = vmatprep.subr.mxu0 0.0
    %192 = vmatpush1.xpose.msra.mxu0 0.0
    %193 = vmatprep.subr.mxu0 0.0
    %194 = vmatpush1.xpose.msra.mxu0 0.0
    %195 = vmatprep.subr.mxu0 0.0
    %196 = vmatpush1.xpose.msra.mxu0 0.0
    %197 = vmatprep.subr.mxu0 0.0
    %198 = vmatpush1.xpose.msra.mxu0 0.0
    %199 = vmatprep.subr.mxu0 0.0
    %200 = vmatpush1.xpose.msra.mxu0 0.0
    %201 = vmatprep.subr.mxu0 0.0
    %202 = vmatpush1.xpose.msra.mxu0 0.0
    %203 = vmatprep.subr.mxu0 0.0
    %204 = vmatpush1.xpose.msra.mxu0 0.0
    %205 = vmatprep.subr.mxu0 0.0
    %206 = vmatpush1.xpose.msra.mxu0 0.0
    %207 = vmatprep.subr.mxu0 0.0
    %208 = vmatpush1.xpose.msra.mxu0 0.0
    %209 = vmatprep.subr.mxu0 0.0
    %210 = vmatpush1.xpose.msra.mxu0 0.0
    %211 = vmatprep.subr.mxu0 0.0
    %212 = vmatpush1.xpose.msra.mxu0 0.0
    %213 = vmatprep.subr.mxu0 0.0
    %214 = vmatpush1.xpose.msra.mxu0 0.0
    %215 = vmatprep.subr.mxu0 0.0
    %216 = vmatpush1.xpose.msra.mxu0 0.0
    %217 = vmatprep.subr.mxu0 0.0
    %218 = vmatpush1.xpose.msra.mxu0 0.0
    %219 = vmatprep.subr.mxu0 0.0
    %220 = vmatpush1.xpose.msra.mxu0 0.0
    %221 = vmatprep.subr.mxu0 0.0
    %222 = vmatpush1.xpose.msra.mxu0 0.0
    %223 = vmatprep.subr.mxu0 0.0
    %224 = vmatpush1.xpose.msra.mxu0 0.0
    %225 = vmatprep.subr.mxu0 0.0
    %226 = vmatpush1.xpose.msra.mxu0 0.0
    %227 = vmatprep.subr.mxu0 0.0
    %228 = vmatpush1.xpose.msra.mxu0 0.0
    %229 = vmatprep.subr.mxu0 0.0
    %230 = vmatpush1.xpose.msra.mxu0 0.0
    %231 = vmatprep.subr.mxu0 0.0
    %232 = vmatpush1.xpose.msra.mxu0 0.0
    %233 = vmatprep.subr.mxu0 0.0
    %234 = vmatpush1.xpose.msra.mxu0 0.0
    %235 = vmatprep.mubr.f32.mxu0 0.0
    %236 = vmatmul.mubr.f32.gmra.mrb[0].mxu0 %v163
    %v237 = vpop.f32.mrb[0].mxu0
    %v238 = vadd.f32 %v154, %v237
    %v239 = vpop.f32.mrb[0].mxu0
    %240 = vmatprep.mubr.f32.mxu0 0.0
    %241 = vmatmul.mubr.f32.gmra.mrb[0].mxu0 %v165
    %v242 = vpop.f32.mrb[0].mxu0
    %v243 = vadd.f32 %v155, %v242
    %v244 = vpop.f32.mrb[0].mxu0
    %245 = vdwg.mxu0
    %vm246 = vcmask 130048
    %v247 = vsel %vm246, %v238, -inf
    %248 = vmax.xlane.f32.xlu0 %v247
    %v249 = vpop.xlane.xlu0 %248
    %v250 = vsel %vm246, %v243, -inf
    %251 = vmax.xlane.f32.xlu0 %v250
    %v252 = vpop.xlane.xlu0 %251
    %v253 = vsub.f32 %v238, %v249
    %v254 = vsub.f32 %v243, %v252
    %v255 = vmul.f32 %v253, 1.442695
    %v256 = vpow.pop %v255
    %v257 = vmul.f32 %v254, 1.442695
    %v258 = vpow.pop %v257
    %v259 = vsel %vm246, %v256, 0.0
    %260 = vadd.xlane.f32.xlu0 %v259
    %v261 = vpop.xlane.xlu0 %260
    %v262 = vsel %vm246, %v258, 0.0
    %263 = vadd.xlane.f32.xlu0 %v262
    %v264 = vpop.xlane.xlu0 %263
    %v265 = vrcp.pop %v261
    %v266 = vrcp.pop %v264
    %v267 = vmul.f32 %v256, %v265
    %v268 = vmul.f32 %v258, %v266
    %269 = vrot.lane.b32.xlu0 %v142, 64
    %v270 = vpop.permute.xlu0 %269
    %271 = vrot.lane.b32.xlu0 %v147, 64
    %v272 = vpop.permute.xlu0 %271
    %v276 = vsel %vm246, %v267, 0
    %v279 = vsel %vm246, %v268, 0
    %281 = vmatprep.subr.mxu0 0.0
    %282 = vmatpush1.msra.mxu0 %v270
    %283 = vmatprep.subr.mxu0 0.0
    %284 = vmatpush1.msra.mxu0 %v272
    %285 = vmatprep.subr.mxu0 0.0
    %286 = vmatpush1.msra.mxu0 0.0
    %287 = vmatprep.subr.mxu0 0.0
    %288 = vmatpush1.msra.mxu0 0.0
    %289 = vmatprep.subr.mxu0 0.0
    %290 = vmatpush1.msra.mxu0 0.0
    %291 = vmatprep.subr.mxu0 0.0
    %292 = vmatpush1.msra.mxu0 0.0
    %293 = vmatprep.subr.mxu0 0.0
    %294 = vmatpush1.msra.mxu0 0.0
    %295 = vmatprep.subr.mxu0 0.0
    %296 = vmatpush1.msra.mxu0 0.0
    %297 = vmatprep.subr.mxu0 0.0
    %298 = vmatpush1.msra.mxu0 0.0
    %299 = vmatprep.subr.mxu0 0.0
    %300 = vmatpush1.msra.mxu0 0.0
    %301 = vmatprep.subr.mxu0 0.0
    %302 = vmatpush1.msra.mxu0 0.0
    %303 = vmatprep.subr.mxu0 0.0
    %304 = vmatpush1.msra.mxu0 0.0
    %305 = vmatprep.subr.mxu0 0.0
    %306 = vmatpush1.msra.mxu0 0.0
    %307 = vmatprep.subr.mxu0 0.0
    %308 = vmatpush1.msra.mxu0 0.0
    %309 = vmatprep.subr.mxu0 0.0
    %310 = vmatpush1.msra.mxu0 0.0
    %311 = vmatprep.subr.mxu0 0.0
    %312 = vmatpush1.msra.mxu0 0.0
    %313 = vmatprep.subr.mxu0 0.0
    %314 = vmatpush1.msra.mxu0 0.0
    %315 = vmatprep.subr.mxu0 0.0
    %316 = vmatpush1.msra.mxu0 0.0
    %317 = vmatprep.subr.mxu0 0.0
    %318 = vmatpush1.msra.mxu0 0.0
    %319 = vmatprep.subr.mxu0 0.0
    %320 = vmatpush1.msra.mxu0 0.0
    %321 = vmatprep.subr.mxu0 0.0
    %322 = vmatpush1.msra.mxu0 0.0
    %323 = vmatprep.subr.mxu0 0.0
    %324 = vmatpush1.msra.mxu0 0.0
    %325 = vmatprep.subr.mxu0 0.0
    %326 = vmatpush1.msra.mxu0 0.0
    %327 = vmatprep.subr.mxu0 0.0
    %328 = vmatpush1.msra.mxu0 0.0
    %329 = vmatprep.subr.mxu0 0.0
    %330 = vmatpush1.msra.mxu0 0.0
    %331 = vmatprep.subr.mxu0 0.0
    %332 = vmatpush1.msra.mxu0 0.0
    %333 = vmatprep.subr.mxu0 0.0
    %334 = vmatpush1.msra.mxu0 0.0
    %335 = vmatprep.subr.mxu0 0.0
    %336 = vmatpush1.msra.mxu0 0.0
    %337 = vmatprep.subr.mxu0 0.0
    %338 = vmatpush1.msra.mxu0 0.0
    %339 = vmatprep.subr.mxu0 0.0
    %340 = vmatpush1.msra.mxu0 0.0
    %341 = vmatprep.subr.mxu0 0.0
    %342 = vmatpush1.msra.mxu0 0.0
    %343 = vmatprep.subr.mxu0 0.0
    %344 = vmatpush1.msra.mxu0 0.0
    %345 = vmatprep.mubr.f32.mxu0 0.0
    %346 = vmatmul.mubr.f32.gmra.mrb[0].mxu0 %v276
    %v347 = vpop.f32.mrb[0].mxu0
    %v348 = vadd.f32 0.0, %v347
    %v349 = vpop.f32.mrb[0].mxu0
    %350 = vmatprep.mubr.f32.mxu0 0.0
    %351 = vmatmul.mubr.f32.gmra.mrb[0].mxu0 %v279
    %v352 = vpop.f32.mrb[0].mxu0
    %v353 = vadd.f32 0.0, %v352
    %v354 = vpop.f32.mrb[0].mxu0
    %355 = vdwg.mxu0
    %s356 = scalar_lea.vmem %s1, 16
    %v357 = vld [vmem:[%s356] sm:$0xff]
    %v358 = vld [vmem:[%s356 + $0x8] sm:$0xff]
    %359 = vrot.lane.b32.xlu0 %v142, 120
    %v360 = vpop.permute.xlu0 %359
    %361 = vrot.lane.b32.xlu0 %v147, 120
    %v362 = vpop.permute.xlu0 %361
    %363 = vrot.lane.b32.xlu0 %v142, 88
    %v364 = vpop.permute.xlu0 %363
    %365 = vrot.lane.b32.xlu0 %v147, 88
    %v366 = vpop.permute.xlu0 %365
    %v367 = vsel %vm162, %v360, 0
    %v369 = vsel %vm162, %v362, 0
    %v371 = vsel %vm162, %v364, 0
    %v373 = vsel %vm162, %v366, 0
    %375 = vmatprep.subr.mxu0 0.0
    %376 = vmatpush1.xpose.msra.mxu0 %v371
    %377 = vmatprep.subr.mxu0 0.0
    %378 = vmatpush1.xpose.msra.mxu0 %v373
    %379 = vmatprep.subr.mxu0 0.0
    %380 = vmatpush1.xpose.msra.mxu0 0.0
    %381 = vmatprep.subr.mxu0 0.0
    %382 = vmatpush1.xpose.msra.mxu0 0.0
    %383 = vmatprep.subr.mxu0 0.0
    %384 = vmatpush1.xpose.msra.mxu0 0.0
    %385 = vmatprep.subr.mxu0 0.0
    %386 = vmatpush1.xpose.msra.mxu0 0.0
    %387 = vmatprep.subr.mxu0 0.0
    %388 = vmatpush1.xpose.msra.mxu0 0.0
    %389 = vmatprep.subr.mxu0 0.0
    %390 = vmatpush1.xpose.msra.mxu0 0.0
    %391 = vmatprep.subr.mxu0 0.0
    %392 = vmatpush1.xpose.msra.mxu0 0.0
    %393 = vmatprep.subr.mxu0 0.0
    %394 = vmatpush1.xpose.msra.mxu0 0.0
    %395 = vmatprep.subr.mxu0 0.0
    %396 = vmatpush1.xpose.msra.mxu0 0.0
    %397 = vmatprep.subr.mxu0 0.0
    %398 = vmatpush1.xpose.msra.mxu0 0.0
    %399 = vmatprep.subr.mxu0 0.0
    %400 = vmatpush1.xpose.msra.mxu0 0.0
    %401 = vmatprep.subr.mxu0 0.0
    %402 = vmatpush1.xpose.msra.mxu0 0.0
    %403 = vmatprep.subr.mxu0 0.0
    %404 = vmatpush1.xpose.msra.mxu0 0.0
    %405 = vmatprep.subr.mxu0 0.0
    %406 = vmatpush1.xpose.msra.mxu0 0.0
    %407 = vmatprep.subr.mxu0 0.0
    %408 = vmatpush1.xpose.msra.mxu0 0.0
    %409 = vmatprep.subr.mxu0 0.0
    %410 = vmatpush1.xpose.msra.mxu0 0.0
    %411 = vmatprep.subr.mxu0 0.0
    %412 = vmatpush1.xpose.msra.mxu0 0.0
    %413 = vmatprep.subr.mxu0 0.0
    %414 = vmatpush1.xpose.msra.mxu0 0.0
    %415 = vmatprep.subr.mxu0 0.0
    %416 = vmatpush1.xpose.msra.mxu0 0.0
    %417 = vmatprep.subr.mxu0 0.0
    %418 = vmatpush1.xpose.msra.mxu0 0.0
    %419 = vmatprep.subr.mxu0 0.0
    %420 = vmatpush1.xpose.msra.mxu0 0.0
    %421 = vmatprep.subr.mxu0 0.0
    %422 = vmatpush1.xpose.msra.mxu0 0.0
    %423 = vmatprep.subr.mxu0 0.0
    %424 = vmatpush1.xpose.msra.mxu0 0.0
    %425 = vmatprep.subr.mxu0 0.0
    %426 = vmatpush1.xpose.msra.mxu0 0.0
    %427 = vmatprep.subr.mxu0 0.0
    %428 = vmatpush1.xpose.msra.mxu0 0.0
    %429 = vmatprep.subr.mxu0 0.0
    %430 = vmatpush1.xpose.msra.mxu0 0.0
    %431 = vmatprep.subr.mxu0 0.0
    %432 = vmatpush1.xpose.msra.mxu0 0.0
    %433 = vmatprep.subr.mxu0 0.0
    %434 = vmatpush1.xpose.msra.mxu0 0.0
    %435 = vmatprep.subr.mxu0 0.0
    %436 = vmatpush1.xpose.msra.mxu0 0.0
    %437 = vmatprep.subr.mxu0 0.0
    %438 = vmatpush1.xpose.msra.mxu0 0.0
    %439 = vmatprep.mubr.f32.mxu0 0.0
    %440 = vmatmul.mubr.f32.gmra.mrb[0].mxu0 %v367
    %v441 = vpop.f32.mrb[0].mxu0
    %v442 = vadd.f32 %v357, %v441
    %v443 = vpop.f32.mrb[0].mxu0
    %444 = vmatprep.mubr.f32.mxu0 0.0
    %445 = vmatmul.mubr.f32.gmra.mrb[0].mxu0 %v369
    %v446 = vpop.f32.mrb[0].mxu0
    %v447 = vadd.f32 %v358, %v446
    %v448 = vpop.f32.mrb[0].mxu0
    %449 = vdwg.mxu0
    %v450 = vsel %vm246, %v442, -inf
    %451 = vmax.xlane.f32.xlu0 %v450
    %v452 = vpop.xlane.xlu0 %451
    %v453 = vsel %vm246, %v447, -inf
    %454 = vmax.xlane.f32.xlu0 %v453
    %v455 = vpop.xlane.xlu0 %454
    %v456 = vsub.f32 %v442, %v452
    %v457 = vsub.f32 %v447, %v455
    %v458 = vmul.f32 %v456, 1.442695
    %v459 = vpow.pop %v458
    %v460 = vmul.f32 %v457, 1.442695
    %v461 = vpow.pop %v460
    %v462 = vsel %vm246, %v459, 0.0
    %463 = vadd.xlane.f32.xlu0 %v462
    %v464 = vpop.xlane.xlu0 %463
    %v465 = vsel %vm246, %v461, 0.0
    %466 = vadd.xlane.f32.xlu0 %v465
    %v467 = vpop.xlane.xlu0 %466
    %v468 = vrcp.pop %v464
    %v469 = vrcp.pop %v467
    %v470 = vmul.f32 %v459, %v468
    %v471 = vmul.f32 %v461, %v469
    %472 = vrot.lane.b32.xlu0 %v142, 56
    %v473 = vpop.permute.xlu0 %472
    %474 = vrot.lane.b32.xlu0 %v147, 56
    %v475 = vpop.permute.xlu0 %474
    %v479 = vsel %vm246, %v470, 0
    %v482 = vsel %vm246, %v471, 0
    %484 = vmatprep.subr.mxu0 0.0
    %485 = vmatpush1.msra.mxu0 %v473
    %486 = vmatprep.subr.mxu0 0.0
    %487 = vmatpush1.msra.mxu0 %v475
    %488 = vmatprep.subr.mxu0 0.0
    %489 = vmatpush1.msra.mxu0 0.0
    %490 = vmatprep.subr.mxu0 0.0
    %491 = vmatpush1.msra.mxu0 0.0
    %492 = vmatprep.subr.mxu0 0.0
    %493 = vmatpush1.msra.mxu0 0.0
    %494 = vmatprep.subr.mxu0 0.0
    %495 = vmatpush1.msra.mxu0 0.0
    %496 = vmatprep.subr.mxu0 0.0
    %497 = vmatpush1.msra.mxu0 0.0
    %498 = vmatprep.subr.mxu0 0.0
    %499 = vmatpush1.msra.mxu0 0.0
    %500 = vmatprep.subr.mxu0 0.0
    %501 = vmatpush1.msra.mxu0 0.0
    %502 = vmatprep.subr.mxu0 0.0
    %503 = vmatpush1.msra.mxu0 0.0
    %504 = vmatprep.subr.mxu0 0.0
    %505 = vmatpush1.msra.mxu0 0.0
    %506 = vmatprep.subr.mxu0 0.0
    %507 = vmatpush1.msra.mxu0 0.0
    %508 = vmatprep.subr.mxu0 0.0
    %509 = vmatpush1.msra.mxu0 0.0
    %510 = vmatprep.subr.mxu0 0.0
    %511 = vmatpush1.msra.mxu0 0.0
    %512 = vmatprep.subr.mxu0 0.0
    %513 = vmatpush1.msra.mxu0 0.0
    %514 = vmatprep.subr.mxu0 0.0
    %515 = vmatpush1.msra.mxu0 0.0
    %516 = vmatprep.subr.mxu0 0.0
    %517 = vmatpush1.msra.mxu0 0.0
    %518 = vmatprep.subr.mxu0 0.0
    %519 = vmatpush1.msra.mxu0 0.0
    %520 = vmatprep.subr.mxu0 0.0
    %521 = vmatpush1.msra.mxu0 0.0
    %522 = vmatprep.subr.mxu0 0.0
    %523 = vmatpush1.msra.mxu0 0.0
    %524 = vmatprep.subr.mxu0 0.0
    %525 = vmatpush1.msra.mxu0 0.0
    %526 = vmatprep.subr.mxu0 0.0
    %527 = vmatpush1.msra.mxu0 0.0
    %528 = vmatprep.subr.mxu0 0.0
    %529 = vmatpush1.msra.mxu0 0.0
    %530 = vmatprep.subr.mxu0 0.0
    %531 = vmatpush1.msra.mxu0 0.0
    %532 = vmatprep.subr.mxu0 0.0
    %533 = vmatpush1.msra.mxu0 0.0
    %534 = vmatprep.subr.mxu0 0.0
    %535 = vmatpush1.msra.mxu0 0.0
    %536 = vmatprep.subr.mxu0 0.0
    %537 = vmatpush1.msra.mxu0 0.0
    %538 = vmatprep.subr.mxu0 0.0
    %539 = vmatpush1.msra.mxu0 0.0
    %540 = vmatprep.subr.mxu0 0.0
    %541 = vmatpush1.msra.mxu0 0.0
    %542 = vmatprep.subr.mxu0 0.0
    %543 = vmatpush1.msra.mxu0 0.0
    %544 = vmatprep.subr.mxu0 0.0
    %545 = vmatpush1.msra.mxu0 0.0
    %546 = vmatprep.subr.mxu0 0.0
    %547 = vmatpush1.msra.mxu0 0.0
    %548 = vmatprep.mubr.f32.mxu0 0.0
    %549 = vmatmul.mubr.f32.gmra.mrb[0].mxu0 %v479
    %v550 = vpop.f32.mrb[0].mxu0
    %v551 = vadd.f32 0.0, %v550
    %v552 = vpop.f32.mrb[0].mxu0
    %553 = vmatprep.mubr.f32.mxu0 0.0
    %554 = vmatmul.mubr.f32.gmra.mrb[0].mxu0 %v482
    %v555 = vpop.f32.mrb[0].mxu0
    %v556 = vadd.f32 0.0, %v555
    %v557 = vpop.f32.mrb[0].mxu0
    %558 = vdwg.mxu0
    %v560 = vsel %vm162, %v551, 0
    %v563 = vsel %vm162, %v556, 0
    %565 = vmatprep.subr.mxu0 0.0
    %566 = vmatpush1.msra.mxu0 %v151
    %567 = vmatprep.subr.mxu0 0.0
    %568 = vmatpush1.msra.mxu0 0.0
    %569 = vmatprep.subr.mxu0 0.0
    %570 = vmatpush1.msra.mxu0 0.0
    %571 = vmatprep.subr.mxu0 0.0
    %572 = vmatpush1.msra.mxu0 0.0
    %573 = vmatprep.subr.mxu0 0.0
    %574 = vmatpush1.msra.mxu0 0.0
    %575 = vmatprep.subr.mxu0 0.0
    %576 = vmatpush1.msra.mxu0 0.0
    %577 = vmatprep.subr.mxu0 0.0
    %578 = vmatpush1.msra.mxu0 0.0
    %579 = vmatprep.subr.mxu0 0.0
    %580 = vmatpush1.msra.mxu0 0.0
    %581 = vmatprep.subr.mxu0 0.0
    %582 = vmatpush1.msra.mxu0 0.0
    %583 = vmatprep.subr.mxu0 0.0
    %584 = vmatpush1.msra.mxu0 0.0
    %585 = vmatprep.subr.mxu0 0.0
    %586 = vmatpush1.msra.mxu0 0.0
    %587 = vmatprep.subr.mxu0 0.0
    %588 = vmatpush1.msra.mxu0 0.0
    %589 = vmatprep.subr.mxu0 0.0
    %590 = vmatpush1.msra.mxu0 0.0
    %591 = vmatprep.subr.mxu0 0.0
    %592 = vmatpush1.msra.mxu0 0.0
    %593 = vmatprep.subr.mxu0 0.0
    %594 = vmatpush1.msra.mxu0 0.0
    %595 = vmatprep.subr.mxu0 0.0
    %596 = vmatpush1.msra.mxu0 0.0
    %597 = vmatprep.subr.mxu0 0.0
    %598 = vmatpush1.msra.mxu0 0.0
    %599 = vmatprep.subr.mxu0 0.0
    %600 = vmatpush1.msra.mxu0 0.0
    %601 = vmatprep.subr.mxu0 0.0
    %602 = vmatpush1.msra.mxu0 0.0
    %603 = vmatprep.subr.mxu0 0.0
    %604 = vmatpush1.msra.mxu0 0.0
    %605 = vmatprep.subr.mxu0 0.0
    %606 = vmatpush1.msra.mxu0 0.0
    %607 = vmatprep.subr.mxu0 0.0
    %608 = vmatpush1.msra.mxu0 0.0
    %609 = vmatprep.subr.mxu0 0.0
    %610 = vmatpush1.msra.mxu0 0.0
    %611 = vmatprep.subr.mxu0 0.0
    %612 = vmatpush1.msra.mxu0 0.0
    %613 = vmatprep.subr.mxu0 0.0
    %614 = vmatpush1.msra.mxu0 0.0
    %615 = vmatprep.subr.mxu0 0.0
    %616 = vmatpush1.msra.mxu0 0.0
    %617 = vmatprep.subr.mxu0 0.0
    %618 = vmatpush1.msra.mxu0 0.0
    %619 = vmatprep.subr.mxu0 0.0
    %620 = vmatpush1.msra.mxu0 0.0
    %621 = vmatprep.subr.mxu0 0.0
    %622 = vmatpush1.msra.mxu0 0.0
    %623 = vmatprep.subr.mxu0 0.0
    %624 = vmatpush1.msra.mxu0 0.0
    %625 = vmatprep.subr.mxu0 0.0
    %626 = vmatpush1.msra.mxu0 0.0
    %627 = vmatprep.subr.mxu0 0.0
    %628 = vmatpush1.msra.mxu0 0.0
    %629 = vmatprep.mubr.f32.mxu0 0.0
    %630 = vmatmul.mubr.f32.gmra.mrb[0].mxu0 %v560
    %v631 = vpop.f32.mrb[0].mxu0
    %v632 = vadd.f32 0.0, %v631
    %v633 = vpop.f32.mrb[0].mxu0
    %634 = vmatprep.mubr.f32.mxu0 0.0
    %635 = vmatmul.mubr.f32.gmra.mrb[0].mxu0 %v563
    %v636 = vpop.f32.mrb[0].mxu0
    %v637 = vadd.f32 0.0, %v636
    %v638 = vpop.f32.mrb[0].mxu0
    %639 = vdwg.mxu0
    %v641 = vsel %vm162, %v348, 0
    %v644 = vsel %vm162, %v353, 0
    %646 = vmatprep.subr.mxu0 0.0
    %647 = vmatpush1.msra.mxu0 %v150
    %648 = vmatprep.subr.mxu0 0.0
    %649 = vmatpush1.msra.mxu0 0.0
    %650 = vmatprep.subr.mxu0 0.0
    %651 = vmatpush1.msra.mxu0 0.0
    %652 = vmatprep.subr.mxu0 0.0
    %653 = vmatpush1.msra.mxu0 0.0
    %654 = vmatprep.subr.mxu0 0.0
    %655 = vmatpush1.msra.mxu0 0.0
    %656 = vmatprep.subr.mxu0 0.0
    %657 = vmatpush1.msra.mxu0 0.0
    %658 = vmatprep.subr.mxu0 0.0
    %659 = vmatpush1.msra.mxu0 0.0
    %660 = vmatprep.subr.mxu0 0.0
    %661 = vmatpush1.msra.mxu0 0.0
    %662 = vmatprep.subr.mxu0 0.0
    %663 = vmatpush1.msra.mxu0 0.0
    %664 = vmatprep.subr.mxu0 0.0
    %665 = vmatpush1.msra.mxu0 0.0
    %666 = vmatprep.subr.mxu0 0.0
    %667 = vmatpush1.msra.mxu0 0.0
    %668 = vmatprep.subr.mxu0 0.0
    %669 = vmatpush1.msra.mxu0 0.0
    %670 = vmatprep.subr.mxu0 0.0
    %671 = vmatpush1.msra.mxu0 0.0
    %672 = vmatprep.subr.mxu0 0.0
    %673 = vmatpush1.msra.mxu0 0.0
    %674 = vmatprep.subr.mxu0 0.0
    %675 = vmatpush1.msra.mxu0 0.0
    %676 = vmatprep.subr.mxu0 0.0
    %677 = vmatpush1.msra.mxu0 0.0
    %678 = vmatprep.subr.mxu0 0.0
    %679 = vmatpush1.msra.mxu0 0.0
    %680 = vmatprep.subr.mxu0 0.0
    %681 = vmatpush1.msra.mxu0 0.0
    %682 = vmatprep.subr.mxu0 0.0
    %683 = vmatpush1.msra.mxu0 0.0
    %684 = vmatprep.subr.mxu0 0.0
    %685 = vmatpush1.msra.mxu0 0.0
    %686 = vmatprep.subr.mxu0 0.0
    %687 = vmatpush1.msra.mxu0 0.0
    %688 = vmatprep.subr.mxu0 0.0
    %689 = vmatpush1.msra.mxu0 0.0
    %690 = vmatprep.subr.mxu0 0.0
    %691 = vmatpush1.msra.mxu0 0.0
    %692 = vmatprep.subr.mxu0 0.0
    %693 = vmatpush1.msra.mxu0 0.0
    %694 = vmatprep.subr.mxu0 0.0
    %695 = vmatpush1.msra.mxu0 0.0
    %696 = vmatprep.subr.mxu0 0.0
    %697 = vmatpush1.msra.mxu0 0.0
    %698 = vmatprep.subr.mxu0 0.0
    %699 = vmatpush1.msra.mxu0 0.0
    %700 = vmatprep.subr.mxu0 0.0
    %701 = vmatpush1.msra.mxu0 0.0
    %702 = vmatprep.subr.mxu0 0.0
    %703 = vmatpush1.msra.mxu0 0.0
    %704 = vmatprep.subr.mxu0 0.0
    %705 = vmatpush1.msra.mxu0 0.0
    %706 = vmatprep.subr.mxu0 0.0
    %707 = vmatpush1.msra.mxu0 0.0
    %708 = vmatprep.subr.mxu0 0.0
    %709 = vmatpush1.msra.mxu0 0.0
    %710 = vmatprep.mubr.f32.mxu0 0.0
    %711 = vmatmul.mubr.f32.gmra.mrb[0].mxu0 %v641
    %v712 = vpop.f32.mrb[0].mxu0
    %v713 = vadd.f32 %v632, %v712
    %v714 = vpop.f32.mrb[0].mxu0
    %715 = vmatprep.mubr.f32.mxu0 0.0
    %716 = vmatmul.mubr.f32.gmra.mrb[0].mxu0 %v644
    %v717 = vpop.f32.mrb[0].mxu0
    %v718 = vadd.f32 %v637, %v717
    %v719 = vpop.f32.mrb[0].mxu0
    %720 = vdwg.mxu0
    %s721 = scalar_lea.vmem %s1, 32
    %v722 = vld [vmem:[%s721] sm:$0xff]
    %v723 = vld [vmem:[%s721 + $0x8] sm:$0xff]
    %724 = vrot.lane.b32.xlu0 %v142, 112
    %v725 = vpop.permute.xlu0 %724
    %726 = vrot.lane.b32.xlu0 %v147, 112
    %v727 = vpop.permute.xlu0 %726
    %728 = vrot.lane.b32.xlu0 %v142, 80
    %v729 = vpop.permute.xlu0 %728
    %730 = vrot.lane.b32.xlu0 %v147, 80
    %v731 = vpop.permute.xlu0 %730
    %v732 = vsel %vm162, %v725, 0
    %v734 = vsel %vm162, %v727, 0
    %v736 = vsel %vm162, %v729, 0
    %v738 = vsel %vm162, %v731, 0
    %740 = vmatprep.subr.mxu0 0.0
    %741 = vmatpush1.xpose.msra.mxu0 %v736
    %742 = vmatprep.subr.mxu0 0.0
    %743 = vmatpush1.xpose.msra.mxu0 %v738
    %744 = vmatprep.subr.mxu0 0.0
    %745 = vmatpush1.xpose.msra.mxu0 0.0
    %746 = vmatprep.subr.mxu0 0.0
    %747 = vmatpush1.xpose.msra.mxu0 0.0
    %748 = vmatprep.subr.mxu0 0.0
    %749 = vmatpush1.xpose.msra.mxu0 0.0
    %750 = vmatprep.subr.mxu0 0.0
    %751 = vmatpush1.xpose.msra.mxu0 0.0
    %752 = vmatprep.subr.mxu0 0.0
    %753 = vmatpush1.xpose.msra.mxu0 0.0
    %754 = vmatprep.subr.mxu0 0.0
    %755 = vmatpush1.xpose.msra.mxu0 0.0
    %756 = vmatprep.subr.mxu0 0.0
    %757 = vmatpush1.xpose.msra.mxu0 0.0
    %758 = vmatprep.subr.mxu0 0.0
    %759 = vmatpush1.xpose.msra.mxu0 0.0
    %760 = vmatprep.subr.mxu0 0.0
    %761 = vmatpush1.xpose.msra.mxu0 0.0
    %762 = vmatprep.subr.mxu0 0.0
    %763 = vmatpush1.xpose.msra.mxu0 0.0
    %764 = vmatprep.subr.mxu0 0.0
    %765 = vmatpush1.xpose.msra.mxu0 0.0
    %766 = vmatprep.subr.mxu0 0.0
    %767 = vmatpush1.xpose.msra.mxu0 0.0
    %768 = vmatprep.subr.mxu0 0.0
    %769 = vmatpush1.xpose.msra.mxu0 0.0
    %770 = vmatprep.subr.mxu0 0.0
    %771 = vmatpush1.xpose.msra.mxu0 0.0
    %772 = vmatprep.subr.mxu0 0.0
    %773 = vmatpush1.xpose.msra.mxu0 0.0
    %774 = vmatprep.subr.mxu0 0.0
    %775 = vmatpush1.xpose.msra.mxu0 0.0
    %776 = vmatprep.subr.mxu0 0.0
    %777 = vmatpush1.xpose.msra.mxu0 0.0
    %778 = vmatprep.subr.mxu0 0.0
    %779 = vmatpush1.xpose.msra.mxu0 0.0
    %780 = vmatprep.subr.mxu0 0.0
    %781 = vmatpush1.xpose.msra.mxu0 0.0
    %782 = vmatprep.subr.mxu0 0.0
    %783 = vmatpush1.xpose.msra.mxu0 0.0
    %784 = vmatprep.subr.mxu0 0.0
    %785 = vmatpush1.xpose.msra.mxu0 0.0
    %786 = vmatprep.subr.mxu0 0.0
    %787 = vmatpush1.xpose.msra.mxu0 0.0
    %788 = vmatprep.subr.mxu0 0.0
    %789 = vmatpush1.xpose.msra.mxu0 0.0
    %790 = vmatprep.subr.mxu0 0.0
    %791 = vmatpush1.xpose.msra.mxu0 0.0
    %792 = vmatprep.subr.mxu0 0.0
    %793 = vmatpush1.xpose.msra.mxu0 0.0
    %794 = vmatprep.subr.mxu0 0.0
    %795 = vmatpush1.xpose.msra.mxu0 0.0
    %796 = vmatprep.subr.mxu0 0.0
    %797 = vmatpush1.xpose.msra.mxu0 0.0
    %798 = vmatprep.subr.mxu0 0.0
    %799 = vmatpush1.xpose.msra.mxu0 0.0
    %800 = vmatprep.subr.mxu0 0.0
    %801 = vmatpush1.xpose.msra.mxu0 0.0
    %802 = vmatprep.subr.mxu0 0.0
    %803 = vmatpush1.xpose.msra.mxu0 0.0
    %804 = vmatprep.mubr.f32.mxu0 0.0
    %805 = vmatmul.mubr.f32.gmra.mrb[0].mxu0 %v732
    %v806 = vpop.f32.mrb[0].mxu0
    %v807 = vadd.f32 %v722, %v806
    %v808 = vpop.f32.mrb[0].mxu0
    %809 = vmatprep.mubr.f32.mxu0 0.0
    %810 = vmatmul.mubr.f32.gmra.mrb[0].mxu0 %v734
    %v811 = vpop.f32.mrb[0].mxu0
    %v812 = vadd.f32 %v723, %v811
    %v813 = vpop.f32.mrb[0].mxu0
    %814 = vdwg.mxu0
    %v815 = vsel %vm246, %v807, -inf
    %816 = vmax.xlane.f32.xlu0 %v815
    %v817 = vpop.xlane.xlu0 %816
    %v818 = vsel %vm246, %v812, -inf
    %819 = vmax.xlane.f32.xlu0 %v818
    %v820 = vpop.xlane.xlu0 %819
    %v821 = vsub.f32 %v807, %v817
    %v822 = vsub.f32 %v812, %v820
    %v823 = vmul.f32 %v821, 1.442695
    %v824 = vpow.pop %v823
    %v825 = vmul.f32 %v822, 1.442695
    %v826 = vpow.pop %v825
    %v827 = vsel %vm246, %v824, 0.0
    %828 = vadd.xlane.f32.xlu0 %v827
    %v829 = vpop.xlane.xlu0 %828
    %v830 = vsel %vm246, %v826, 0.0
    %831 = vadd.xlane.f32.xlu0 %v830
    %v832 = vpop.xlane.xlu0 %831
    %v833 = vrcp.pop %v829
    %v834 = vrcp.pop %v832
    %v835 = vmul.f32 %v824, %v833
    %v836 = vmul.f32 %v826, %v834
    %837 = vrot.lane.b32.xlu0 %v142, 48
    %v838 = vpop.permute.xlu0 %837
    %839 = vrot.lane.b32.xlu0 %v147, 48
    %v840 = vpop.permute.xlu0 %839
    %v844 = vsel %vm246, %v835, 0
    %v847 = vsel %vm246, %v836, 0
    %849 = vmatprep.subr.mxu0 0.0
    %850 = vmatpush1.msra.mxu0 %v838
    %851 = vmatprep.subr.mxu0 0.0
    %852 = vmatpush1.msra.mxu0 %v840
    %853 = vmatprep.subr.mxu0 0.0
    %854 = vmatpush1.msra.mxu0 0.0
    %855 = vmatprep.subr.mxu0 0.0
    %856 = vmatpush1.msra.mxu0 0.0
    %857 = vmatprep.subr.mxu0 0.0
    %858 = vmatpush1.msra.mxu0 0.0
    %859 = vmatprep.subr.mxu0 0.0
    %860 = vmatpush1.msra.mxu0 0.0
    %861 = vmatprep.subr.mxu0 0.0
    %862 = vmatpush1.msra.mxu0 0.0
    %863 = vmatprep.subr.mxu0 0.0
    %864 = vmatpush1.msra.mxu0 0.0
    %865 = vmatprep.subr.mxu0 0.0
    %866 = vmatpush1.msra.mxu0 0.0
    %867 = vmatprep.subr.mxu0 0.0
    %868 = vmatpush1.msra.mxu0 0.0
    %869 = vmatprep.subr.mxu0 0.0
    %870 = vmatpush1.msra.mxu0 0.0
    %871 = vmatprep.subr.mxu0 0.0
    %872 = vmatpush1.msra.mxu0 0.0
    %873 = vmatprep.subr.mxu0 0.0
    %874 = vmatpush1.msra.mxu0 0.0
    %875 = vmatprep.subr.mxu0 0.0
    %876 = vmatpush1.msra.mxu0 0.0
    %877 = vmatprep.subr.mxu0 0.0
    %878 = vmatpush1.msra.mxu0 0.0
    %879 = vmatprep.subr.mxu0 0.0
    %880 = vmatpush1.msra.mxu0 0.0
    %881 = vmatprep.subr.mxu0 0.0
    %882 = vmatpush1.msra.mxu0 0.0
    %883 = vmatprep.subr.mxu0 0.0
    %884 = vmatpush1.msra.mxu0 0.0
    %885 = vmatprep.subr.mxu0 0.0
    %886 = vmatpush1.msra.mxu0 0.0
    %887 = vmatprep.subr.mxu0 0.0
    %888 = vmatpush1.msra.mxu0 0.0
    %889 = vmatprep.subr.mxu0 0.0
    %890 = vmatpush1.msra.mxu0 0.0
    %891 = vmatprep.subr.mxu0 0.0
    %892 = vmatpush1.msra.mxu0 0.0
    %893 = vmatprep.subr.mxu0 0.0
    %894 = vmatpush1.msra.mxu0 0.0
    %895 = vmatprep.subr.mxu0 0.0
    %896 = vmatpush1.msra.mxu0 0.0
    %897 = vmatprep.subr.mxu0 0.0
    %898 = vmatpush1.msra.mxu0 0.0
    %899 = vmatprep.subr.mxu0 0.0
    %900 = vmatpush1.msra.mxu0 0.0
    %901 = vmatprep.subr.mxu0 0.0
    %902 = vmatpush1.msra.mxu0 0.0
    %903 = vmatprep.subr.mxu0 0.0
    %904 = vmatpush1.msra.mxu0 0.0
    %905 = vmatprep.subr.mxu0 0.0
    %906 = vmatpush1.msra.mxu0 0.0
    %907 = vmatprep.subr.mxu0 0.0
    %908 = vmatpush1.msra.mxu0 0.0
    %909 = vmatprep.subr.mxu0 0.0
    %910 = vmatpush1.msra.mxu0 0.0
    %911 = vmatprep.subr.mxu0 0.0
    %912 = vmatpush1.msra.mxu0 0.0
    %913 = vmatprep.mubr.f32.mxu0 0.0
    %914 = vmatmul.mubr.f32.gmra.mrb[0].mxu0 %v844
    %v915 = vpop.f32.mrb[0].mxu0
    %v916 = vadd.f32 0.0, %v915
    %v917 = vpop.f32.mrb[0].mxu0
    %918 = vmatprep.mubr.f32.mxu0 0.0
    %919 = vmatmul.mubr.f32.gmra.mrb[0].mxu0 %v847
    %v920 = vpop.f32.mrb[0].mxu0
    %v921 = vadd.f32 0.0, %v920
    %v922 = vpop.f32.mrb[0].mxu0
    %923 = vdwg.mxu0
    %v925 = vsel %vm162, %v916, 0
    %v928 = vsel %vm162, %v921, 0
    %930 = vmatprep.subr.mxu0 0.0
    %931 = vmatpush1.msra.mxu0 %v152
    %932 = vmatprep.subr.mxu0 0.0
    %933 = vmatpush1.msra.mxu0 0.0
    %934 = vmatprep.subr.mxu0 0.0
    %935 = vmatpush1.msra.mxu0 0.0
    %936 = vmatprep.subr.mxu0 0.0
    %937 = vmatpush1.msra.mxu0 0.0
    %938 = vmatprep.subr.mxu0 0.0
    %939 = vmatpush1.msra.mxu0 0.0
    %940 = vmatprep.subr.mxu0 0.0
    %941 = vmatpush1.msra.mxu0 0.0
    %942 = vmatprep.subr.mxu0 0.0
    %943 = vmatpush1.msra.mxu0 0.0
    %944 = vmatprep.subr.mxu0 0.0
    %945 = vmatpush1.msra.mxu0 0.0
    %946 = vmatprep.subr.mxu0 0.0
    %947 = vmatpush1.msra.mxu0 0.0
    %948 = vmatprep.subr.mxu0 0.0
    %949 = vmatpush1.msra.mxu0 0.0
    %950 = vmatprep.subr.mxu0 0.0
    %951 = vmatpush1.msra.mxu0 0.0
    %952 = vmatprep.subr.mxu0 0.0
    %953 = vmatpush1.msra.mxu0 0.0
    %954 = vmatprep.subr.mxu0 0.0
    %955 = vmatpush1.msra.mxu0 0.0
    %956 = vmatprep.subr.mxu0 0.0
    %957 = vmatpush1.msra.mxu0 0.0
    %958 = vmatprep.subr.mxu0 0.0
    %959 = vmatpush1.msra.mxu0 0.0
    %960 = vmatprep.subr.mxu0 0.0
    %961 = vmatpush1.msra.mxu0 0.0
    %962 = vmatprep.subr.mxu0 0.0
    %963 = vmatpush1.msra.mxu0 0.0
    %964 = vmatprep.subr.mxu0 0.0
    %965 = vmatpush1.msra.mxu0 0.0
    %966 = vmatprep.subr.mxu0 0.0
    %967 = vmatpush1.msra.mxu0 0.0
    %968 = vmatprep.subr.mxu0 0.0
    %969 = vmatpush1.msra.mxu0 0.0
    %970 = vmatprep.subr.mxu0 0.0
    %971 = vmatpush1.msra.mxu0 0.0
    %972 = vmatprep.subr.mxu0 0.0
    %973 = vmatpush1.msra.mxu0 0.0
    %974 = vmatprep.subr.mxu0 0.0
    %975 = vmatpush1.msra.mxu0 0.0
    %976 = vmatprep.subr.mxu0 0.0
    %977 = vmatpush1.msra.mxu0 0.0
    %978 = vmatprep.subr.mxu0 0.0
    %979 = vmatpush1.msra.mxu0 0.0
    %980 = vmatprep.subr.mxu0 0.0
    %981 = vmatpush1.msra.mxu0 0.0
    %982 = vmatprep.subr.mxu0 0.0
    %983 = vmatpush1.msra.mxu0 0.0
    %984 = vmatprep.subr.mxu0 0.0
    %985 = vmatpush1.msra.mxu0 0.0
    %986 = vmatprep.subr.mxu0 0.0
    %987 = vmatpush1.msra.mxu0 0.0
    %988 = vmatprep.subr.mxu0 0.0
    %989 = vmatpush1.msra.mxu0 0.0
    %990 = vmatprep.subr.mxu0 0.0
    %991 = vmatpush1.msra.mxu0 0.0
    %992 = vmatprep.subr.mxu0 0.0
    %993 = vmatpush1.msra.mxu0 0.0
    %994 = vmatprep.mubr.f32.mxu0 0.0
    %995 = vmatmul.mubr.f32.gmra.mrb[0].mxu0 %v925
    %v996 = vpop.f32.mrb[0].mxu0
    %v997 = vadd.f32 0.0, %v996
    %v998 = vpop.f32.mrb[0].mxu0
    %999 = vmatprep.mubr.f32.mxu0 0.0
    %1000 = vmatmul.mubr.f32.gmra.mrb[0].mxu0 %v928
    %v1001 = vpop.f32.mrb[0].mxu0
    %v1002 = vadd.f32 0.0, %v1001
    %v1003 = vpop.f32.mrb[0].mxu0
    %1004 = vdwg.mxu0
    %v1005 = vadd.f32 %v713, %v997
    %v1006 = vadd.f32 %v718, %v1002
    %s1007 = scalar_lea.vmem %s1, 48
    %v1008 = vld [vmem:[%s1007] sm:$0xff]
    %v1009 = vld [vmem:[%s1007 + $0x8] sm:$0xff]
    %1010 = vrot.lane.b32.xlu0 %v142, 104
    %v1011 = vpop.permute.xlu0 %1010
    %1012 = vrot.lane.b32.xlu0 %v147, 104
    %v1013 = vpop.permute.xlu0 %1012
    %1014 = vrot.lane.b32.xlu0 %v142, 72
    %v1015 = vpop.permute.xlu0 %1014
    %1016 = vrot.lane.b32.xlu0 %v147, 72
    %v1017 = vpop.permute.xlu0 %1016
    %v1018 = vsel %vm162, %v1011, 0
    %v1020 = vsel %vm162, %v1013, 0
    %v1022 = vsel %vm162, %v1015, 0
    %v1024 = vsel %vm162, %v1017, 0
    %1026 = vmatprep.subr.mxu0 0.0
    %1027 = vmatpush1.xpose.msra.mxu0 %v1022
    %1028 = vmatprep.subr.mxu0 0.0
    %1029 = vmatpush1.xpose.msra.mxu0 %v1024
    %1030 = vmatprep.subr.mxu0 0.0
    %1031 = vmatpush1.xpose.msra.mxu0 0.0
    %1032 = vmatprep.subr.mxu0 0.0
    %1033 = vmatpush1.xpose.msra.mxu0 0.0
    %1034 = vmatprep.subr.mxu0 0.0
    %1035 = vmatpush1.xpose.msra.mxu0 0.0
    %1036 = vmatprep.subr.mxu0 0.0
    %1037 = vmatpush1.xpose.msra.mxu0 0.0
    %1038 = vmatprep.subr.mxu0 0.0
    %1039 = vmatpush1.xpose.msra.mxu0 0.0
    %1040 = vmatprep.subr.mxu0 0.0
    %1041 = vmatpush1.xpose.msra.mxu0 0.0
    %1042 = vmatprep.subr.mxu0 0.0
    %1043 = vmatpush1.xpose.msra.mxu0 0.0
    %1044 = vmatprep.subr.mxu0 0.0
    %1045 = vmatpush1.xpose.msra.mxu0 0.0
    %1046 = vmatprep.subr.mxu0 0.0
    %1047 = vmatpush1.xpose.msra.mxu0 0.0
    %1048 = vmatprep.subr.mxu0 0.0
    %1049 = vmatpush1.xpose.msra.mxu0 0.0
    %1050 = vmatprep.subr.mxu0 0.0
    %1051 = vmatpush1.xpose.msra.mxu0 0.0
    %1052 = vmatprep.subr.mxu0 0.0
    %1053 = vmatpush1.xpose.msra.mxu0 0.0
    %1054 = vmatprep.subr.mxu0 0.0
    %1055 = vmatpush1.xpose.msra.mxu0 0.0
    %1056 = vmatprep.subr.mxu0 0.0
    %1057 = vmatpush1.xpose.msra.mxu0 0.0
    %1058 = vmatprep.subr.mxu0 0.0
    %1059 = vmatpush1.xpose.msra.mxu0 0.0
    %1060 = vmatprep.subr.mxu0 0.0
    %1061 = vmatpush1.xpose.msra.mxu0 0.0
    %1062 = vmatprep.subr.mxu0 0.0
    %1063 = vmatpush1.xpose.msra.mxu0 0.0
    %1064 = vmatprep.subr.mxu0 0.0
    %1065 = vmatpush1.xpose.msra.mxu0 0.0
    %1066 = vmatprep.subr.mxu0 0.0
    %1067 = vmatpush1.xpose.msra.mxu0 0.0
    %1068 = vmatprep.subr.mxu0 0.0
    %1069 = vmatpush1.xpose.msra.mxu0 0.0
    %1070 = vmatprep.subr.mxu0 0.0
    %1071 = vmatpush1.xpose.msra.mxu0 0.0
    %1072 = vmatprep.subr.mxu0 0.0
    %1073 = vmatpush1.xpose.msra.mxu0 0.0
    %1074 = vmatprep.subr.mxu0 0.0
    %1075 = vmatpush1.xpose.msra.mxu0 0.0
    %1076 = vmatprep.subr.mxu0 0.0
    %1077 = vmatpush1.xpose.msra.mxu0 0.0
    %1078 = vmatprep.subr.mxu0 0.0
    %1079 = vmatpush1.xpose.msra.mxu0 0.0
    %1080 = vmatprep.subr.mxu0 0.0
    %1081 = vmatpush1.xpose.msra.mxu0 0.0
    %1082 = vmatprep.subr.mxu0 0.0
    %1083 = vmatpush1.xpose.msra.mxu0 0.0
    %1084 = vmatprep.subr.mxu0 0.0
    %1085 = vmatpush1.xpose.msra.mxu0 0.0
    %1086 = vmatprep.subr.mxu0 0.0
    %1087 = vmatpush1.xpose.msra.mxu0 0.0
    %1088 = vmatprep.subr.mxu0 0.0
    %1089 = vmatpush1.xpose.msra.mxu0 0.0
    %1090 = vmatprep.mubr.f32.mxu0 0.0
    %1091 = vmatmul.mubr.f32.gmra.mrb[0].mxu0 %v1018
    %v1092 = vpop.f32.mrb[0].mxu0
    %v1093 = vadd.f32 %v1008, %v1092
    %v1094 = vpop.f32.mrb[0].mxu0
    %1095 = vmatprep.mubr.f32.mxu0 0.0
    %1096 = vmatmul.mubr.f32.gmra.mrb[0].mxu0 %v1020
    %v1097 = vpop.f32.mrb[0].mxu0
    %v1098 = vadd.f32 %v1009, %v1097
    %v1099 = vpop.f32.mrb[0].mxu0
    %1100 = vdwg.mxu0
    %v1101 = vsel %vm246, %v1093, -inf
    %1102 = vmax.xlane.f32.xlu0 %v1101
    %v1103 = vpop.xlane.xlu0 %1102
    %v1104 = vsel %vm246, %v1098, -inf
    %1105 = vmax.xlane.f32.xlu0 %v1104
    %v1106 = vpop.xlane.xlu0 %1105
    %v1107 = vsub.f32 %v1093, %v1103
    %v1108 = vsub.f32 %v1098, %v1106
    %v1109 = vmul.f32 %v1107, 1.442695
    %v1110 = vpow.pop %v1109
    %v1111 = vmul.f32 %v1108, 1.442695
    %v1112 = vpow.pop %v1111
    %v1113 = vsel %vm246, %v1110, 0.0
    %1114 = vadd.xlane.f32.xlu0 %v1113
    %v1115 = vpop.xlane.xlu0 %1114
    %v1116 = vsel %vm246, %v1112, 0.0
    %1117 = vadd.xlane.f32.xlu0 %v1116
    %v1118 = vpop.xlane.xlu0 %1117
    %v1119 = vrcp.pop %v1115
    %v1120 = vrcp.pop %v1118
    %v1121 = vmul.f32 %v1110, %v1119
    %v1122 = vmul.f32 %v1112, %v1120
    %1123 = vrot.lane.b32.xlu0 %v142, 40
    %v1124 = vpop.permute.xlu0 %1123
    %1125 = vrot.lane.b32.xlu0 %v147, 40
    %v1126 = vpop.permute.xlu0 %1125
    %v1130 = vsel %vm246, %v1121, 0
    %v1133 = vsel %vm246, %v1122, 0
    %1135 = vmatprep.subr.mxu0 0.0
    %1136 = vmatpush1.msra.mxu0 %v1124
    %1137 = vmatprep.subr.mxu0 0.0
    %1138 = vmatpush1.msra.mxu0 %v1126
    %1139 = vmatprep.subr.mxu0 0.0
    %1140 = vmatpush1.msra.mxu0 0.0
    %1141 = vmatprep.subr.mxu0 0.0
    %1142 = vmatpush1.msra.mxu0 0.0
    %1143 = vmatprep.subr.mxu0 0.0
    %1144 = vmatpush1.msra.mxu0 0.0
    %1145 = vmatprep.subr.mxu0 0.0
    %1146 = vmatpush1.msra.mxu0 0.0
    %1147 = vmatprep.subr.mxu0 0.0
    %1148 = vmatpush1.msra.mxu0 0.0
    %1149 = vmatprep.subr.mxu0 0.0
    %1150 = vmatpush1.msra.mxu0 0.0
    %1151 = vmatprep.subr.mxu0 0.0
    %1152 = vmatpush1.msra.mxu0 0.0
    %1153 = vmatprep.subr.mxu0 0.0
    %1154 = vmatpush1.msra.mxu0 0.0
    %1155 = vmatprep.subr.mxu0 0.0
    %1156 = vmatpush1.msra.mxu0 0.0
    %1157 = vmatprep.subr.mxu0 0.0
    %1158 = vmatpush1.msra.mxu0 0.0
    %1159 = vmatprep.subr.mxu0 0.0
    %1160 = vmatpush1.msra.mxu0 0.0
    %1161 = vmatprep.subr.mxu0 0.0
    %1162 = vmatpush1.msra.mxu0 0.0
    %1163 = vmatprep.subr.mxu0 0.0
    %1164 = vmatpush1.msra.mxu0 0.0
    %1165 = vmatprep.subr.mxu0 0.0
    %1166 = vmatpush1.msra.mxu0 0.0
    %1167 = vmatprep.subr.mxu0 0.0
    %1168 = vmatpush1.msra.mxu0 0.0
    %1169 = vmatprep.subr.mxu0 0.0
    %1170 = vmatpush1.msra.mxu0 0.0
    %1171 = vmatprep.subr.mxu0 0.0
    %1172 = vmatpush1.msra.mxu0 0.0
    %1173 = vmatprep.subr.mxu0 0.0
    %1174 = vmatpush1.msra.mxu0 0.0
    %1175 = vmatprep.subr.mxu0 0.0
    %1176 = vmatpush1.msra.mxu0 0.0
    %1177 = vmatprep.subr.mxu0 0.0
    %1178 = vmatpush1.msra.mxu0 0.0
    %1179 = vmatprep.subr.mxu0 0.0
    %1180 = vmatpush1.msra.mxu0 0.0
    %1181 = vmatprep.subr.mxu0 0.0
    %1182 = vmatpush1.msra.mxu0 0.0
    %1183 = vmatprep.subr.mxu0 0.0
    %1184 = vmatpush1.msra.mxu0 0.0
    %1185 = vmatprep.subr.mxu0 0.0
    %1186 = vmatpush1.msra.mxu0 0.0
    %1187 = vmatprep.subr.mxu0 0.0
    %1188 = vmatpush1.msra.mxu0 0.0
    %1189 = vmatprep.subr.mxu0 0.0
    %1190 = vmatpush1.msra.mxu0 0.0
    %1191 = vmatprep.subr.mxu0 0.0
    %1192 = vmatpush1.msra.mxu0 0.0
    %1193 = vmatprep.subr.mxu0 0.0
    %1194 = vmatpush1.msra.mxu0 0.0
    %1195 = vmatprep.subr.mxu0 0.0
    %1196 = vmatpush1.msra.mxu0 0.0
    %1197 = vmatprep.subr.mxu0 0.0
    %1198 = vmatpush1.msra.mxu0 0.0
    %1199 = vmatprep.mubr.f32.mxu0 0.0
    %1200 = vmatmul.mubr.f32.gmra.mrb[0].mxu0 %v1130
    %v1201 = vpop.f32.mrb[0].mxu0
    %v1202 = vadd.f32 0.0, %v1201
    %v1203 = vpop.f32.mrb[0].mxu0
    %1204 = vmatprep.mubr.f32.mxu0 0.0
    %1205 = vmatmul.mubr.f32.gmra.mrb[0].mxu0 %v1133
    %v1206 = vpop.f32.mrb[0].mxu0
    %v1207 = vadd.f32 0.0, %v1206
    %v1208 = vpop.f32.mrb[0].mxu0
    %1209 = vdwg.mxu0
    %v1211 = vsel %vm162, %v1202, 0
    %v1214 = vsel %vm162, %v1207, 0
    %1216 = vmatprep.subr.mxu0 0.0
    %1217 = vmatpush1.msra.mxu0 %v153
    %1218 = vmatprep.subr.mxu0 0.0
    %1219 = vmatpush1.msra.mxu0 0.0
    %1220 = vmatprep.subr.mxu0 0.0
    %1221 = vmatpush1.msra.mxu0 0.0
    %1222 = vmatprep.subr.mxu0 0.0
    %1223 = vmatpush1.msra.mxu0 0.0
    %1224 = vmatprep.subr.mxu0 0.0
    %1225 = vmatpush1.msra.mxu0 0.0
    %1226 = vmatprep.subr.mxu0 0.0
    %1227 = vmatpush1.msra.mxu0 0.0
    %1228 = vmatprep.subr.mxu0 0.0
    %1229 = vmatpush1.msra.mxu0 0.0
    %1230 = vmatprep.subr.mxu0 0.0
    %1231 = vmatpush1.msra.mxu0 0.0
    %1232 = vmatprep.subr.mxu0 0.0
    %1233 = vmatpush1.msra.mxu0 0.0
    %1234 = vmatprep.subr.mxu0 0.0
    %1235 = vmatpush1.msra.mxu0 0.0
    %1236 = vmatprep.subr.mxu0 0.0
    %1237 = vmatpush1.msra.mxu0 0.0
    %1238 = vmatprep.subr.mxu0 0.0
    %1239 = vmatpush1.msra.mxu0 0.0
    %1240 = vmatprep.subr.mxu0 0.0
    %1241 = vmatpush1.msra.mxu0 0.0
    %1242 = vmatprep.subr.mxu0 0.0
    %1243 = vmatpush1.msra.mxu0 0.0
    %1244 = vmatprep.subr.mxu0 0.0
    %1245 = vmatpush1.msra.mxu0 0.0
    %1246 = vmatprep.subr.mxu0 0.0
    %1247 = vmatpush1.msra.mxu0 0.0
    %1248 = vmatprep.subr.mxu0 0.0
    %1249 = vmatpush1.msra.mxu0 0.0
    %1250 = vmatprep.subr.mxu0 0.0
    %1251 = vmatpush1.msra.mxu0 0.0
    %1252 = vmatprep.subr.mxu0 0.0
    %1253 = vmatpush1.msra.mxu0 0.0
    %1254 = vmatprep.subr.mxu0 0.0
    %1255 = vmatpush1.msra.mxu0 0.0
    %1256 = vmatprep.subr.mxu0 0.0
    %1257 = vmatpush1.msra.mxu0 0.0
    %1258 = vmatprep.subr.mxu0 0.0
    %1259 = vmatpush1.msra.mxu0 0.0
    %1260 = vmatprep.subr.mxu0 0.0
    %1261 = vmatpush1.msra.mxu0 0.0
    %1262 = vmatprep.subr.mxu0 0.0
    %1263 = vmatpush1.msra.mxu0 0.0
    %1264 = vmatprep.subr.mxu0 0.0
    %1265 = vmatpush1.msra.mxu0 0.0
    %1266 = vmatprep.subr.mxu0 0.0
    %1267 = vmatpush1.msra.mxu0 0.0
    %1268 = vmatprep.subr.mxu0 0.0
    %1269 = vmatpush1.msra.mxu0 0.0
    %1270 = vmatprep.subr.mxu0 0.0
    %1271 = vmatpush1.msra.mxu0 0.0
    %1272 = vmatprep.subr.mxu0 0.0
    %1273 = vmatpush1.msra.mxu0 0.0
    %1274 = vmatprep.subr.mxu0 0.0
    %1275 = vmatpush1.msra.mxu0 0.0
    %1276 = vmatprep.subr.mxu0 0.0
    %1277 = vmatpush1.msra.mxu0 0.0
    %1278 = vmatprep.subr.mxu0 0.0
    %1279 = vmatpush1.msra.mxu0 0.0
    %1280 = vmatprep.mubr.f32.mxu0 0.0
    %1281 = vmatmul.mubr.f32.gmra.mrb[0].mxu0 %v1211
    %v1282 = vpop.f32.mrb[0].mxu0
    %v1283 = vadd.f32 0.0, %v1282
    %v1284 = vpop.f32.mrb[0].mxu0
    %1285 = vmatprep.mubr.f32.mxu0 0.0
    %1286 = vmatmul.mubr.f32.gmra.mrb[0].mxu0 %v1214
    %v1287 = vpop.f32.mrb[0].mxu0
    %v1288 = vadd.f32 0.0, %v1287
    %v1289 = vpop.f32.mrb[0].mxu0
    %1290 = vdwg.mxu0
    %v1291 = vadd.f32 %v1005, %v1283
    %v1292 = vadd.f32 %v1006, %v1288
    %v1293 = vadd.f32 %v36, %v1291
    %v1294 = vadd.f32 %v37, %v1292
    %v1295 = vld [vmem:[%s5] sm:$0x1]
    %v1296 = vmul.f32 %v1293, %v1293
    %v1297 = vmul.f32 %v1294, %v1294
    %v1298 = vsel %vm41, %v1296, 0.0
    %1299 = vadd.xlane.f32.xlu0 %v1298
    %v1300 = vpop.xlane.xlu0 %1299
    %v1301 = vsel %vm41, %v1297, 0.0
    %1302 = vadd.xlane.f32.xlu0 %v1301
    %v1303 = vpop.xlane.xlu0 %1302
    %v1304 = vmul.f32 %v1300, %v48
    %v1305 = vmul.f32 %v1303, %v48
    %v1306 = vadd.f32 %v1304, 1e-06
    %v1307 = vadd.f32 %v1305, 1e-06
    %v1308 = vrsqrt.pop %v1306
    %v1309 = vrsqrt.pop %v1307
    %v1310 = vmul.f32 %v1293, %v1308
    %v1311 = vmul.f32 %v1294, %v1309
    %v1313 = vlaneseq
    %v1314 = vshrl.u32 %v1313, 7
    %v1315 = vsub.s32 0, %v1314
    %v1316 = vrot.slane %v1295, %v1315
    %v1318 = vmul.f32 %v1310, %v1316
    %v1319 = vmul.f32 %v1311, %v1316
    %v1320 = vld [vmem:[%s6] sm:$0xff]
    %v1321 = vld [vmem:[%s6 + $0x8] sm:$0xff]
    %v1322 = vld [vmem:[%s6 + $0x10] sm:$0xff]
    %v1323 = vld [vmem:[%s6 + $0x18] sm:$0xff]
    %v1325 = vsel %vm41, %v1318, 0
    %v1328 = vsel %vm41, %v1319, 0
    %1330 = vmatprep.subr.mxu0 0.0
    %1331 = vmatpush1.msra.mxu0 %v1320
    %1332 = vmatprep.subr.mxu0 0.0
    %1333 = vmatpush1.msra.mxu0 %v1321
    %1334 = vmatprep.subr.mxu0 0.0
    %1335 = vmatpush1.msra.mxu0 %v1322
    %1336 = vmatprep.subr.mxu0 0.0
    %1337 = vmatpush1.msra.mxu0 %v1323
    %1338 = vmatprep.subr.mxu0 0.0
    %1339 = vmatpush1.msra.mxu0 0.0
    %1340 = vmatprep.subr.mxu0 0.0
    %1341 = vmatpush1.msra.mxu0 0.0
    %1342 = vmatprep.subr.mxu0 0.0
    %1343 = vmatpush1.msra.mxu0 0.0
    %1344 = vmatprep.subr.mxu0 0.0
    %1345 = vmatpush1.msra.mxu0 0.0
    %1346 = vmatprep.subr.mxu0 0.0
    %1347 = vmatpush1.msra.mxu0 0.0
    %1348 = vmatprep.subr.mxu0 0.0
    %1349 = vmatpush1.msra.mxu0 0.0
    %1350 = vmatprep.subr.mxu0 0.0
    %1351 = vmatpush1.msra.mxu0 0.0
    %1352 = vmatprep.subr.mxu0 0.0
    %1353 = vmatpush1.msra.mxu0 0.0
    %1354 = vmatprep.subr.mxu0 0.0
    %1355 = vmatpush1.msra.mxu0 0.0
    %1356 = vmatprep.subr.mxu0 0.0
    %1357 = vmatpush1.msra.mxu0 0.0
    %1358 = vmatprep.subr.mxu0 0.0
    %1359 = vmatpush1.msra.mxu0 0.0
    %1360 = vmatprep.subr.mxu0 0.0
    %1361 = vmatpush1.msra.mxu0 0.0
    %1362 = vmatprep.subr.mxu0 0.0
    %1363 = vmatpush1.msra.mxu0 0.0
    %1364 = vmatprep.subr.mxu0 0.0
    %1365 = vmatpush1.msra.mxu0 0.0
    %1366 = vmatprep.subr.mxu0 0.0
    %1367 = vmatpush1.msra.mxu0 0.0
    %1368 = vmatprep.subr.mxu0 0.0
    %1369 = vmatpush1.msra.mxu0 0.0
    %1370 = vmatprep.subr.mxu0 0.0
    %1371 = vmatpush1.msra.mxu0 0.0
    %1372 = vmatprep.subr.mxu0 0.0
    %1373 = vmatpush1.msra.mxu0 0.0
    %1374 = vmatprep.subr.mxu0 0.0
    %1375 = vmatpush1.msra.mxu0 0.0
    %1376 = vmatprep.subr.mxu0 0.0
    %1377 = vmatpush1.msra.mxu0 0.0
    %1378 = vmatprep.subr.mxu0 0.0
    %1379 = vmatpush1.msra.mxu0 0.0
    %1380 = vmatprep.subr.mxu0 0.0
    %1381 = vmatpush1.msra.mxu0 0.0
    %1382 = vmatprep.subr.mxu0 0.0
    %1383 = vmatpush1.msra.mxu0 0.0
    %1384 = vmatprep.subr.mxu0 0.0
    %1385 = vmatpush1.msra.mxu0 0.0
    %1386 = vmatprep.subr.mxu0 0.0
    %1387 = vmatpush1.msra.mxu0 0.0
    %1388 = vmatprep.subr.mxu0 0.0
    %1389 = vmatpush1.msra.mxu0 0.0
    %1390 = vmatprep.subr.mxu0 0.0
    %1391 = vmatpush1.msra.mxu0 0.0
    %1392 = vmatprep.subr.mxu0 0.0
    %1393 = vmatpush1.msra.mxu0 0.0
    %1394 = vmatprep.mubr.f32.mxu0 0.0
    %1395 = vmatmul.mubr.f32.gmra.mrb[0].mxu0 %v1325
    %v1396 = vpop.f32.mrb[0].mxu0
    %v1397 = vadd.f32 0.0, %v1396
    %v1398 = vpop.f32.mrb[0].mxu0
    %1399 = vmatprep.mubr.f32.mxu0 0.0
    %1400 = vmatmul.mubr.f32.gmra.mrb[0].mxu0 %v1328
    %v1401 = vpop.f32.mrb[0].mxu0
    %v1402 = vadd.f32 0.0, %v1401
    %v1403 = vpop.f32.mrb[0].mxu0
    %1404 = vdwg.mxu0
    %v1405 = vmax.f32 %v1397, 0.0
    %v1406 = vmax.f32 %v1402, 0.0
    %v1407 = vld [vmem:[%s7] sm:$0xff]
    %v1408 = vld [vmem:[%s7 + $0x8] sm:$0xff]
    %v1409 = vld [vmem:[%s7 + $0x10] sm:$0xff]
    %v1410 = vld [vmem:[%s7 + $0x18] sm:$0xff]
    %v1411 = vld [vmem:[%s7 + $0x20] sm:$0xff]
    %v1412 = vld [vmem:[%s7 + $0x28] sm:$0xff]
    %v1413 = vld [vmem:[%s7 + $0x30] sm:$0xff]
    %v1414 = vld [vmem:[%s7 + $0x38] sm:$0xff]
    %vm1415 = vcmask 523264
    %v1417 = vsel %vm1415, %v1405, 0
    %v1420 = vsel %vm1415, %v1406, 0
    %1422 = vmatprep.subr.mxu0 0.0
    %1423 = vmatpush1.msra.mxu0 %v1407
    %1424 = vmatprep.subr.mxu0 0.0
    %1425 = vmatpush1.msra.mxu0 %v1408
    %1426 = vmatprep.subr.mxu0 0.0
    %1427 = vmatpush1.msra.mxu0 %v1409
    %1428 = vmatprep.subr.mxu0 0.0
    %1429 = vmatpush1.msra.mxu0 %v1410
    %1430 = vmatprep.subr.mxu0 0.0
    %1431 = vmatpush1.msra.mxu0 %v1411
    %1432 = vmatprep.subr.mxu0 0.0
    %1433 = vmatpush1.msra.mxu0 %v1412
    %1434 = vmatprep.subr.mxu0 0.0
    %1435 = vmatpush1.msra.mxu0 %v1413
    %1436 = vmatprep.subr.mxu0 0.0
    %1437 = vmatpush1.msra.mxu0 %v1414
    %1438 = vmatprep.subr.mxu0 0.0
    %1439 = vmatpush1.msra.mxu0 0.0
    %1440 = vmatprep.subr.mxu0 0.0
    %1441 = vmatpush1.msra.mxu0 0.0
    %1442 = vmatprep.subr.mxu0 0.0
    %1443 = vmatpush1.msra.mxu0 0.0
    %1444 = vmatprep.subr.mxu0 0.0
    %1445 = vmatpush1.msra.mxu0 0.0
    %1446 = vmatprep.subr.mxu0 0.0
    %1447 = vmatpush1.msra.mxu0 0.0
    %1448 = vmatprep.subr.mxu0 0.0
    %1449 = vmatpush1.msra.mxu0 0.0
    %1450 = vmatprep.subr.mxu0 0.0
    %1451 = vmatpush1.msra.mxu0 0.0
    %1452 = vmatprep.subr.mxu0 0.0
    %1453 = vmatpush1.msra.mxu0 0.0
    %1454 = vmatprep.subr.mxu0 0.0
    %1455 = vmatpush1.msra.mxu0 0.0
    %1456 = vmatprep.subr.mxu0 0.0
    %1457 = vmatpush1.msra.mxu0 0.0
    %1458 = vmatprep.subr.mxu0 0.0
    %1459 = vmatpush1.msra.mxu0 0.0
    %1460 = vmatprep.subr.mxu0 0.0
    %1461 = vmatpush1.msra.mxu0 0.0
    %1462 = vmatprep.subr.mxu0 0.0
    %1463 = vmatpush1.msra.mxu0 0.0
    %1464 = vmatprep.subr.mxu0 0.0
    %1465 = vmatpush1.msra.mxu0 0.0
    %1466 = vmatprep.subr.mxu0 0.0
    %1467 = vmatpush1.msra.mxu0 0.0
    %1468 = vmatprep.subr.mxu0 0.0
    %1469 = vmatpush1.msra.mxu0 0.0
    %1470 = vmatprep.subr.mxu0 0.0
    %1471 = vmatpush1.msra.mxu0 0.0
    %1472 = vmatprep.subr.mxu0 0.0
    %1473 = vmatpush1.msra.mxu0 0.0
    %1474 = vmatprep.subr.mxu0 0.0
    %1475 = vmatpush1.msra.mxu0 0.0
    %1476 = vmatprep.subr.mxu0 0.0
    %1477 = vmatpush1.msra.mxu0 0.0
    %1478 = vmatprep.subr.mxu0 0.0
    %1479 = vmatpush1.msra.mxu0 0.0
    %1480 = vmatprep.subr.mxu0 0.0
    %1481 = vmatpush1.msra.mxu0 0.0
    %1482 = vmatprep.subr.mxu0 0.0
    %1483 = vmatpush1.msra.mxu0 0.0
    %1484 = vmatprep.subr.mxu0 0.0
    %1485 = vmatpush1.msra.mxu0 0.0
    %1486 = vmatprep.mubr.f32.mxu0 0.0
    %1487 = vmatmul.mubr.f32.gmra.mrb[0].mxu0 %v1417
    %v1488 = vpop.f32.mrb[0].mxu0
    %v1489 = vadd.f32 0.0, %v1488
    %v1490 = vpop.f32.mrb[0].mxu0
    %1491 = vmatprep.mubr.f32.mxu0 0.0
    %1492 = vmatmul.mubr.f32.gmra.mrb[0].mxu0 %v1420
    %v1493 = vpop.f32.mrb[0].mxu0
    %v1494 = vadd.f32 0.0, %v1493
    %v1495 = vpop.f32.mrb[0].mxu0
    %1496 = vdwg.mxu0
    %v1497 = vadd.f32 %v1293, %v1489
    %v1498 = vadd.f32 %v1294, %v1494
    %s1499 = scalar_lea.vmem %s2, 1
    %v1500 = vld [vmem:[%s1499] sm:$0x1]
    %v1501 = vmul.f32 %v1497, %v1497
    %v1502 = vmul.f32 %v1498, %v1498
    %v1503 = vsel %vm41, %v1501, 0.0
    %1504 = vadd.xlane.f32.xlu0 %v1503
    %v1505 = vpop.xlane.xlu0 %1504
    %v1506 = vsel %vm41, %v1502, 0.0
    %1507 = vadd.xlane.f32.xlu0 %v1506
    %v1508 = vpop.xlane.xlu0 %1507
    %v1509 = vmul.f32 %v1505, %v48
    %v1510 = vmul.f32 %v1508, %v48
    %v1511 = vadd.f32 %v1509, 1e-06
    %v1512 = vadd.f32 %v1510, 1e-06
    %v1513 = vrsqrt.pop %v1511
    %v1514 = vrsqrt.pop %v1512
    %v1515 = vmul.f32 %v1497, %v1513
    %v1516 = vmul.f32 %v1498, %v1514
    %v1518 = vlaneseq
    %v1519 = vshrl.u32 %v1518, 7
    %v1520 = vsub.s32 0, %v1519
    %v1521 = vrot.slane %v1500, %v1520
    %v1523 = vmul.f32 %v1515, %v1521
    %v1524 = vmul.f32 %v1516, %v1521
    %s1525 = scalar_lea.vmem %s3, 32
    %v1526 = vld [vmem:[%s1525] sm:$0xff]
    %v1527 = vld [vmem:[%s1525 + $0x8] sm:$0xff]
    %v1528 = vld [vmem:[%s1525 + $0x10] sm:$0xff]
    %v1529 = vld [vmem:[%s1525 + $0x18] sm:$0xff]
    %v1531 = vsel %vm41, %v1523, 0
    %v1534 = vsel %vm41, %v1524, 0
    %1536 = vmatprep.subr.mxu0 0.0
    %1537 = vmatpush1.msra.mxu0 %v1526
    %1538 = vmatprep.subr.mxu0 0.0
    %1539 = vmatpush1.msra.mxu0 %v1527
    %1540 = vmatprep.subr.mxu0 0.0
    %1541 = vmatpush1.msra.mxu0 %v1528
    %1542 = vmatprep.subr.mxu0 0.0
    %1543 = vmatpush1.msra.mxu0 %v1529
    %1544 = vmatprep.subr.mxu0 0.0
    %1545 = vmatpush1.msra.mxu0 0.0
    %1546 = vmatprep.subr.mxu0 0.0
    %1547 = vmatpush1.msra.mxu0 0.0
    %1548 = vmatprep.subr.mxu0 0.0
    %1549 = vmatpush1.msra.mxu0 0.0
    %1550 = vmatprep.subr.mxu0 0.0
    %1551 = vmatpush1.msra.mxu0 0.0
    %1552 = vmatprep.subr.mxu0 0.0
    %1553 = vmatpush1.msra.mxu0 0.0
    %1554 = vmatprep.subr.mxu0 0.0
    %1555 = vmatpush1.msra.mxu0 0.0
    %1556 = vmatprep.subr.mxu0 0.0
    %1557 = vmatpush1.msra.mxu0 0.0
    %1558 = vmatprep.subr.mxu0 0.0
    %1559 = vmatpush1.msra.mxu0 0.0
    %1560 = vmatprep.subr.mxu0 0.0
    %1561 = vmatpush1.msra.mxu0 0.0
    %1562 = vmatprep.subr.mxu0 0.0
    %1563 = vmatpush1.msra.mxu0 0.0
    %1564 = vmatprep.subr.mxu0 0.0
    %1565 = vmatpush1.msra.mxu0 0.0
    %1566 = vmatprep.subr.mxu0 0.0
    %1567 = vmatpush1.msra.mxu0 0.0
    %1568 = vmatprep.subr.mxu0 0.0
    %1569 = vmatpush1.msra.mxu0 0.0
    %1570 = vmatprep.subr.mxu0 0.0
    %1571 = vmatpush1.msra.mxu0 0.0
    %1572 = vmatprep.subr.mxu0 0.0
    %1573 = vmatpush1.msra.mxu0 0.0
    %1574 = vmatprep.subr.mxu0 0.0
    %1575 = vmatpush1.msra.mxu0 0.0
    %1576 = vmatprep.subr.mxu0 0.0
    %1577 = vmatpush1.msra.mxu0 0.0
    %1578 = vmatprep.subr.mxu0 0.0
    %1579 = vmatpush1.msra.mxu0 0.0
    %1580 = vmatprep.subr.mxu0 0.0
    %1581 = vmatpush1.msra.mxu0 0.0
    %1582 = vmatprep.subr.mxu0 0.0
    %1583 = vmatpush1.msra.mxu0 0.0
    %1584 = vmatprep.subr.mxu0 0.0
    %1585 = vmatpush1.msra.mxu0 0.0
    %1586 = vmatprep.subr.mxu0 0.0
    %1587 = vmatpush1.msra.mxu0 0.0
    %1588 = vmatprep.subr.mxu0 0.0
    %1589 = vmatpush1.msra.mxu0 0.0
    %1590 = vmatprep.subr.mxu0 0.0
    %1591 = vmatpush1.msra.mxu0 0.0
    %1592 = vmatprep.subr.mxu0 0.0
    %1593 = vmatpush1.msra.mxu0 0.0
    %1594 = vmatprep.subr.mxu0 0.0
    %1595 = vmatpush1.msra.mxu0 0.0
    %1596 = vmatprep.subr.mxu0 0.0
    %1597 = vmatpush1.msra.mxu0 0.0
    %1598 = vmatprep.subr.mxu0 0.0
    %1599 = vmatpush1.msra.mxu0 0.0
    %1600 = vmatprep.mubr.f32.mxu0 0.0
    %1601 = vmatmul.mubr.f32.gmra.mrb[0].mxu0 %v1531
    %v1602 = vpop.f32.mrb[0].mxu0
    %v1603 = vadd.f32 0.0, %v1602
    %v1604 = vpop.f32.mrb[0].mxu0
    %1605 = vmatprep.mubr.f32.mxu0 0.0
    %1606 = vmatmul.mubr.f32.gmra.mrb[0].mxu0 %v1534
    %v1607 = vpop.f32.mrb[0].mxu0
    %v1608 = vadd.f32 0.0, %v1607
    %v1609 = vpop.f32.mrb[0].mxu0
    %1610 = vdwg.mxu0
    %s1611 = scalar_lea.vmem %s4, 32
    %v1612 = vld [vmem:[%s1611] sm:$0xff]
    %v1613 = vld [vmem:[%s1611 + $0x8] sm:$0xff]
    %v1614 = vld [vmem:[%s1611 + $0x10] sm:$0xff]
    %v1615 = vld [vmem:[%s1611 + $0x18] sm:$0xff]
    %1618 = vrot.lane.b32.xlu0 %v1603, 96
    %v1619 = vpop.permute.xlu0 %1618
    %1620 = vrot.lane.b32.xlu0 %v1608, 96
    %v1621 = vpop.permute.xlu0 %1620
    %v1622 = vsel %vm162, %v1603, 0
    %v1624 = vsel %vm162, %v1608, 0
    %v1626 = vsel %vm162, %v1619, 0
    %v1628 = vsel %vm162, %v1621, 0
    %1630 = vmatprep.subr.mxu0 0.0
    %1631 = vmatpush1.xpose.msra.mxu0 %v1626
    %1632 = vmatprep.subr.mxu0 0.0
    %1633 = vmatpush1.xpose.msra.mxu0 %v1628
    %1634 = vmatprep.subr.mxu0 0.0
    %1635 = vmatpush1.xpose.msra.mxu0 0.0
    %1636 = vmatprep.subr.mxu0 0.0
    %1637 = vmatpush1.xpose.msra.mxu0 0.0
    %1638 = vmatprep.subr.mxu0 0.0
    %1639 = vmatpush1.xpose.msra.mxu0 0.0
    %1640 = vmatprep.subr.mxu0 0.0
    %1641 = vmatpush1.xpose.msra.mxu0 0.0
    %1642 = vmatprep.subr.mxu0 0.0
    %1643 = vmatpush1.xpose.msra.mxu0 0.0
    %1644 = vmatprep.subr.mxu0 0.0
    %1645 = vmatpush1.xpose.msra.mxu0 0.0
    %1646 = vmatprep.subr.mxu0 0.0
    %1647 = vmatpush1.xpose.msra.mxu0 0.0
    %1648 = vmatprep.subr.mxu0 0.0
    %1649 = vmatpush1.xpose.msra.mxu0 0.0
    %1650 = vmatprep.subr.mxu0 0.0
    %1651 = vmatpush1.xpose.msra.mxu0 0.0
    %1652 = vmatprep.subr.mxu0 0.0
    %1653 = vmatpush1.xpose.msra.mxu0 0.0
    %1654 = vmatprep.subr.mxu0 0.0
    %1655 = vmatpush1.xpose.msra.mxu0 0.0
    %1656 = vmatprep.subr.mxu0 0.0
    %1657 = vmatpush1.xpose.msra.mxu0 0.0
    %1658 = vmatprep.subr.mxu0 0.0
    %1659 = vmatpush1.xpose.msra.mxu0 0.0
    %1660 = vmatprep.subr.mxu0 0.0
    %1661 = vmatpush1.xpose.msra.mxu0 0.0
    %1662 = vmatprep.subr.mxu0 0.0
    %1663 = vmatpush1.xpose.msra.mxu0 0.0
    %1664 = vmatprep.subr.mxu0 0.0
    %1665 = vmatpush1.xpose.msra.mxu0 0.0
    %1666 = vmatprep.subr.mxu0 0.0
    %1667 = vmatpush1.xpose.msra.mxu0 0.0
    %1668 = vmatprep.subr.mxu0 0.0
    %1669 = vmatpush1.xpose.msra.mxu0 0.0
    %1670 = vmatprep.subr.mxu0 0.0
    %1671 = vmatpush1.xpose.msra.mxu0 0.0
    %1672 = vmatprep.subr.mxu0 0.0
    %1673 = vmatpush1.xpose.msra.mxu0 0.0
    %1674 = vmatprep.subr.mxu0 0.0
    %1675 = vmatpush1.xpose.msra.mxu0 0.0
    %1676 = vmatprep.subr.mxu0 0.0
    %1677 = vmatpush1.xpose.msra.mxu0 0.0
    %1678 = vmatprep.subr.mxu0 0.0
    %1679 = vmatpush1.xpose.msra.mxu0 0.0
    %1680 = vmatprep.subr.mxu0 0.0
    %1681 = vmatpush1.xpose.msra.mxu0 0.0
    %1682 = vmatprep.subr.mxu0 0.0
    %1683 = vmatpush1.xpose.msra.mxu0 0.0
    %1684 = vmatprep.subr.mxu0 0.0
    %1685 = vmatpush1.xpose.msra.mxu0 0.0
    %1686 = vmatprep.subr.mxu0 0.0
    %1687 = vmatpush1.xpose.msra.mxu0 0.0
    %1688 = vmatprep.subr.mxu0 0.0
    %1689 = vmatpush1.xpose.msra.mxu0 0.0
    %1690 = vmatprep.subr.mxu0 0.0
    %1691 = vmatpush1.xpose.msra.mxu0 0.0
    %1692 = vmatprep.subr.mxu0 0.0
    %1693 = vmatpush1.xpose.msra.mxu0 0.0
    %1694 = vmatprep.mubr.f32.mxu0 0.0
    %1695 = vmatmul.mubr.f32.gmra.mrb[0].mxu0 %v1622
    %v1696 = vpop.f32.mrb[0].mxu0
    %v1697 = vadd.f32 %v154, %v1696
    %v1698 = vpop.f32.mrb[0].mxu0
    %1699 = vmatprep.mubr.f32.mxu0 0.0
    %1700 = vmatmul.mubr.f32.gmra.mrb[0].mxu0 %v1624
    %v1701 = vpop.f32.mrb[0].mxu0
    %v1702 = vadd.f32 %v155, %v1701
    %v1703 = vpop.f32.mrb[0].mxu0
    %1704 = vdwg.mxu0
    %v1705 = vsel %vm246, %v1697, -inf
    %1706 = vmax.xlane.f32.xlu0 %v1705
    %v1707 = vpop.xlane.xlu0 %1706
    %v1708 = vsel %vm246, %v1702, -inf
    %1709 = vmax.xlane.f32.xlu0 %v1708
    %v1710 = vpop.xlane.xlu0 %1709
    %v1711 = vsub.f32 %v1697, %v1707
    %v1712 = vsub.f32 %v1702, %v1710
    %v1713 = vmul.f32 %v1711, 1.442695
    %v1714 = vpow.pop %v1713
    %v1715 = vmul.f32 %v1712, 1.442695
    %v1716 = vpow.pop %v1715
    %v1717 = vsel %vm246, %v1714, 0.0
    %1718 = vadd.xlane.f32.xlu0 %v1717
    %v1719 = vpop.xlane.xlu0 %1718
    %v1720 = vsel %vm246, %v1716, 0.0
    %1721 = vadd.xlane.f32.xlu0 %v1720
    %v1722 = vpop.xlane.xlu0 %1721
    %v1723 = vrcp.pop %v1719
    %v1724 = vrcp.pop %v1722
    %v1725 = vmul.f32 %v1714, %v1723
    %v1726 = vmul.f32 %v1716, %v1724
    %1727 = vrot.lane.b32.xlu0 %v1603, 64
    %v1728 = vpop.permute.xlu0 %1727
    %1729 = vrot.lane.b32.xlu0 %v1608, 64
    %v1730 = vpop.permute.xlu0 %1729
    %v1734 = vsel %vm246, %v1725, 0
    %v1737 = vsel %vm246, %v1726, 0
    %1739 = vmatprep.subr.mxu0 0.0
    %1740 = vmatpush1.msra.mxu0 %v1728
    %1741 = vmatprep.subr.mxu0 0.0
    %1742 = vmatpush1.msra.mxu0 %v1730
    %1743 = vmatprep.subr.mxu0 0.0
    %1744 = vmatpush1.msra.mxu0 0.0
    %1745 = vmatprep.subr.mxu0 0.0
    %1746 = vmatpush1.msra.mxu0 0.0
    %1747 = vmatprep.subr.mxu0 0.0
    %1748 = vmatpush1.msra.mxu0 0.0
    %1749 = vmatprep.subr.mxu0 0.0
    %1750 = vmatpush1.msra.mxu0 0.0
    %1751 = vmatprep.subr.mxu0 0.0
    %1752 = vmatpush1.msra.mxu0 0.0
    %1753 = vmatprep.subr.mxu0 0.0
    %1754 = vmatpush1.msra.mxu0 0.0
    %1755 = vmatprep.subr.mxu0 0.0
    %1756 = vmatpush1.msra.mxu0 0.0
    %1757 = vmatprep.subr.mxu0 0.0
    %1758 = vmatpush1.msra.mxu0 0.0
    %1759 = vmatprep.subr.mxu0 0.0
    %1760 = vmatpush1.msra.mxu0 0.0
    %1761 = vmatprep.subr.mxu0 0.0
    %1762 = vmatpush1.msra.mxu0 0.0
    %1763 = vmatprep.subr.mxu0 0.0
    %1764 = vmatpush1.msra.mxu0 0.0
    %1765 = vmatprep.subr.mxu0 0.0
    %1766 = vmatpush1.msra.mxu0 0.0
    %1767 = vmatprep.subr.mxu0 0.0
    %1768 = vmatpush1.msra.mxu0 0.0
    %1769 = vmatprep.subr.mxu0 0.0
    %1770 = vmatpush1.msra.mxu0 0.0
    %1771 = vmatprep.subr.mxu0 0.0
    %1772 = vmatpush1.msra.mxu0 0.0
    %1773 = vmatprep.subr.mxu0 0.0
    %1774 = vmatpush1.msra.mxu0 0.0
    %1775 = vmatprep.subr.mxu0 0.0
    %1776 = vmatpush1.msra.mxu0 0.0
    %1777 = vmatprep.subr.mxu0 0.0
    %1778 = vmatpush1.msra.mxu0 0.0
    %1779 = vmatprep.subr.mxu0 0.0
    %1780 = vmatpush1.msra.mxu0 0.0
    %1781 = vmatprep.subr.mxu0 0.0
    %1782 = vmatpush1.msra.mxu0 0.0
    %1783 = vmatprep.subr.mxu0 0.0
    %1784 = vmatpush1.msra.mxu0 0.0
    %1785 = vmatprep.subr.mxu0 0.0
    %1786 = vmatpush1.msra.mxu0 0.0
    %1787 = vmatprep.subr.mxu0 0.0
    %1788 = vmatpush1.msra.mxu0 0.0
    %1789 = vmatprep.subr.mxu0 0.0
    %1790 = vmatpush1.msra.mxu0 0.0
    %1791 = vmatprep.subr.mxu0 0.0
    %1792 = vmatpush1.msra.mxu0 0.0
    %1793 = vmatprep.subr.mxu0 0.0
    %1794 = vmatpush1.msra.mxu0 0.0
    %1795 = vmatprep.subr.mxu0 0.0
    %1796 = vmatpush1.msra.mxu0 0.0
    %1797 = vmatprep.subr.mxu0 0.0
    %1798 = vmatpush1.msra.mxu0 0.0
    %1799 = vmatprep.subr.mxu0 0.0
    %1800 = vmatpush1.msra.mxu0 0.0
    %1801 = vmatprep.subr.mxu0 0.0
    %1802 = vmatpush1.msra.mxu0 0.0
    %1803 = vmatprep.mubr.f32.mxu0 0.0
    %1804 = vmatmul.mubr.f32.gmra.mrb[0].mxu0 %v1734
    %v1805 = vpop.f32.mrb[0].mxu0
    %v1806 = vadd.f32 0.0, %v1805
    %v1807 = vpop.f32.mrb[0].mxu0
    %1808 = vmatprep.mubr.f32.mxu0 0.0
    %1809 = vmatmul.mubr.f32.gmra.mrb[0].mxu0 %v1737
    %v1810 = vpop.f32.mrb[0].mxu0
    %v1811 = vadd.f32 0.0, %v1810
    %v1812 = vpop.f32.mrb[0].mxu0
    %1813 = vdwg.mxu0
    %1814 = vrot.lane.b32.xlu0 %v1603, 120
    %v1815 = vpop.permute.xlu0 %1814
    %1816 = vrot.lane.b32.xlu0 %v1608, 120
    %v1817 = vpop.permute.xlu0 %1816
    %1818 = vrot.lane.b32.xlu0 %v1603, 88
    %v1819 = vpop.permute.xlu0 %1818
    %1820 = vrot.lane.b32.xlu0 %v1608, 88
    %v1821 = vpop.permute.xlu0 %1820
    %v1822 = vsel %vm162, %v1815, 0
    %v1824 = vsel %vm162, %v1817, 0
    %v1826 = vsel %vm162, %v1819, 0
    %v1828 = vsel %vm162, %v1821, 0
    %1830 = vmatprep.subr.mxu0 0.0
    %1831 = vmatpush1.xpose.msra.mxu0 %v1826
    %1832 = vmatprep.subr.mxu0 0.0
    %1833 = vmatpush1.xpose.msra.mxu0 %v1828
    %1834 = vmatprep.subr.mxu0 0.0
    %1835 = vmatpush1.xpose.msra.mxu0 0.0
    %1836 = vmatprep.subr.mxu0 0.0
    %1837 = vmatpush1.xpose.msra.mxu0 0.0
    %1838 = vmatprep.subr.mxu0 0.0
    %1839 = vmatpush1.xpose.msra.mxu0 0.0
    %1840 = vmatprep.subr.mxu0 0.0
    %1841 = vmatpush1.xpose.msra.mxu0 0.0
    %1842 = vmatprep.subr.mxu0 0.0
    %1843 = vmatpush1.xpose.msra.mxu0 0.0
    %1844 = vmatprep.subr.mxu0 0.0
    %1845 = vmatpush1.xpose.msra.mxu0 0.0
    %1846 = vmatprep.subr.mxu0 0.0
    %1847 = vmatpush1.xpose.msra.mxu0 0.0
    %1848 = vmatprep.subr.mxu0 0.0
    %1849 = vmatpush1.xpose.msra.mxu0 0.0
    %1850 = vmatprep.subr.mxu0 0.0
    %1851 = vmatpush1.xpose.msra.mxu0 0.0
    %1852 = vmatprep.subr.mxu0 0.0
    %1853 = vmatpush1.xpose.msra.mxu0 0.0
    %1854 = vmatprep.subr.mxu0 0.0
    %1855 = vmatpush1.xpose.msra.mxu0 0.0
    %1856 = vmatprep.subr.mxu0 0.0
    %1857 = vmatpush1.xpose.msra.mxu0 0.0
    %1858 = vmatprep.subr.mxu0 0.0
    %1859 = vmatpush1.xpose.msra.mxu0 0.0
    %1860 = vmatprep.subr.mxu0 0.0
    %1861 = vmatpush1.xpose.msra.mxu0 0.0
    %1862 = vmatprep.subr.mxu0 0.0
    %1863 = vmatpush1.xpose.msra.mxu0 0.0
    %1864 = vmatprep.subr.mxu0 0.0
    %1865 = vmatpush1.xpose.msra.mxu0 0.0
    %1866 = vmatprep.subr.mxu0 0.0
    %1867 = vmatpush1.xpose.msra.mxu0 0.0
    %1868 = vmatprep.subr.mxu0 0.0
    %1869 = vmatpush1.xpose.msra.mxu0 0.0
    %1870 = vmatprep.subr.mxu0 0.0
    %1871 = vmatpush1.xpose.msra.mxu0 0.0
    %1872 = vmatprep.subr.mxu0 0.0
    %1873 = vmatpush1.xpose.msra.mxu0 0.0
    %1874 = vmatprep.subr.mxu0 0.0
    %1875 = vmatpush1.xpose.msra.mxu0 0.0
    %1876 = vmatprep.subr.mxu0 0.0
    %1877 = vmatpush1.xpose.msra.mxu0 0.0
    %1878 = vmatprep.subr.mxu0 0.0
    %1879 = vmatpush1.xpose.msra.mxu0 0.0
    %1880 = vmatprep.subr.mxu0 0.0
    %1881 = vmatpush1.xpose.msra.mxu0 0.0
    %1882 = vmatprep.subr.mxu0 0.0
    %1883 = vmatpush1.xpose.msra.mxu0 0.0
    %1884 = vmatprep.subr.mxu0 0.0
    %1885 = vmatpush1.xpose.msra.mxu0 0.0
    %1886 = vmatprep.subr.mxu0 0.0
    %1887 = vmatpush1.xpose.msra.mxu0 0.0
    %1888 = vmatprep.subr.mxu0 0.0
    %1889 = vmatpush1.xpose.msra.mxu0 0.0
    %1890 = vmatprep.subr.mxu0 0.0
    %1891 = vmatpush1.xpose.msra.mxu0 0.0
    %1892 = vmatprep.subr.mxu0 0.0
    %1893 = vmatpush1.xpose.msra.mxu0 0.0
    %1894 = vmatprep.mubr.f32.mxu0 0.0
    %1895 = vmatmul.mubr.f32.gmra.mrb[0].mxu0 %v1822
    %v1896 = vpop.f32.mrb[0].mxu0
    %v1897 = vadd.f32 %v357, %v1896
    %v1898 = vpop.f32.mrb[0].mxu0
    %1899 = vmatprep.mubr.f32.mxu0 0.0
    %1900 = vmatmul.mubr.f32.gmra.mrb[0].mxu0 %v1824
    %v1901 = vpop.f32.mrb[0].mxu0
    %v1902 = vadd.f32 %v358, %v1901
    %v1903 = vpop.f32.mrb[0].mxu0
    %1904 = vdwg.mxu0
    %v1905 = vsel %vm246, %v1897, -inf
    %1906 = vmax.xlane.f32.xlu0 %v1905
    %v1907 = vpop.xlane.xlu0 %1906
    %v1908 = vsel %vm246, %v1902, -inf
    %1909 = vmax.xlane.f32.xlu0 %v1908
    %v1910 = vpop.xlane.xlu0 %1909
    %v1911 = vsub.f32 %v1897, %v1907
    %v1912 = vsub.f32 %v1902, %v1910
    %v1913 = vmul.f32 %v1911, 1.442695
    %v1914 = vpow.pop %v1913
    %v1915 = vmul.f32 %v1912, 1.442695
    %v1916 = vpow.pop %v1915
    %v1917 = vsel %vm246, %v1914, 0.0
    %1918 = vadd.xlane.f32.xlu0 %v1917
    %v1919 = vpop.xlane.xlu0 %1918
    %v1920 = vsel %vm246, %v1916, 0.0
    %1921 = vadd.xlane.f32.xlu0 %v1920
    %v1922 = vpop.xlane.xlu0 %1921
    %v1923 = vrcp.pop %v1919
    %v1924 = vrcp.pop %v1922
    %v1925 = vmul.f32 %v1914, %v1923
    %v1926 = vmul.f32 %v1916, %v1924
    %1927 = vrot.lane.b32.xlu0 %v1603, 56
    %v1928 = vpop.permute.xlu0 %1927
    %1929 = vrot.lane.b32.xlu0 %v1608, 56
    %v1930 = vpop.permute.xlu0 %1929
    %v1934 = vsel %vm246, %v1925, 0
    %v1937 = vsel %vm246, %v1926, 0
    %1939 = vmatprep.subr.mxu0 0.0
    %1940 = vmatpush1.msra.mxu0 %v1928
    %1941 = vmatprep.subr.mxu0 0.0
    %1942 = vmatpush1.msra.mxu0 %v1930
    %1943 = vmatprep.subr.mxu0 0.0
    %1944 = vmatpush1.msra.mxu0 0.0
    %1945 = vmatprep.subr.mxu0 0.0
    %1946 = vmatpush1.msra.mxu0 0.0
    %1947 = vmatprep.subr.mxu0 0.0
    %1948 = vmatpush1.msra.mxu0 0.0
    %1949 = vmatprep.subr.mxu0 0.0
    %1950 = vmatpush1.msra.mxu0 0.0
    %1951 = vmatprep.subr.mxu0 0.0
    %1952 = vmatpush1.msra.mxu0 0.0
    %1953 = vmatprep.subr.mxu0 0.0
    %1954 = vmatpush1.msra.mxu0 0.0
    %1955 = vmatprep.subr.mxu0 0.0
    %1956 = vmatpush1.msra.mxu0 0.0
    %1957 = vmatprep.subr.mxu0 0.0
    %1958 = vmatpush1.msra.mxu0 0.0
    %1959 = vmatprep.subr.mxu0 0.0
    %1960 = vmatpush1.msra.mxu0 0.0
    %1961 = vmatprep.subr.mxu0 0.0
    %1962 = vmatpush1.msra.mxu0 0.0
    %1963 = vmatprep.subr.mxu0 0.0
    %1964 = vmatpush1.msra.mxu0 0.0
    %1965 = vmatprep.subr.mxu0 0.0
    %1966 = vmatpush1.msra.mxu0 0.0
    %1967 = vmatprep.subr.mxu0 0.0
    %1968 = vmatpush1.msra.mxu0 0.0
    %1969 = vmatprep.subr.mxu0 0.0
    %1970 = vmatpush1.msra.mxu0 0.0
    %1971 = vmatprep.subr.mxu0 0.0
    %1972 = vmatpush1.msra.mxu0 0.0
    %1973 = vmatprep.subr.mxu0 0.0
    %1974 = vmatpush1.msra.mxu0 0.0
    %1975 = vmatprep.subr.mxu0 0.0
    %1976 = vmatpush1.msra.mxu0 0.0
    %1977 = vmatprep.subr.mxu0 0.0
    %1978 = vmatpush1.msra.mxu0 0.0
    %1979 = vmatprep.subr.mxu0 0.0
    %1980 = vmatpush1.msra.mxu0 0.0
    %1981 = vmatprep.subr.mxu0 0.0
    %1982 = vmatpush1.msra.mxu0 0.0
    %1983 = vmatprep.subr.mxu0 0.0
    %1984 = vmatpush1.msra.mxu0 0.0
    %1985 = vmatprep.subr.mxu0 0.0
    %1986 = vmatpush1.msra.mxu0 0.0
    %1987 = vmatprep.subr.mxu0 0.0
    %1988 = vmatpush1.msra.mxu0 0.0
    %1989 = vmatprep.subr.mxu0 0.0
    %1990 = vmatpush1.msra.mxu0 0.0
    %1991 = vmatprep.subr.mxu0 0.0
    %1992 = vmatpush1.msra.mxu0 0.0
    %1993 = vmatprep.subr.mxu0 0.0
    %1994 = vmatpush1.msra.mxu0 0.0
    %1995 = vmatprep.subr.mxu0 0.0
    %1996 = vmatpush1.msra.mxu0 0.0
    %1997 = vmatprep.subr.mxu0 0.0
    %1998 = vmatpush1.msra.mxu0 0.0
    %1999 = vmatprep.subr.mxu0 0.0
    %2000 = vmatpush1.msra.mxu0 0.0
    %2001 = vmatprep.subr.mxu0 0.0
    %2002 = vmatpush1.msra.mxu0 0.0
    %2003 = vmatprep.mubr.f32.mxu0 0.0
    %2004 = vmatmul.mubr.f32.gmra.mrb[0].mxu0 %v1934
    %v2005 = vpop.f32.mrb[0].mxu0
    %v2006 = vadd.f32 0.0, %v2005
    %v2007 = vpop.f32.mrb[0].mxu0
    %2008 = vmatprep.mubr.f32.mxu0 0.0
    %2009 = vmatmul.mubr.f32.gmra.mrb[0].mxu0 %v1937
    %v2010 = vpop.f32.mrb[0].mxu0
    %v2011 = vadd.f32 0.0, %v2010
    %v2012 = vpop.f32.mrb[0].mxu0
    %2013 = vdwg.mxu0
    %v2015 = vsel %vm162, %v2006, 0
    %v2018 = vsel %vm162, %v2011, 0
    %2020 = vmatprep.subr.mxu0 0.0
    %2021 = vmatpush1.msra.mxu0 %v1613
    %2022 = vmatprep.subr.mxu0 0.0
    %2023 = vmatpush1.msra.mxu0 0.0
    %2024 = vmatprep.subr.mxu0 0.0
    %2025 = vmatpush1.msra.mxu0 0.0
    %2026 = vmatprep.subr.mxu0 0.0
    %2027 = vmatpush1.msra.mxu0 0.0
    %2028 = vmatprep.subr.mxu0 0.0
    %2029 = vmatpush1.msra.mxu0 0.0
    %2030 = vmatprep.subr.mxu0 0.0
    %2031 = vmatpush1.msra.mxu0 0.0
    %2032 = vmatprep.subr.mxu0 0.0
    %2033 = vmatpush1.msra.mxu0 0.0
    %2034 = vmatprep.subr.mxu0 0.0
    %2035 = vmatpush1.msra.mxu0 0.0
    %2036 = vmatprep.subr.mxu0 0.0
    %2037 = vmatpush1.msra.mxu0 0.0
    %2038 = vmatprep.subr.mxu0 0.0
    %2039 = vmatpush1.msra.mxu0 0.0
    %2040 = vmatprep.subr.mxu0 0.0
    %2041 = vmatpush1.msra.mxu0 0.0
    %2042 = vmatprep.subr.mxu0 0.0
    %2043 = vmatpush1.msra.mxu0 0.0
    %2044 = vmatprep.subr.mxu0 0.0
    %2045 = vmatpush1.msra.mxu0 0.0
    %2046 = vmatprep.subr.mxu0 0.0
    %2047 = vmatpush1.msra.mxu0 0.0
    %2048 = vmatprep.subr.mxu0 0.0
    %2049 = vmatpush1.msra.mxu0 0.0
    %2050 = vmatprep.subr.mxu0 0.0
    %2051 = vmatpush1.msra.mxu0 0.0
    %2052 = vmatprep.subr.mxu0 0.0
    %2053 = vmatpush1.msra.mxu0 0.0
    %2054 = vmatprep.subr.mxu0 0.0
    %2055 = vmatpush1.msra.mxu0 0.0
    %2056 = vmatprep.subr.mxu0 0.0
    %2057 = vmatpush1.msra.mxu0 0.0
    %2058 = vmatprep.subr.mxu0 0.0
    %2059 = vmatpush1.msra.mxu0 0.0
    %2060 = vmatprep.subr.mxu0 0.0
    %2061 = vmatpush1.msra.mxu0 0.0
    %2062 = vmatprep.subr.mxu0 0.0
    %2063 = vmatpush1.msra.mxu0 0.0
    %2064 = vmatprep.subr.mxu0 0.0
    %2065 = vmatpush1.msra.mxu0 0.0
    %2066 = vmatprep.subr.mxu0 0.0
    %2067 = vmatpush1.msra.mxu0 0.0
    %2068 = vmatprep.subr.mxu0 0.0
    %2069 = vmatpush1.msra.mxu0 0.0
    %2070 = vmatprep.subr.mxu0 0.0
    %2071 = vmatpush1.msra.mxu0 0.0
    %2072 = vmatprep.subr.mxu0 0.0
    %2073 = vmatpush1.msra.mxu0 0.0
    %2074 = vmatprep.subr.mxu0 0.0
    %2075 = vmatpush1.msra.mxu0 0.0
    %2076 = vmatprep.subr.mxu0 0.0
    %2077 = vmatpush1.msra.mxu0 0.0
    %2078 = vmatprep.subr.mxu0 0.0
    %2079 = vmatpush1.msra.mxu0 0.0
    %2080 = vmatprep.subr.mxu0 0.0
    %2081 = vmatpush1.msra.mxu0 0.0
    %2082 = vmatprep.subr.mxu0 0.0
    %2083 = vmatpush1.msra.mxu0 0.0
    %2084 = vmatprep.mubr.f32.mxu0 0.0
    %2085 = vmatmul.mubr.f32.gmra.mrb[0].mxu0 %v2015
    %v2086 = vpop.f32.mrb[0].mxu0
    %v2087 = vadd.f32 0.0, %v2086
    %v2088 = vpop.f32.mrb[0].mxu0
    %2089 = vmatprep.mubr.f32.mxu0 0.0
    %2090 = vmatmul.mubr.f32.gmra.mrb[0].mxu0 %v2018
    %v2091 = vpop.f32.mrb[0].mxu0
    %v2092 = vadd.f32 0.0, %v2091
    %v2093 = vpop.f32.mrb[0].mxu0
    %2094 = vdwg.mxu0
    %v2096 = vsel %vm162, %v1806, 0
    %v2099 = vsel %vm162, %v1811, 0
    %2101 = vmatprep.subr.mxu0 0.0
    %2102 = vmatpush1.msra.mxu0 %v1612
    %2103 = vmatprep.subr.mxu0 0.0
    %2104 = vmatpush1.msra.mxu0 0.0
    %2105 = vmatprep.subr.mxu0 0.0
    %2106 = vmatpush1.msra.mxu0 0.0
    %2107 = vmatprep.subr.mxu0 0.0
    %2108 = vmatpush1.msra.mxu0 0.0
    %2109 = vmatprep.subr.mxu0 0.0
    %2110 = vmatpush1.msra.mxu0 0.0
    %2111 = vmatprep.subr.mxu0 0.0
    %2112 = vmatpush1.msra.mxu0 0.0
    %2113 = vmatprep.subr.mxu0 0.0
    %2114 = vmatpush1.msra.mxu0 0.0
    %2115 = vmatprep.subr.mxu0 0.0
    %2116 = vmatpush1.msra.mxu0 0.0
    %2117 = vmatprep.subr.mxu0 0.0
    %2118 = vmatpush1.msra.mxu0 0.0
    %2119 = vmatprep.subr.mxu0 0.0
    %2120 = vmatpush1.msra.mxu0 0.0
    %2121 = vmatprep.subr.mxu0 0.0
    %2122 = vmatpush1.msra.mxu0 0.0
    %2123 = vmatprep.subr.mxu0 0.0
    %2124 = vmatpush1.msra.mxu0 0.0
    %2125 = vmatprep.subr.mxu0 0.0
    %2126 = vmatpush1.msra.mxu0 0.0
    %2127 = vmatprep.subr.mxu0 0.0
    %2128 = vmatpush1.msra.mxu0 0.0
    %2129 = vmatprep.subr.mxu0 0.0
    %2130 = vmatpush1.msra.mxu0 0.0
    %2131 = vmatprep.subr.mxu0 0.0
    %2132 = vmatpush1.msra.mxu0 0.0
    %2133 = vmatprep.subr.mxu0 0.0
    %2134 = vmatpush1.msra.mxu0 0.0
    %2135 = vmatprep.subr.mxu0 0.0
    %2136 = vmatpush1.msra.mxu0 0.0
    %2137 = vmatprep.subr.mxu0 0.0
    %2138 = vmatpush1.msra.mxu0 0.0
    %2139 = vmatprep.subr.mxu0 0.0
    %2140 = vmatpush1.msra.mxu0 0.0
    %2141 = vmatprep.subr.mxu0 0.0
    %2142 = vmatpush1.msra.mxu0 0.0
    %2143 = vmatprep.subr.mxu0 0.0
    %2144 = vmatpush1.msra.mxu0 0.0
    %2145 = vmatprep.subr.mxu0 0.0
    %2146 = vmatpush1.msra.mxu0 0.0
    %2147 = vmatprep.subr.mxu0 0.0
    %2148 = vmatpush1.msra.mxu0 0.0
    %2149 = vmatprep.subr.mxu0 0.0
    %2150 = vmatpush1.msra.mxu0 0.0
    %2151 = vmatprep.subr.mxu0 0.0
    %2152 = vmatpush1.msra.mxu0 0.0
    %2153 = vmatprep.subr.mxu0 0.0
    %2154 = vmatpush1.msra.mxu0 0.0
    %2155 = vmatprep.subr.mxu0 0.0
    %2156 = vmatpush1.msra.mxu0 0.0
    %2157 = vmatprep.subr.mxu0 0.0
    %2158 = vmatpush1.msra.mxu0 0.0
    %2159 = vmatprep.subr.mxu0 0.0
    %2160 = vmatpush1.msra.mxu0 0.0
    %2161 = vmatprep.subr.mxu0 0.0
    %2162 = vmatpush1.msra.mxu0 0.0
    %2163 = vmatprep.subr.mxu0 0.0
    %2164 = vmatpush1.msra.mxu0 0.0
    %2165 = vmatprep.mubr.f32.mxu0 0.0
    %2166 = vmatmul.mubr.f32.gmra.mrb[0].mxu0 %v2096
    %v2167 = vpop.f32.mrb[0].mxu0
    %v2168 = vadd.f32 %v2087, %v2167
    %v2169 = vpop.f32.mrb[0].mxu0
    %2170 = vmatprep.mubr.f32.mxu0 0.0
    %2171 = vmatmul.mubr.f32.gmra.mrb[0].mxu0 %v2099
    %v2172 = vpop.f32.mrb[0].mxu0
    %v2173 = vadd.f32 %v2092, %v2172
    %v2174 = vpop.f32.mrb[0].mxu0
    %2175 = vdwg.mxu0
    %2176 = vrot.lane.b32.xlu0 %v1603, 112
    %v2177 = vpop.permute.xlu0 %2176
    %2178 = vrot.lane.b32.xlu0 %v1608, 112
    %v2179 = vpop.permute.xlu0 %2178
    %2180 = vrot.lane.b32.xlu0 %v1603, 80
    %v2181 = vpop.permute.xlu0 %2180
    %2182 = vrot.lane.b32.xlu0 %v1608, 80
    %v2183 = vpop.permute.xlu0 %2182
    %v2184 = vsel %vm162, %v2177, 0
    %v2186 = vsel %vm162, %v2179, 0
    %v2188 = vsel %vm162, %v2181, 0
    %v2190 = vsel %vm162, %v2183, 0
    %2192 = vmatprep.subr.mxu0 0.0
    %2193 = vmatpush1.xpose.msra.mxu0 %v2188
    %2194 = vmatprep.subr.mxu0 0.0
    %2195 = vmatpush1.xpose.msra.mxu0 %v2190
    %2196 = vmatprep.subr.mxu0 0.0
    %2197 = vmatpush1.xpose.msra.mxu0 0.0
    %2198 = vmatprep.subr.mxu0 0.0
    %2199 = vmatpush1.xpose.msra.mxu0 0.0
    %2200 = vmatprep.subr.mxu0 0.0
    %2201 = vmatpush1.xpose.msra.mxu0 0.0
    %2202 = vmatprep.subr.mxu0 0.0
    %2203 = vmatpush1.xpose.msra.mxu0 0.0
    %2204 = vmatprep.subr.mxu0 0.0
    %2205 = vmatpush1.xpose.msra.mxu0 0.0
    %2206 = vmatprep.subr.mxu0 0.0
    %2207 = vmatpush1.xpose.msra.mxu0 0.0
    %2208 = vmatprep.subr.mxu0 0.0
    %2209 = vmatpush1.xpose.msra.mxu0 0.0
    %2210 = vmatprep.subr.mxu0 0.0
    %2211 = vmatpush1.xpose.msra.mxu0 0.0
    %2212 = vmatprep.subr.mxu0 0.0
    %2213 = vmatpush1.xpose.msra.mxu0 0.0
    %2214 = vmatprep.subr.mxu0 0.0
    %2215 = vmatpush1.xpose.msra.mxu0 0.0
    %2216 = vmatprep.subr.mxu0 0.0
    %2217 = vmatpush1.xpose.msra.mxu0 0.0
    %2218 = vmatprep.subr.mxu0 0.0
    %2219 = vmatpush1.xpose.msra.mxu0 0.0
    %2220 = vmatprep.subr.mxu0 0.0
    %2221 = vmatpush1.xpose.msra.mxu0 0.0
    %2222 = vmatprep.subr.mxu0 0.0
    %2223 = vmatpush1.xpose.msra.mxu0 0.0
    %2224 = vmatprep.subr.mxu0 0.0
    %2225 = vmatpush1.xpose.msra.mxu0 0.0
    %2226 = vmatprep.subr.mxu0 0.0
    %2227 = vmatpush1.xpose.msra.mxu0 0.0
    %2228 = vmatprep.subr.mxu0 0.0
    %2229 = vmatpush1.xpose.msra.mxu0 0.0
    %2230 = vmatprep.subr.mxu0 0.0
    %2231 = vmatpush1.xpose.msra.mxu0 0.0
    %2232 = vmatprep.subr.mxu0 0.0
    %2233 = vmatpush1.xpose.msra.mxu0 0.0
    %2234 = vmatprep.subr.mxu0 0.0
    %2235 = vmatpush1.xpose.msra.mxu0 0.0
    %2236 = vmatprep.subr.mxu0 0.0
    %2237 = vmatpush1.xpose.msra.mxu0 0.0
    %2238 = vmatprep.subr.mxu0 0.0
    %2239 = vmatpush1.xpose.msra.mxu0 0.0
    %2240 = vmatprep.subr.mxu0 0.0
    %2241 = vmatpush1.xpose.msra.mxu0 0.0
    %2242 = vmatprep.subr.mxu0 0.0
    %2243 = vmatpush1.xpose.msra.mxu0 0.0
    %2244 = vmatprep.subr.mxu0 0.0
    %2245 = vmatpush1.xpose.msra.mxu0 0.0
    %2246 = vmatprep.subr.mxu0 0.0
    %2247 = vmatpush1.xpose.msra.mxu0 0.0
    %2248 = vmatprep.subr.mxu0 0.0
    %2249 = vmatpush1.xpose.msra.mxu0 0.0
    %2250 = vmatprep.subr.mxu0 0.0
    %2251 = vmatpush1.xpose.msra.mxu0 0.0
    %2252 = vmatprep.subr.mxu0 0.0
    %2253 = vmatpush1.xpose.msra.mxu0 0.0
    %2254 = vmatprep.subr.mxu0 0.0
    %2255 = vmatpush1.xpose.msra.mxu0 0.0
    %2256 = vmatprep.mubr.f32.mxu0 0.0
    %2257 = vmatmul.mubr.f32.gmra.mrb[0].mxu0 %v2184
    %v2258 = vpop.f32.mrb[0].mxu0
    %v2259 = vadd.f32 %v722, %v2258
    %v2260 = vpop.f32.mrb[0].mxu0
    %2261 = vmatprep.mubr.f32.mxu0 0.0
    %2262 = vmatmul.mubr.f32.gmra.mrb[0].mxu0 %v2186
    %v2263 = vpop.f32.mrb[0].mxu0
    %v2264 = vadd.f32 %v723, %v2263
    %v2265 = vpop.f32.mrb[0].mxu0
    %2266 = vdwg.mxu0
    %v2267 = vsel %vm246, %v2259, -inf
    %2268 = vmax.xlane.f32.xlu0 %v2267
    %v2269 = vpop.xlane.xlu0 %2268
    %v2270 = vsel %vm246, %v2264, -inf
    %2271 = vmax.xlane.f32.xlu0 %v2270
    %v2272 = vpop.xlane.xlu0 %2271
    %v2273 = vsub.f32 %v2259, %v2269
    %v2274 = vsub.f32 %v2264, %v2272
    %v2275 = vmul.f32 %v2273, 1.442695
    %v2276 = vpow.pop %v2275
    %v2277 = vmul.f32 %v2274, 1.442695
    %v2278 = vpow.pop %v2277
    %v2279 = vsel %vm246, %v2276, 0.0
    %2280 = vadd.xlane.f32.xlu0 %v2279
    %v2281 = vpop.xlane.xlu0 %2280
    %v2282 = vsel %vm246, %v2278, 0.0
    %2283 = vadd.xlane.f32.xlu0 %v2282
    %v2284 = vpop.xlane.xlu0 %2283
    %v2285 = vrcp.pop %v2281
    %v2286 = vrcp.pop %v2284
    %v2287 = vmul.f32 %v2276, %v2285
    %v2288 = vmul.f32 %v2278, %v2286
    %2289 = vrot.lane.b32.xlu0 %v1603, 48
    %v2290 = vpop.permute.xlu0 %2289
    %2291 = vrot.lane.b32.xlu0 %v1608, 48
    %v2292 = vpop.permute.xlu0 %2291
    %v2296 = vsel %vm246, %v2287, 0
    %v2299 = vsel %vm246, %v2288, 0
    %2301 = vmatprep.subr.mxu0 0.0
    %2302 = vmatpush1.msra.mxu0 %v2290
    %2303 = vmatprep.subr.mxu0 0.0
    %2304 = vmatpush1.msra.mxu0 %v2292
    %2305 = vmatprep.subr.mxu0 0.0
    %2306 = vmatpush1.msra.mxu0 0.0
    %2307 = vmatprep.subr.mxu0 0.0
    %2308 = vmatpush1.msra.mxu0 0.0
    %2309 = vmatprep.subr.mxu0 0.0
    %2310 = vmatpush1.msra.mxu0 0.0
    %2311 = vmatprep.subr.mxu0 0.0
    %2312 = vmatpush1.msra.mxu0 0.0
    %2313 = vmatprep.subr.mxu0 0.0
    %2314 = vmatpush1.msra.mxu0 0.0
    %2315 = vmatprep.subr.mxu0 0.0
    %2316 = vmatpush1.msra.mxu0 0.0
    %2317 = vmatprep.subr.mxu0 0.0
    %2318 = vmatpush1.msra.mxu0 0.0
    %2319 = vmatprep.subr.mxu0 0.0
    %2320 = vmatpush1.msra.mxu0 0.0
    %2321 = vmatprep.subr.mxu0 0.0
    %2322 = vmatpush1.msra.mxu0 0.0
    %2323 = vmatprep.subr.mxu0 0.0
    %2324 = vmatpush1.msra.mxu0 0.0
    %2325 = vmatprep.subr.mxu0 0.0
    %2326 = vmatpush1.msra.mxu0 0.0
    %2327 = vmatprep.subr.mxu0 0.0
    %2328 = vmatpush1.msra.mxu0 0.0
    %2329 = vmatprep.subr.mxu0 0.0
    %2330 = vmatpush1.msra.mxu0 0.0
    %2331 = vmatprep.subr.mxu0 0.0
    %2332 = vmatpush1.msra.mxu0 0.0
    %2333 = vmatprep.subr.mxu0 0.0
    %2334 = vmatpush1.msra.mxu0 0.0
    %2335 = vmatprep.subr.mxu0 0.0
    %2336 = vmatpush1.msra.mxu0 0.0
    %2337 = vmatprep.subr.mxu0 0.0
    %2338 = vmatpush1.msra.mxu0 0.0
    %2339 = vmatprep.subr.mxu0 0.0
    %2340 = vmatpush1.msra.mxu0 0.0
    %2341 = vmatprep.subr.mxu0 0.0
    %2342 = vmatpush1.msra.mxu0 0.0
    %2343 = vmatprep.subr.mxu0 0.0
    %2344 = vmatpush1.msra.mxu0 0.0
    %2345 = vmatprep.subr.mxu0 0.0
    %2346 = vmatpush1.msra.mxu0 0.0
    %2347 = vmatprep.subr.mxu0 0.0
    %2348 = vmatpush1.msra.mxu0 0.0
    %2349 = vmatprep.subr.mxu0 0.0
    %2350 = vmatpush1.msra.mxu0 0.0
    %2351 = vmatprep.subr.mxu0 0.0
    %2352 = vmatpush1.msra.mxu0 0.0
    %2353 = vmatprep.subr.mxu0 0.0
    %2354 = vmatpush1.msra.mxu0 0.0
    %2355 = vmatprep.subr.mxu0 0.0
    %2356 = vmatpush1.msra.mxu0 0.0
    %2357 = vmatprep.subr.mxu0 0.0
    %2358 = vmatpush1.msra.mxu0 0.0
    %2359 = vmatprep.subr.mxu0 0.0
    %2360 = vmatpush1.msra.mxu0 0.0
    %2361 = vmatprep.subr.mxu0 0.0
    %2362 = vmatpush1.msra.mxu0 0.0
    %2363 = vmatprep.subr.mxu0 0.0
    %2364 = vmatpush1.msra.mxu0 0.0
    %2365 = vmatprep.mubr.f32.mxu0 0.0
    %2366 = vmatmul.mubr.f32.gmra.mrb[0].mxu0 %v2296
    %v2367 = vpop.f32.mrb[0].mxu0
    %v2368 = vadd.f32 0.0, %v2367
    %v2369 = vpop.f32.mrb[0].mxu0
    %2370 = vmatprep.mubr.f32.mxu0 0.0
    %2371 = vmatmul.mubr.f32.gmra.mrb[0].mxu0 %v2299
    %v2372 = vpop.f32.mrb[0].mxu0
    %v2373 = vadd.f32 0.0, %v2372
    %v2374 = vpop.f32.mrb[0].mxu0
    %2375 = vdwg.mxu0
    %v2377 = vsel %vm162, %v2368, 0
    %v2380 = vsel %vm162, %v2373, 0
    %2382 = vmatprep.subr.mxu0 0.0
    %2383 = vmatpush1.msra.mxu0 %v1614
    %2384 = vmatprep.subr.mxu0 0.0
    %2385 = vmatpush1.msra.mxu0 0.0
    %2386 = vmatprep.subr.mxu0 0.0
    %2387 = vmatpush1.msra.mxu0 0.0
    %2388 = vmatprep.subr.mxu0 0.0
    %2389 = vmatpush1.msra.mxu0 0.0
    %2390 = vmatprep.subr.mxu0 0.0
    %2391 = vmatpush1.msra.mxu0 0.0
    %2392 = vmatprep.subr.mxu0 0.0
    %2393 = vmatpush1.msra.mxu0 0.0
    %2394 = vmatprep.subr.mxu0 0.0
    %2395 = vmatpush1.msra.mxu0 0.0
    %2396 = vmatprep.subr.mxu0 0.0
    %2397 = vmatpush1.msra.mxu0 0.0
    %2398 = vmatprep.subr.mxu0 0.0
    %2399 = vmatpush1.msra.mxu0 0.0
    %2400 = vmatprep.subr.mxu0 0.0
    %2401 = vmatpush1.msra.mxu0 0.0
    %2402 = vmatprep.subr.mxu0 0.0
    %2403 = vmatpush1.msra.mxu0 0.0
    %2404 = vmatprep.subr.mxu0 0.0
    %2405 = vmatpush1.msra.mxu0 0.0
    %2406 = vmatprep.subr.mxu0 0.0
    %2407 = vmatpush1.msra.mxu0 0.0
    %2408 = vmatprep.subr.mxu0 0.0
    %2409 = vmatpush1.msra.mxu0 0.0
    %2410 = vmatprep.subr.mxu0 0.0
    %2411 = vmatpush1.msra.mxu0 0.0
    %2412 = vmatprep.subr.mxu0 0.0
    %2413 = vmatpush1.msra.mxu0 0.0
    %2414 = vmatprep.subr.mxu0 0.0
    %2415 = vmatpush1.msra.mxu0 0.0
    %2416 = vmatprep.subr.mxu0 0.0
    %2417 = vmatpush1.msra.mxu0 0.0
    %2418 = vmatprep.subr.mxu0 0.0
    %2419 = vmatpush1.msra.mxu0 0.0
    %2420 = vmatprep.subr.mxu0 0.0
    %2421 = vmatpush1.msra.mxu0 0.0
    %2422 = vmatprep.subr.mxu0 0.0
    %2423 = vmatpush1.msra.mxu0 0.0
    %2424 = vmatprep.subr.mxu0 0.0
    %2425 = vmatpush1.msra.mxu0 0.0
    %2426 = vmatprep.subr.mxu0 0.0
    %2427 = vmatpush1.msra.mxu0 0.0
    %2428 = vmatprep.subr.mxu0 0.0
    %2429 = vmatpush1.msra.mxu0 0.0
    %2430 = vmatprep.subr.mxu0 0.0
    %2431 = vmatpush1.msra.mxu0 0.0
    %2432 = vmatprep.subr.mxu0 0.0
    %2433 = vmatpush1.msra.mxu0 0.0
    %2434 = vmatprep.subr.mxu0 0.0
    %2435 = vmatpush1.msra.mxu0 0.0
    %2436 = vmatprep.subr.mxu0 0.0
    %2437 = vmatpush1.msra.mxu0 0.0
    %2438 = vmatprep.subr.mxu0 0.0
    %2439 = vmatpush1.msra.mxu0 0.0
    %2440 = vmatprep.subr.mxu0 0.0
    %2441 = vmatpush1.msra.mxu0 0.0
    %2442 = vmatprep.subr.mxu0 0.0
    %2443 = vmatpush1.msra.mxu0 0.0
    %2444 = vmatprep.subr.mxu0 0.0
    %2445 = vmatpush1.msra.mxu0 0.0
    %2446 = vmatprep.mubr.f32.mxu0 0.0
    %2447 = vmatmul.mubr.f32.gmra.mrb[0].mxu0 %v2377
    %v2448 = vpop.f32.mrb[0].mxu0
    %v2449 = vadd.f32 0.0, %v2448
    %v2450 = vpop.f32.mrb[0].mxu0
    %2451 = vmatprep.mubr.f32.mxu0 0.0
    %2452 = vmatmul.mubr.f32.gmra.mrb[0].mxu0 %v2380
    %v2453 = vpop.f32.mrb[0].mxu0
    %v2454 = vadd.f32 0.0, %v2453
    %v2455 = vpop.f32.mrb[0].mxu0
    %2456 = vdwg.mxu0
    %v2457 = vadd.f32 %v2168, %v2449
    %v2458 = vadd.f32 %v2173, %v2454
    %2459 = vrot.lane.b32.xlu0 %v1603, 104
    %v2460 = vpop.permute.xlu0 %2459
    %2461 = vrot.lane.b32.xlu0 %v1608, 104
    %v2462 = vpop.permute.xlu0 %2461
    %2463 = vrot.lane.b32.xlu0 %v1603, 72
    %v2464 = vpop.permute.xlu0 %2463
    %2465 = vrot.lane.b32.xlu0 %v1608, 72
    %v2466 = vpop.permute.xlu0 %2465
    %v2467 = vsel %vm162, %v2460, 0
    %v2469 = vsel %vm162, %v2462, 0
    %v2471 = vsel %vm162, %v2464, 0
    %v2473 = vsel %vm162, %v2466, 0
    %2475 = vmatprep.subr.mxu0 0.0
    %2476 = vmatpush1.xpose.msra.mxu0 %v2471
    %2477 = vmatprep.subr.mxu0 0.0
    %2478 = vmatpush1.xpose.msra.mxu0 %v2473
    %2479 = vmatprep.subr.mxu0 0.0
    %2480 = vmatpush1.xpose.msra.mxu0 0.0
    %2481 = vmatprep.subr.mxu0 0.0
    %2482 = vmatpush1.xpose.msra.mxu0 0.0
    %2483 = vmatprep.subr.mxu0 0.0
    %2484 = vmatpush1.xpose.msra.mxu0 0.0
    %2485 = vmatprep.subr.mxu0 0.0
    %2486 = vmatpush1.xpose.msra.mxu0 0.0
    %2487 = vmatprep.subr.mxu0 0.0
    %2488 = vmatpush1.xpose.msra.mxu0 0.0
    %2489 = vmatprep.subr.mxu0 0.0
    %2490 = vmatpush1.xpose.msra.mxu0 0.0
    %2491 = vmatprep.subr.mxu0 0.0
    %2492 = vmatpush1.xpose.msra.mxu0 0.0
    %2493 = vmatprep.subr.mxu0 0.0
    %2494 = vmatpush1.xpose.msra.mxu0 0.0
    %2495 = vmatprep.subr.mxu0 0.0
    %2496 = vmatpush1.xpose.msra.mxu0 0.0
    %2497 = vmatprep.subr.mxu0 0.0
    %2498 = vmatpush1.xpose.msra.mxu0 0.0
    %2499 = vmatprep.subr.mxu0 0.0
    %2500 = vmatpush1.xpose.msra.mxu0 0.0
    %2501 = vmatprep.subr.mxu0 0.0
    %2502 = vmatpush1.xpose.msra.mxu0 0.0
    %2503 = vmatprep.subr.mxu0 0.0
    %2504 = vmatpush1.xpose.msra.mxu0 0.0
    %2505 = vmatprep.subr.mxu0 0.0
    %2506 = vmatpush1.xpose.msra.mxu0 0.0
    %2507 = vmatprep.subr.mxu0 0.0
    %2508 = vmatpush1.xpose.msra.mxu0 0.0
    %2509 = vmatprep.subr.mxu0 0.0
    %2510 = vmatpush1.xpose.msra.mxu0 0.0
    %2511 = vmatprep.subr.mxu0 0.0
    %2512 = vmatpush1.xpose.msra.mxu0 0.0
    %2513 = vmatprep.subr.mxu0 0.0
    %2514 = vmatpush1.xpose.msra.mxu0 0.0
    %2515 = vmatprep.subr.mxu0 0.0
    %2516 = vmatpush1.xpose.msra.mxu0 0.0
    %2517 = vmatprep.subr.mxu0 0.0
    %2518 = vmatpush1.xpose.msra.mxu0 0.0
    %2519 = vmatprep.subr.mxu0 0.0
    %2520 = vmatpush1.xpose.msra.mxu0 0.0
    %2521 = vmatprep.subr.mxu0 0.0
    %2522 = vmatpush1.xpose.msra.mxu0 0.0
    %2523 = vmatprep.subr.mxu0 0.0
    %2524 = vmatpush1.xpose.msra.mxu0 0.0
    %2525 = vmatprep.subr.mxu0 0.0
    %2526 = vmatpush1.xpose.msra.mxu0 0.0
    %2527 = vmatprep.subr.mxu0 0.0
    %2528 = vmatpush1.xpose.msra.mxu0 0.0
    %2529 = vmatprep.subr.mxu0 0.0
    %2530 = vmatpush1.xpose.msra.mxu0 0.0
    %2531 = vmatprep.subr.mxu0 0.0
    %2532 = vmatpush1.xpose.msra.mxu0 0.0
    %2533 = vmatprep.subr.mxu0 0.0
    %2534 = vmatpush1.xpose.msra.mxu0 0.0
    %2535 = vmatprep.subr.mxu0 0.0
    %2536 = vmatpush1.xpose.msra.mxu0 0.0
    %2537 = vmatprep.subr.mxu0 0.0
    %2538 = vmatpush1.xpose.msra.mxu0 0.0
    %2539 = vmatprep.mubr.f32.mxu0 0.0
    %2540 = vmatmul.mubr.f32.gmra.mrb[0].mxu0 %v2467
    %v2541 = vpop.f32.mrb[0].mxu0
    %v2542 = vadd.f32 %v1008, %v2541
    %v2543 = vpop.f32.mrb[0].mxu0
    %2544 = vmatprep.mubr.f32.mxu0 0.0
    %2545 = vmatmul.mubr.f32.gmra.mrb[0].mxu0 %v2469
    %v2546 = vpop.f32.mrb[0].mxu0
    %v2547 = vadd.f32 %v1009, %v2546
    %v2548 = vpop.f32.mrb[0].mxu0
    %2549 = vdwg.mxu0
    %v2550 = vsel %vm246, %v2542, -inf
    %2551 = vmax.xlane.f32.xlu0 %v2550
    %v2552 = vpop.xlane.xlu0 %2551
    %v2553 = vsel %vm246, %v2547, -inf
    %2554 = vmax.xlane.f32.xlu0 %v2553
    %v2555 = vpop.xlane.xlu0 %2554
    %v2556 = vsub.f32 %v2542, %v2552
    %v2557 = vsub.f32 %v2547, %v2555
    %v2558 = vmul.f32 %v2556, 1.442695
    %v2559 = vpow.pop %v2558
    %v2560 = vmul.f32 %v2557, 1.442695
    %v2561 = vpow.pop %v2560
    %v2562 = vsel %vm246, %v2559, 0.0
    %2563 = vadd.xlane.f32.xlu0 %v2562
    %v2564 = vpop.xlane.xlu0 %2563
    %v2565 = vsel %vm246, %v2561, 0.0
    %2566 = vadd.xlane.f32.xlu0 %v2565
    %v2567 = vpop.xlane.xlu0 %2566
    %v2568 = vrcp.pop %v2564
    %v2569 = vrcp.pop %v2567
    %v2570 = vmul.f32 %v2559, %v2568
    %v2571 = vmul.f32 %v2561, %v2569
    %2572 = vrot.lane.b32.xlu0 %v1603, 40
    %v2573 = vpop.permute.xlu0 %2572
    %2574 = vrot.lane.b32.xlu0 %v1608, 40
    %v2575 = vpop.permute.xlu0 %2574
    %v2579 = vsel %vm246, %v2570, 0
    %v2582 = vsel %vm246, %v2571, 0
    %2584 = vmatprep.subr.mxu0 0.0
    %2585 = vmatpush1.msra.mxu0 %v2573
    %2586 = vmatprep.subr.mxu0 0.0
    %2587 = vmatpush1.msra.mxu0 %v2575
    %2588 = vmatprep.subr.mxu0 0.0
    %2589 = vmatpush1.msra.mxu0 0.0
    %2590 = vmatprep.subr.mxu0 0.0
    %2591 = vmatpush1.msra.mxu0 0.0
    %2592 = vmatprep.subr.mxu0 0.0
    %2593 = vmatpush1.msra.mxu0 0.0
    %2594 = vmatprep.subr.mxu0 0.0
    %2595 = vmatpush1.msra.mxu0 0.0
    %2596 = vmatprep.subr.mxu0 0.0
    %2597 = vmatpush1.msra.mxu0 0.0
    %2598 = vmatprep.subr.mxu0 0.0
    %2599 = vmatpush1.msra.mxu0 0.0
    %2600 = vmatprep.subr.mxu0 0.0
    %2601 = vmatpush1.msra.mxu0 0.0
    %2602 = vmatprep.subr.mxu0 0.0
    %2603 = vmatpush1.msra.mxu0 0.0
    %2604 = vmatprep.subr.mxu0 0.0
    %2605 = vmatpush1.msra.mxu0 0.0
    %2606 = vmatprep.subr.mxu0 0.0
    %2607 = vmatpush1.msra.mxu0 0.0
    %2608 = vmatprep.subr.mxu0 0.0
    %2609 = vmatpush1.msra.mxu0 0.0
    %2610 = vmatprep.subr.mxu0 0.0
    %2611 = vmatpush1.msra.mxu0 0.0
    %2612 = vmatprep.subr.mxu0 0.0
    %2613 = vmatpush1.msra.mxu0 0.0
    %2614 = vmatprep.subr.mxu0 0.0
    %2615 = vmatpush1.msra.mxu0 0.0
    %2616 = vmatprep.subr.mxu0 0.0
    %2617 = vmatpush1.msra.mxu0 0.0
    %2618 = vmatprep.subr.mxu0 0.0
    %2619 = vmatpush1.msra.mxu0 0.0
    %2620 = vmatprep.subr.mxu0 0.0
    %2621 = vmatpush1.msra.mxu0 0.0
    %2622 = vmatprep.subr.mxu0 0.0
    %2623 = vmatpush1.msra.mxu0 0.0
    %2624 = vmatprep.subr.mxu0 0.0
    %2625 = vmatpush1.msra.mxu0 0.0
    %2626 = vmatprep.subr.mxu0 0.0
    %2627 = vmatpush1.msra.mxu0 0.0
    %2628 = vmatprep.subr.mxu0 0.0
    %2629 = vmatpush1.msra.mxu0 0.0
    %2630 = vmatprep.subr.mxu0 0.0
    %2631 = vmatpush1.msra.mxu0 0.0
    %2632 = vmatprep.subr.mxu0 0.0
    %2633 = vmatpush1.msra.mxu0 0.0
    %2634 = vmatprep.subr.mxu0 0.0
    %2635 = vmatpush1.msra.mxu0 0.0
    %2636 = vmatprep.subr.mxu0 0.0
    %2637 = vmatpush1.msra.mxu0 0.0
    %2638 = vmatprep.subr.mxu0 0.0
    %2639 = vmatpush1.msra.mxu0 0.0
    %2640 = vmatprep.subr.mxu0 0.0
    %2641 = vmatpush1.msra.mxu0 0.0
    %2642 = vmatprep.subr.mxu0 0.0
    %2643 = vmatpush1.msra.mxu0 0.0
    %2644 = vmatprep.subr.mxu0 0.0
    %2645 = vmatpush1.msra.mxu0 0.0
    %2646 = vmatprep.subr.mxu0 0.0
    %2647 = vmatpush1.msra.mxu0 0.0
    %2648 = vmatprep.mubr.f32.mxu0 0.0
    %2649 = vmatmul.mubr.f32.gmra.mrb[0].mxu0 %v2579
    %v2650 = vpop.f32.mrb[0].mxu0
    %v2651 = vadd.f32 0.0, %v2650
    %v2652 = vpop.f32.mrb[0].mxu0
    %2653 = vmatprep.mubr.f32.mxu0 0.0
    %2654 = vmatmul.mubr.f32.gmra.mrb[0].mxu0 %v2582
    %v2655 = vpop.f32.mrb[0].mxu0
    %v2656 = vadd.f32 0.0, %v2655
    %v2657 = vpop.f32.mrb[0].mxu0
    %2658 = vdwg.mxu0
    %v2660 = vsel %vm162, %v2651, 0
    %v2663 = vsel %vm162, %v2656, 0
    %2665 = vmatprep.subr.mxu0 0.0
    %2666 = vmatpush1.msra.mxu0 %v1615
    %2667 = vmatprep.subr.mxu0 0.0
    %2668 = vmatpush1.msra.mxu0 0.0
    %2669 = vmatprep.subr.mxu0 0.0
    %2670 = vmatpush1.msra.mxu0 0.0
    %2671 = vmatprep.subr.mxu0 0.0
    %2672 = vmatpush1.msra.mxu0 0.0
    %2673 = vmatprep.subr.mxu0 0.0
    %2674 = vmatpush1.msra.mxu0 0.0
    %2675 = vmatprep.subr.mxu0 0.0
    %2676 = vmatpush1.msra.mxu0 0.0
    %2677 = vmatprep.subr.mxu0 0.0
    %2678 = vmatpush1.msra.mxu0 0.0
    %2679 = vmatprep.subr.mxu0 0.0
    %2680 = vmatpush1.msra.mxu0 0.0
    %2681 = vmatprep.subr.mxu0 0.0
    %2682 = vmatpush1.msra.mxu0 0.0
    %2683 = vmatprep.subr.mxu0 0.0
    %2684 = vmatpush1.msra.mxu0 0.0
    %2685 = vmatprep.subr.mxu0 0.0
    %2686 = vmatpush1.msra.mxu0 0.0
    %2687 = vmatprep.subr.mxu0 0.0
    %2688 = vmatpush1.msra.mxu0 0.0
    %2689 = vmatprep.subr.mxu0 0.0
    %2690 = vmatpush1.msra.mxu0 0.0
    %2691 = vmatprep.subr.mxu0 0.0
    %2692 = vmatpush1.msra.mxu0 0.0
    %2693 = vmatprep.subr.mxu0 0.0
    %2694 = vmatpush1.msra.mxu0 0.0
    %2695 = vmatprep.subr.mxu0 0.0
    %2696 = vmatpush1.msra.mxu0 0.0
    %2697 = vmatprep.subr.mxu0 0.0
    %2698 = vmatpush1.msra.mxu0 0.0
    %2699 = vmatprep.subr.mxu0 0.0
    %2700 = vmatpush1.msra.mxu0 0.0
    %2701 = vmatprep.subr.mxu0 0.0
    %2702 = vmatpush1.msra.mxu0 0.0
    %2703 = vmatprep.subr.mxu0 0.0
    %2704 = vmatpush1.msra.mxu0 0.0
    %2705 = vmatprep.subr.mxu0 0.0
    %2706 = vmatpush1.msra.mxu0 0.0
    %2707 = vmatprep.subr.mxu0 0.0
    %2708 = vmatpush1.msra.mxu0 0.0
    %2709 = vmatprep.subr.mxu0 0.0
    %2710 = vmatpush1.msra.mxu0 0.0
    %2711 = vmatprep.subr.mxu0 0.0
    %2712 = vmatpush1.msra.mxu0 0.0
    %2713 = vmatprep.subr.mxu0 0.0
    %2714 = vmatpush1.msra.mxu0 0.0
    %2715 = vmatprep.subr.mxu0 0.0
    %2716 = vmatpush1.msra.mxu0 0.0
    %2717 = vmatprep.subr.mxu0 0.0
    %2718 = vmatpush1.msra.mxu0 0.0
    %2719 = vmatprep.subr.mxu0 0.0
    %2720 = vmatpush1.msra.mxu0 0.0
    %2721 = vmatprep.subr.mxu0 0.0
    %2722 = vmatpush1.msra.mxu0 0.0
    %2723 = vmatprep.subr.mxu0 0.0
    %2724 = vmatpush1.msra.mxu0 0.0
    %2725 = vmatprep.subr.mxu0 0.0
    %2726 = vmatpush1.msra.mxu0 0.0
    %2727 = vmatprep.subr.mxu0 0.0
    %2728 = vmatpush1.msra.mxu0 0.0
    %2729 = vmatprep.mubr.f32.mxu0 0.0
    %2730 = vmatmul.mubr.f32.gmra.mrb[0].mxu0 %v2660
    %v2731 = vpop.f32.mrb[0].mxu0
    %v2732 = vadd.f32 0.0, %v2731
    %v2733 = vpop.f32.mrb[0].mxu0
    %2734 = vmatprep.mubr.f32.mxu0 0.0
    %2735 = vmatmul.mubr.f32.gmra.mrb[0].mxu0 %v2663
    %v2736 = vpop.f32.mrb[0].mxu0
    %v2737 = vadd.f32 0.0, %v2736
    %v2738 = vpop.f32.mrb[0].mxu0
    %2739 = vdwg.mxu0
    %v2740 = vadd.f32 %v2457, %v2732
    %v2741 = vadd.f32 %v2458, %v2737
    %v2742 = vadd.f32 %v1497, %v2740
    %v2743 = vadd.f32 %v1498, %v2741
    %s2744 = scalar_lea.vmem %s5, 1
    %v2745 = vld [vmem:[%s2744] sm:$0x1]
    %v2746 = vmul.f32 %v2742, %v2742
    %v2747 = vmul.f32 %v2743, %v2743
    %v2748 = vsel %vm41, %v2746, 0.0
    %2749 = vadd.xlane.f32.xlu0 %v2748
    %v2750 = vpop.xlane.xlu0 %2749
    %v2751 = vsel %vm41, %v2747, 0.0
    %2752 = vadd.xlane.f32.xlu0 %v2751
    %v2753 = vpop.xlane.xlu0 %2752
    %v2754 = vmul.f32 %v2750, %v48
    %v2755 = vmul.f32 %v2753, %v48
    %v2756 = vadd.f32 %v2754, 1e-06
    %v2757 = vadd.f32 %v2755, 1e-06
    %v2758 = vrsqrt.pop %v2756
    %v2759 = vrsqrt.pop %v2757
    %v2760 = vmul.f32 %v2742, %v2758
    %v2761 = vmul.f32 %v2743, %v2759
    %v2763 = vlaneseq
    %v2764 = vshrl.u32 %v2763, 7
    %v2765 = vsub.s32 0, %v2764
    %v2766 = vrot.slane %v2745, %v2765
    %v2768 = vmul.f32 %v2760, %v2766
    %v2769 = vmul.f32 %v2761, %v2766
    %s2770 = scalar_lea.vmem %s6, 32
    %v2771 = vld [vmem:[%s2770] sm:$0xff]
    %v2772 = vld [vmem:[%s2770 + $0x8] sm:$0xff]
    %v2773 = vld [vmem:[%s2770 + $0x10] sm:$0xff]
    %v2774 = vld [vmem:[%s2770 + $0x18] sm:$0xff]
    %v2776 = vsel %vm41, %v2768, 0
    %v2779 = vsel %vm41, %v2769, 0
    %2781 = vmatprep.subr.mxu0 0.0
    %2782 = vmatpush1.msra.mxu0 %v2771
    %2783 = vmatprep.subr.mxu0 0.0
    %2784 = vmatpush1.msra.mxu0 %v2772
    %2785 = vmatprep.subr.mxu0 0.0
    %2786 = vmatpush1.msra.mxu0 %v2773
    %2787 = vmatprep.subr.mxu0 0.0
    %2788 = vmatpush1.msra.mxu0 %v2774
    %2789 = vmatprep.subr.mxu0 0.0
    %2790 = vmatpush1.msra.mxu0 0.0
    %2791 = vmatprep.subr.mxu0 0.0
    %2792 = vmatpush1.msra.mxu0 0.0
    %2793 = vmatprep.subr.mxu0 0.0
    %2794 = vmatpush1.msra.mxu0 0.0
    %2795 = vmatprep.subr.mxu0 0.0
    %2796 = vmatpush1.msra.mxu0 0.0
    %2797 = vmatprep.subr.mxu0 0.0
    %2798 = vmatpush1.msra.mxu0 0.0
    %2799 = vmatprep.subr.mxu0 0.0
    %2800 = vmatpush1.msra.mxu0 0.0
    %2801 = vmatprep.subr.mxu0 0.0
    %2802 = vmatpush1.msra.mxu0 0.0
    %2803 = vmatprep.subr.mxu0 0.0
    %2804 = vmatpush1.msra.mxu0 0.0
    %2805 = vmatprep.subr.mxu0 0.0
    %2806 = vmatpush1.msra.mxu0 0.0
    %2807 = vmatprep.subr.mxu0 0.0
    %2808 = vmatpush1.msra.mxu0 0.0
    %2809 = vmatprep.subr.mxu0 0.0
    %2810 = vmatpush1.msra.mxu0 0.0
    %2811 = vmatprep.subr.mxu0 0.0
    %2812 = vmatpush1.msra.mxu0 0.0
    %2813 = vmatprep.subr.mxu0 0.0
    %2814 = vmatpush1.msra.mxu0 0.0
    %2815 = vmatprep.subr.mxu0 0.0
    %2816 = vmatpush1.msra.mxu0 0.0
    %2817 = vmatprep.subr.mxu0 0.0
    %2818 = vmatpush1.msra.mxu0 0.0
    %2819 = vmatprep.subr.mxu0 0.0
    %2820 = vmatpush1.msra.mxu0 0.0
    %2821 = vmatprep.subr.mxu0 0.0
    %2822 = vmatpush1.msra.mxu0 0.0
    %2823 = vmatprep.subr.mxu0 0.0
    %2824 = vmatpush1.msra.mxu0 0.0
    %2825 = vmatprep.subr.mxu0 0.0
    %2826 = vmatpush1.msra.mxu0 0.0
    %2827 = vmatprep.subr.mxu0 0.0
    %2828 = vmatpush1.msra.mxu0 0.0
    %2829 = vmatprep.subr.mxu0 0.0
    %2830 = vmatpush1.msra.mxu0 0.0
    %2831 = vmatprep.subr.mxu0 0.0
    %2832 = vmatpush1.msra.mxu0 0.0
    %2833 = vmatprep.subr.mxu0 0.0
    %2834 = vmatpush1.msra.mxu0 0.0
    %2835 = vmatprep.subr.mxu0 0.0
    %2836 = vmatpush1.msra.mxu0 0.0
    %2837 = vmatprep.subr.mxu0 0.0
    %2838 = vmatpush1.msra.mxu0 0.0
    %2839 = vmatprep.subr.mxu0 0.0
    %2840 = vmatpush1.msra.mxu0 0.0
    %2841 = vmatprep.subr.mxu0 0.0
    %2842 = vmatpush1.msra.mxu0 0.0
    %2843 = vmatprep.subr.mxu0 0.0
    %2844 = vmatpush1.msra.mxu0 0.0
    %2845 = vmatprep.mubr.f32.mxu0 0.0
    %2846 = vmatmul.mubr.f32.gmra.mrb[0].mxu0 %v2776
    %v2847 = vpop.f32.mrb[0].mxu0
    %v2848 = vadd.f32 0.0, %v2847
    %v2849 = vpop.f32.mrb[0].mxu0
    %2850 = vmatprep.mubr.f32.mxu0 0.0
    %2851 = vmatmul.mubr.f32.gmra.mrb[0].mxu0 %v2779
    %v2852 = vpop.f32.mrb[0].mxu0
    %v2853 = vadd.f32 0.0, %v2852
    %v2854 = vpop.f32.mrb[0].mxu0
    %2855 = vdwg.mxu0
    %v2856 = vmax.f32 %v2848, 0.0
    %v2857 = vmax.f32 %v2853, 0.0
    %s2858 = scalar_lea.vmem %s7, 64
    %v2859 = vld [vmem:[%s2858] sm:$0xff]
    %v2860 = vld [vmem:[%s2858 + $0x8] sm:$0xff]
    %v2861 = vld [vmem:[%s2858 + $0x10] sm:$0xff]
    %v2862 = vld [vmem:[%s2858 + $0x18] sm:$0xff]
    %v2863 = vld [vmem:[%s2858 + $0x20] sm:$0xff]
    %v2864 = vld [vmem:[%s2858 + $0x28] sm:$0xff]
    %v2865 = vld [vmem:[%s2858 + $0x30] sm:$0xff]
    %v2866 = vld [vmem:[%s2858 + $0x38] sm:$0xff]
    %v2868 = vsel %vm1415, %v2856, 0
    %v2871 = vsel %vm1415, %v2857, 0
    %2873 = vmatprep.subr.mxu0 0.0
    %2874 = vmatpush1.msra.mxu0 %v2859
    %2875 = vmatprep.subr.mxu0 0.0
    %2876 = vmatpush1.msra.mxu0 %v2860
    %2877 = vmatprep.subr.mxu0 0.0
    %2878 = vmatpush1.msra.mxu0 %v2861
    %2879 = vmatprep.subr.mxu0 0.0
    %2880 = vmatpush1.msra.mxu0 %v2862
    %2881 = vmatprep.subr.mxu0 0.0
    %2882 = vmatpush1.msra.mxu0 %v2863
    %2883 = vmatprep.subr.mxu0 0.0
    %2884 = vmatpush1.msra.mxu0 %v2864
    %2885 = vmatprep.subr.mxu0 0.0
    %2886 = vmatpush1.msra.mxu0 %v2865
    %2887 = vmatprep.subr.mxu0 0.0
    %2888 = vmatpush1.msra.mxu0 %v2866
    %2889 = vmatprep.subr.mxu0 0.0
    %2890 = vmatpush1.msra.mxu0 0.0
    %2891 = vmatprep.subr.mxu0 0.0
    %2892 = vmatpush1.msra.mxu0 0.0
    %2893 = vmatprep.subr.mxu0 0.0
    %2894 = vmatpush1.msra.mxu0 0.0
    %2895 = vmatprep.subr.mxu0 0.0
    %2896 = vmatpush1.msra.mxu0 0.0
    %2897 = vmatprep.subr.mxu0 0.0
    %2898 = vmatpush1.msra.mxu0 0.0
    %2899 = vmatprep.subr.mxu0 0.0
    %2900 = vmatpush1.msra.mxu0 0.0
    %2901 = vmatprep.subr.mxu0 0.0
    %2902 = vmatpush1.msra.mxu0 0.0
    %2903 = vmatprep.subr.mxu0 0.0
    %2904 = vmatpush1.msra.mxu0 0.0
    %2905 = vmatprep.subr.mxu0 0.0
    %2906 = vmatpush1.msra.mxu0 0.0
    %2907 = vmatprep.subr.mxu0 0.0
    %2908 = vmatpush1.msra.mxu0 0.0
    %2909 = vmatprep.subr.mxu0 0.0
    %2910 = vmatpush1.msra.mxu0 0.0
    %2911 = vmatprep.subr.mxu0 0.0
    %2912 = vmatpush1.msra.mxu0 0.0
    %2913 = vmatprep.subr.mxu0 0.0
    %2914 = vmatpush1.msra.mxu0 0.0
    %2915 = vmatprep.subr.mxu0 0.0
    %2916 = vmatpush1.msra.mxu0 0.0
    %2917 = vmatprep.subr.mxu0 0.0
    %2918 = vmatpush1.msra.mxu0 0.0
    %2919 = vmatprep.subr.mxu0 0.0
    %2920 = vmatpush1.msra.mxu0 0.0
    %2921 = vmatprep.subr.mxu0 0.0
    %2922 = vmatpush1.msra.mxu0 0.0
    %2923 = vmatprep.subr.mxu0 0.0
    %2924 = vmatpush1.msra.mxu0 0.0
    %2925 = vmatprep.subr.mxu0 0.0
    %2926 = vmatpush1.msra.mxu0 0.0
    %2927 = vmatprep.subr.mxu0 0.0
    %2928 = vmatpush1.msra.mxu0 0.0
    %2929 = vmatprep.subr.mxu0 0.0
    %2930 = vmatpush1.msra.mxu0 0.0
    %2931 = vmatprep.subr.mxu0 0.0
    %2932 = vmatpush1.msra.mxu0 0.0
    %2933 = vmatprep.subr.mxu0 0.0
    %2934 = vmatpush1.msra.mxu0 0.0
    %2935 = vmatprep.subr.mxu0 0.0
    %2936 = vmatpush1.msra.mxu0 0.0
    %2937 = vmatprep.mubr.f32.mxu0 0.0
    %2938 = vmatmul.mubr.f32.gmra.mrb[0].mxu0 %v2868
    %v2939 = vpop.f32.mrb[0].mxu0
    %v2940 = vadd.f32 0.0, %v2939
    %v2941 = vpop.f32.mrb[0].mxu0
    %2942 = vmatprep.mubr.f32.mxu0 0.0
    %2943 = vmatmul.mubr.f32.gmra.mrb[0].mxu0 %v2871
    %v2944 = vpop.f32.mrb[0].mxu0
    %v2945 = vadd.f32 0.0, %v2944
    %v2946 = vpop.f32.mrb[0].mxu0
    %2947 = vdwg.mxu0
    %v2948 = vadd.f32 %v2742, %v2940
    %v2949 = vadd.f32 %v2743, %v2945
    %v2950 = vld [vmem:[%s8] sm:$0x1]
    %v2951 = vmul.f32 %v2948, %v2948
    %v2952 = vmul.f32 %v2949, %v2949
    %v2953 = vsel %vm41, %v2951, 0.0
    %2954 = vadd.xlane.f32.xlu0 %v2953
    %v2955 = vpop.xlane.xlu0 %2954
    %v2956 = vsel %vm41, %v2952, 0.0
    %2957 = vadd.xlane.f32.xlu0 %v2956
    %v2958 = vpop.xlane.xlu0 %2957
    %v2959 = vmul.f32 %v2955, %v48
    %v2960 = vmul.f32 %v2958, %v48
    %v2961 = vadd.f32 %v2959, 1e-06
    %v2962 = vadd.f32 %v2960, 1e-06
    %v2963 = vrsqrt.pop %v2961
    %v2964 = vrsqrt.pop %v2962
    %v2965 = vmul.f32 %v2948, %v2963
    %v2966 = vmul.f32 %v2949, %v2964
    %v2968 = vlaneseq
    %v2969 = vshrl.u32 %v2968, 7
    %v2970 = vsub.s32 0, %v2969
    %v2971 = vrot.slane %v2950, %v2970
    %v2973 = vmul.f32 %v2965, %v2971
    %v2974 = vmul.f32 %v2966, %v2971
    %v2975 = vld [vmem:[%s9] sm:$0xff]
    %v2976 = vld [vmem:[%s9 + $0x8] sm:$0xff]
    %v2977 = vld [vmem:[%s9 + $0x10] sm:$0xff]
    %v2978 = vld [vmem:[%s9 + $0x18] sm:$0xff]
    %v2980 = vsel %vm41, %v2973, 0
    %v2983 = vsel %vm41, %v2974, 0
    %2985 = vmatprep.subr.mxu0 0.0
    %2986 = vmatpush1.msra.mxu0 %v2975
    %2987 = vmatprep.subr.mxu0 0.0
    %2988 = vmatpush1.msra.mxu0 %v2976
    %2989 = vmatprep.subr.mxu0 0.0
    %2990 = vmatpush1.msra.mxu0 %v2977
    %2991 = vmatprep.subr.mxu0 0.0
    %2992 = vmatpush1.msra.mxu0 %v2978
    %2993 = vmatprep.subr.mxu0 0.0
    %2994 = vmatpush1.msra.mxu0 0.0
    %2995 = vmatprep.subr.mxu0 0.0
    %2996 = vmatpush1.msra.mxu0 0.0
    %2997 = vmatprep.subr.mxu0 0.0
    %2998 = vmatpush1.msra.mxu0 0.0
    %2999 = vmatprep.subr.mxu0 0.0
    %3000 = vmatpush1.msra.mxu0 0.0
    %3001 = vmatprep.subr.mxu0 0.0
    %3002 = vmatpush1.msra.mxu0 0.0
    %3003 = vmatprep.subr.mxu0 0.0
    %3004 = vmatpush1.msra.mxu0 0.0
    %3005 = vmatprep.subr.mxu0 0.0
    %3006 = vmatpush1.msra.mxu0 0.0
    %3007 = vmatprep.subr.mxu0 0.0
    %3008 = vmatpush1.msra.mxu0 0.0
    %3009 = vmatprep.subr.mxu0 0.0
    %3010 = vmatpush1.msra.mxu0 0.0
    %3011 = vmatprep.subr.mxu0 0.0
    %3012 = vmatpush1.msra.mxu0 0.0
    %3013 = vmatprep.subr.mxu0 0.0
    %3014 = vmatpush1.msra.mxu0 0.0
    %3015 = vmatprep.subr.mxu0 0.0
    %3016 = vmatpush1.msra.mxu0 0.0
    %3017 = vmatprep.subr.mxu0 0.0
    %3018 = vmatpush1.msra.mxu0 0.0
    %3019 = vmatprep.subr.mxu0 0.0
    %3020 = vmatpush1.msra.mxu0 0.0
    %3021 = vmatprep.subr.mxu0 0.0
    %3022 = vmatpush1.msra.mxu0 0.0
    %3023 = vmatprep.subr.mxu0 0.0
    %3024 = vmatpush1.msra.mxu0 0.0
    %3025 = vmatprep.subr.mxu0 0.0
    %3026 = vmatpush1.msra.mxu0 0.0
    %3027 = vmatprep.subr.mxu0 0.0
    %3028 = vmatpush1.msra.mxu0 0.0
    %3029 = vmatprep.subr.mxu0 0.0
    %3030 = vmatpush1.msra.mxu0 0.0
    %3031 = vmatprep.subr.mxu0 0.0
    %3032 = vmatpush1.msra.mxu0 0.0
    %3033 = vmatprep.subr.mxu0 0.0
    %3034 = vmatpush1.msra.mxu0 0.0
    %3035 = vmatprep.subr.mxu0 0.0
    %3036 = vmatpush1.msra.mxu0 0.0
    %3037 = vmatprep.subr.mxu0 0.0
    %3038 = vmatpush1.msra.mxu0 0.0
    %3039 = vmatprep.subr.mxu0 0.0
    %3040 = vmatpush1.msra.mxu0 0.0
    %3041 = vmatprep.subr.mxu0 0.0
    %3042 = vmatpush1.msra.mxu0 0.0
    %3043 = vmatprep.subr.mxu0 0.0
    %3044 = vmatpush1.msra.mxu0 0.0
    %3045 = vmatprep.subr.mxu0 0.0
    %3046 = vmatpush1.msra.mxu0 0.0
    %3047 = vmatprep.subr.mxu0 0.0
    %3048 = vmatpush1.msra.mxu0 0.0
    %3049 = vmatprep.mubr.f32.mxu0 0.0
    %3050 = vmatmul.mubr.f32.gmra.mrb[0].mxu0 %v2980
    %v3051 = vpop.f32.mrb[0].mxu0
    %v3052 = vadd.f32 0.0, %v3051
    %v3053 = vpop.f32.mrb[0].mxu0
    %3054 = vmatprep.mubr.f32.mxu0 0.0
    %3055 = vmatmul.mubr.f32.gmra.mrb[0].mxu0 %v2983
    %v3056 = vpop.f32.mrb[0].mxu0
    %v3057 = vadd.f32 0.0, %v3056
    %v3058 = vpop.f32.mrb[0].mxu0
    %3059 = vdwg.mxu0
    %v3060 = vmul.f32 %v3052, %v3052
    %v3061 = vmul.f32 %v3057, %v3057
    %3062 = vadd.xlane.f32.xlu0 %v3060
    %v3063 = vpop.xlane.xlu0 %3062
    %3064 = vadd.xlane.f32.xlu0 %v3061
    %v3065 = vpop.xlane.xlu0 %3064
    %v3066 = vrsqrt.pop %v3063
    %v3067 = vmul.f32 %v3063, %v3066
    %vm3068 = vcmp.eq.f32.partialorder %v3063, inf
    %v3069 = vsel %vm3068, %v3063, %v3067
    %vm3070 = vcmp.eq.f32.partialorder %v3063, 0.0
    %v3071 = vand.u32 %v3063, 2147483648
    %v3072 = vsel %vm3070, %v3071, %v3069
    %v3073 = vrsqrt.pop %v3065
    %v3074 = vmul.f32 %v3065, %v3073
    %vm3075 = vcmp.eq.f32.partialorder %v3065, inf
    %v3076 = vsel %vm3075, %v3065, %v3074
    %vm3077 = vcmp.eq.f32.partialorder %v3065, 0.0
    %v3078 = vand.u32 %v3065, 2147483648
    %v3079 = vsel %vm3077, %v3078, %v3076
    %v3080 = vmax.f32 %v3072, 1e-12
    %v3081 = vmax.f32 %v3079, 1e-12
    %v3082 = vrcp.pop %v3080
    %v3083 = vmul.f32 %v3052, %v3082
    %v3084 = vrcp.pop %v3081
    %v3085 = vmul.f32 %v3057, %v3084
    %3086 = vst [vmem:[#allocation2] sm:$0xff] %v3083
    %3087 = vst [vmem:[#allocation2 + $0x8] sm:$0xff] %v3085
    // Predicated region
    $region42: #{xtr_forward.1} parent=1 // pred_check
      _
    $region43: #{xtr_forward.1} parent=1 // pred_check_branch
      %3089 = sbr.rel (0) target = $region45
    $region44: #{xtr_forward.1} parent=1 // pred_region
      %s3091 = ssub.s32 256, 256
      %3092 = vsyncadd [#allocation3], %s3091
      %s3093 = sshll.u32 [#allocation2], 4
      %s3094 = int_to_ptr.vmem [resolvable:$true] %s3093
      %3099 = dma.vmem_to_hbm [thread:$0]  %s3094, 256, %s10, [#allocation3], 128, 128, 8
    $region45: #{xtr_forward.1} parent=1 // pred_fallthru
      _
    // Predicated region
    $region46: #{xtr_forward.1} parent=1 // pred_check
      _
    $region47: #{xtr_forward.1} parent=1 // pred_check_branch
      %3101 = sbr.rel (0) target = $region49
    $region48: #{xtr_forward.1} parent=1 // pred_region
      %3102 = dma.done [#allocation3], 256
    $region49: #{xtr_forward.1} parent=1 // pred_fallthru
      _
    %3103 = vsyncpa [#allocation3], 1

</llo_original>
